<compile_context>
chip_gen: v7x
topology: tpu7x:2x2x1
jax: 0.10.0
libtpu: 0.0.40
codegen_flags: <defaults>
</compile_context>

<pallas_src>
import functools

import numpy as np
import jax
import jax.numpy as jnp
from jax.experimental import pallas as pl
from jax.experimental.pallas import tpu as pltpu

_HI = jax.lax.Precision.HIGHEST


# ---------------------------------------------------------------------------
# Host-side constant builders (all tiny)
# ---------------------------------------------------------------------------
def build_banded_weight(w, width):
    """w: (3, 3, Cin, Cout) HWIO.  Returns (3*width*Cin, width*Cout) so that a single
    matmul of [x(r-1) | x(r) | x(r+1)] (lane layout w-major, c-minor) against it gives
    the SAME-padded 3x3 conv output in the same lane layout.  Out-of-range horizontal
    taps are simply absent (zero) in the band."""
    kh, kw, cin, cout = w.shape
    sel = np.zeros((kw, width, width), np.float32)
    for dx in range(kw):
        for wo in range(width):
            wi = wo + dx - (kw // 2)
            if 0 <= wi < width:
                sel[dx, wi, wo] = 1.0
    wb = jnp.einsum("xiw,yxce->yicwe", jnp.asarray(sel), w, precision=_HI)
    return wb.reshape(kh * width * cin, width * cout)


def channel_fold_matrix(width, channels):
    """(W*C, W*C) 0/1 matrix: right-multiplying a per-lane row vector sums over the W
    positions of each channel and broadcasts the per-channel total back to every lane
    of that channel (keeps BN stats lane-dense, no cross-lane reshapes in-kernel)."""
    return jnp.asarray(np.tile(np.eye(channels, dtype=np.float32), (width, width)))


def row_boundary_masks(n, h):
    """(N*H, 1) masks zeroing the up/down vertical tap at per-image top/bottom rows
    (these are also exactly the rows where the circular shift wraps)."""
    r = np.arange(n * h)
    m_up = (r % h != 0).astype(np.float32).reshape(-1, 1)
    m_dn = (r % h != h - 1).astype(np.float32).reshape(-1, 1)
    return jnp.asarray(m_up), jnp.asarray(m_dn)


# ---------------------------------------------------------------------------
# Kernel
# ---------------------------------------------------------------------------
def _conv_bn_relu(x, m_up, m_dn, wb, fold, gamma, beta, *, count, eps, matmul_dtype):
    """x: (N*H, W*Cin) lane-dense.  Returns BN(train)+ReLU of the 3x3 'same' conv,
    shape (N*H, W*Cout), all in registers/VMEM."""
    # Vertical taps: circular shift along rows; wrapped rows are exactly the masked rows.
    up = jnp.roll(x, 1, axis=0) * m_up      # row r sees x[r-1]
    dn = jnp.roll(x, -1, axis=0) * m_dn     # row r sees x[r+1]
    xk = jnp.concatenate([up, x, dn], axis=1).astype(matmul_dtype)   # K = 3*W*Cin

    acc = jnp.dot(xk, wb, precision=_HI,
                  preferred_element_type=jnp.float32)                # (N*H, W*Cout)

    # Fused BatchNorm (training-mode, biased variance over (N, H, W)).
    colsum = jnp.sum(acc, axis=0, keepdims=True)                     # (1, W*Cout)
    colsq = jnp.sum(acc * acc, axis=0, keepdims=True)                # (1, W*Cout)
    stats = jnp.concatenate([colsum, colsq], axis=0)                 # (2, W*Cout)
    tot = jnp.dot(stats, fold, precision=_HI,
                  preferred_element_type=jnp.float32)                # per-channel totals
    inv_n = 1.0 / count
    mean = tot[0:1, :] * inv_n
    var = tot[1:2, :] * inv_n - mean * mean
    scale = gamma * jax.lax.rsqrt(var + eps)                         # (1, W*Cout)
    bias = beta - mean * scale
    return jnp.maximum(acc * scale + bias, 0.0)


def _double_conv_kernel(x_ref, mup_ref, mdn_ref,
                        wb1_ref, f1_ref, g1_ref, b1_ref,
                        wb2_ref, f2_ref, g2_ref, b2_ref,
                        o_ref, *, count, eps, matmul_dtype):
    x = x_ref[...].astype(jnp.float32)
    m_up = mup_ref[...]
    m_dn = mdn_ref[...]
    a1 = _conv_bn_relu(x, m_up, m_dn, wb1_ref[...], f1_ref[...], g1_ref[...],
                       b1_ref[...], count=count, eps=eps, matmul_dtype=matmul_dtype)
    a2 = _conv_bn_relu(a1, m_up, m_dn, wb2_ref[...], f2_ref[...], g2_ref[...],
                       b2_ref[...], count=count, eps=eps, matmul_dtype=matmul_dtype)
    o_ref[...] = a2.astype(o_ref.dtype)


# ---------------------------------------------------------------------------
# Wrapper
# ---------------------------------------------------------------------------
def double_conv_forward(x_nchw, params, eps=1e-5, matmul_dtype=jnp.float32):
    n, cin, h, w = x_nchw.shape
    cmid = params["gamma1"].shape[0]
    cout = params["gamma2"].shape[0]
    nh, count = n * h, n * h * w

    # NCHW -> lane-dense (N*H, W*C) at the module boundary (the PyTorch spec is NCHW).
    # TODO(synk): at real sizes keep activations NHWC / lane-dense end-to-end so these
    # two boundary relayout passes disappear from HBM traffic.
    x_l = jnp.transpose(x_nchw, (0, 2, 3, 1)).reshape(nh, w * cin)

    wb1 = build_banded_weight(params["w1"], w).astype(matmul_dtype)   # (3*W*Cin,  W*Cmid)
    wb2 = build_banded_weight(params["w2"], w).astype(matmul_dtype)   # (3*W*Cmid, W*Cout)
    f1 = channel_fold_matrix(w, cmid)
    f2 = channel_fold_matrix(w, cout)
    g1 = jnp.tile(params["gamma1"], w).reshape(1, w * cmid)
    b1 = jnp.tile(params["beta1"], w).reshape(1, w * cmid)
    g2 = jnp.tile(params["gamma2"], w).reshape(1, w * cout)
    b2 = jnp.tile(params["beta2"], w).reshape(1, w * cout)
    m_up, m_dn = row_boundary_masks(n, h)

    kernel = functools.partial(_double_conv_kernel, count=count, eps=eps,
                               matmul_dtype=matmul_dtype)
    vmem = pltpu.MemorySpace.VMEM
    # Single fat step (no grid): the whole batch fits trivially in VMEM at these
    # shapes, which also makes the global BN statistics available in-kernel.
    out = pl.pallas_call(
        kernel,
        out_shape=jax.ShapeDtypeStruct((nh, w * cout), jnp.float32),
        in_specs=[pl.BlockSpec(memory_space=vmem) for _ in range(11)],
        out_specs=pl.BlockSpec(memory_space=vmem),
    )(x_l, m_up, m_dn, wb1, f1, g1, b1, wb2, f2, g2, b2)

    # lane-dense -> NCHW for the module boundary.
    return jnp.transpose(out.reshape(n, h, w, cout), (0, 3, 1, 2))


def init_params(key, in_channels, out_channels, mid_channels=None):
    if not mid_channels:
        mid_channels = out_channels
    k1, k2 = jax.random.split(key)
    w1 = 0.1 * jax.random.normal(k1, (3, 3, in_channels, mid_channels), jnp.float32)
    w2 = 0.1 * jax.random.normal(k2, (3, 3, mid_channels, out_channels), jnp.float32)
    return dict(
        w1=w1,
        gamma1=jnp.ones((mid_channels,), jnp.float32),
        beta1=jnp.zeros((mid_channels,), jnp.float32),
        w2=w2,
        gamma2=jnp.ones((out_channels,), jnp.float32),
        beta2=jnp.zeros((out_channels,), jnp.float32),
    )


# Pure-JAX reference (training-mode BN semantics) for the self-check.
def reference_double_conv(x_nchw, params, eps=1e-5):
    def conv(x, w):
        return jax.lax.conv_general_dilated(
            x, w, window_strides=(1, 1), padding="SAME",
            dimension_numbers=("NHWC", "HWIO", "NHWC"), precision=_HI)

    def bn_relu(y, g, b):
        m = jnp.mean(y, axis=(0, 1, 2))
        v = jnp.var(y, axis=(0, 1, 2))
        return jnp.maximum((y - m) * jax.lax.rsqrt(v + eps) * g + b, 0.0)

    x = jnp.transpose(x_nchw, (0, 2, 3, 1))
    y = bn_relu(conv(x, params["w1"]), params["gamma1"], params["beta1"])
    y = bn_relu(conv(y, params["w2"]), params["gamma2"], params["beta2"])
    return jnp.transpose(y, (0, 3, 1, 2))


if __name__ == "__main__":
    key = jax.random.PRNGKey(0)
    kx, kp = jax.random.split(key)

    in_channels, out_channels = 4, 8
    x = jax.random.normal(kx, (2, in_channels, 16, 16), jnp.float32)  # NCHW
    params = init_params(kp, in_channels, out_channels)

    ref = reference_double_conv(x, params)

    # f32 path (default): tight check.
    fwd = jax.jit(functools.partial(double_conv_forward, params=params))
    out = fwd(x)
    jax.block_until_ready(out)
    assert out.shape == (2, out_channels, 16, 16), out.shape
    assert bool(jnp.all(out >= 0.0))  # ReLU output is non-negative
    err = float(jnp.max(jnp.abs(out - ref)))
    assert err < 1e-3, f"f32 path: max abs err vs reference = {err}"

    # bf16-MXU-operand path (v6e/v7x recommendation; f32 accumulation & BN math).
    fwd_bf16 = jax.jit(functools.partial(double_conv_forward, params=params,
                                         matmul_dtype=jnp.bfloat16))
    out_b = fwd_bf16(x)
    jax.block_until_ready(out_b)
    err_b = float(jnp.max(jnp.abs(out_b - ref)))
    assert err_b < 0.15, f"bf16 path: max abs err vs reference = {err_b}"

    print("KERNEL_OK")
</pallas_src>

<mosaic_0001>
module attributes {stable_mosaic.version = 11 : i64} {
  func.func @_double_conv_kernel(%arg0: memref<32x64xf32, #tpu.memory_space<vmem>>, %arg1: memref<32x1xf32, #tpu.memory_space<vmem>>, %arg2: memref<32x1xf32, #tpu.memory_space<vmem>>, %arg3: memref<192x128xf32, #tpu.memory_space<vmem>>, %arg4: memref<128x128xf32, #tpu.memory_space<vmem>>, %arg5: memref<1x128xf32, #tpu.memory_space<vmem>>, %arg6: memref<1x128xf32, #tpu.memory_space<vmem>>, %arg7: memref<384x128xf32, #tpu.memory_space<vmem>>, %arg8: memref<128x128xf32, #tpu.memory_space<vmem>>, %arg9: memref<1x128xf32, #tpu.memory_space<vmem>>, %arg10: memref<1x128xf32, #tpu.memory_space<vmem>>, %arg11: memref<32x128xf32, #tpu.memory_space<vmem>>) attributes {dimension_semantics = [], scalar_prefetch = 0 : i64, scratch_operands = 0 : i64, tpu.core_type = #tpu.core_type<tc>} {
    %c0 = arith.constant 0 : index
    %c0_0 = arith.constant 0 : index
    %0 = vector.load %arg0[%c0, %c0_0] : memref<32x64xf32, #tpu.memory_space<vmem>>, vector<32x64xf32>
    %c0_1 = arith.constant 0 : index
    %c0_2 = arith.constant 0 : index
    %1 = vector.load %arg1[%c0_1, %c0_2] : memref<32x1xf32, #tpu.memory_space<vmem>>, vector<32x1xf32>
    %c0_3 = arith.constant 0 : index
    %c0_4 = arith.constant 0 : index
    %2 = vector.load %arg2[%c0_3, %c0_4] : memref<32x1xf32, #tpu.memory_space<vmem>>, vector<32x1xf32>
    %c0_5 = arith.constant 0 : index
    %c0_6 = arith.constant 0 : index
    %3 = vector.load %arg3[%c0_5, %c0_6] : memref<192x128xf32, #tpu.memory_space<vmem>>, vector<192x128xf32>
    %c0_7 = arith.constant 0 : index
    %c0_8 = arith.constant 0 : index
    %4 = vector.load %arg4[%c0_7, %c0_8] : memref<128x128xf32, #tpu.memory_space<vmem>>, vector<128x128xf32>
    %c0_9 = arith.constant 0 : index
    %c0_10 = arith.constant 0 : index
    %5 = vector.load %arg5[%c0_9, %c0_10] : memref<1x128xf32, #tpu.memory_space<vmem>>, vector<1x128xf32>
    %c0_11 = arith.constant 0 : index
    %c0_12 = arith.constant 0 : index
    %6 = vector.load %arg6[%c0_11, %c0_12] : memref<1x128xf32, #tpu.memory_space<vmem>>, vector<1x128xf32>
    %7 = vector.extract_strided_slice %0 {offsets = [31, 0], sizes = [1, 64], strides = [1, 1]} : vector<32x64xf32> to vector<1x64xf32>
    %8 = vector.extract_strided_slice %0 {offsets = [0, 0], sizes = [31, 64], strides = [1, 1]} : vector<32x64xf32> to vector<31x64xf32>
    %9 = tpu.concatenate %7, %8 in 0 : vector<1x64xf32>, vector<31x64xf32> -> vector<32x64xf32>
    %10 = vector.broadcast %1 : vector<32x1xf32> to vector<32x64xf32>
    %11 = arith.mulf %9, %10 : vector<32x64xf32>
    %12 = vector.extract_strided_slice %0 {offsets = [1, 0], sizes = [31, 64], strides = [1, 1]} : vector<32x64xf32> to vector<31x64xf32>
    %13 = vector.extract_strided_slice %0 {offsets = [0, 0], sizes = [1, 64], strides = [1, 1]} : vector<32x64xf32> to vector<1x64xf32>
    %14 = tpu.concatenate %12, %13 in 0 : vector<31x64xf32>, vector<1x64xf32> -> vector<32x64xf32>
    %15 = vector.broadcast %2 : vector<32x1xf32> to vector<32x64xf32>
    %16 = arith.mulf %14, %15 : vector<32x64xf32>
    %17 = tpu.concatenate %11, %0, %16 in 1 : vector<32x64xf32>, vector<32x64xf32>, vector<32x64xf32> -> vector<32x192xf32>
    %cst = arith.constant dense<0.000000e+00> : vector<32x128xf32>
    %18 = tpu.matmul %17, %3, %cst {dimension_numbers = #tpu.dot_dimension_numbers<[1], [0], [0], [1], [0, 0, 1, 1], [], []>, precision = #tpu.contract_precision<fp32>} : vector<32x192xf32>, vector<192x128xf32>, vector<32x128xf32> -> vector<32x128xf32>
    %cst_13 = arith.constant dense<0.000000e+00> : vector<128xf32>
    %19 = vector.multi_reduction <add>, %18, %cst_13 [0] : vector<32x128xf32> to vector<128xf32>
    %20 = vector.shape_cast %19 : vector<128xf32> to vector<1x128xf32>
    %21 = arith.mulf %18, %18 : vector<32x128xf32>
    %cst_14 = arith.constant dense<0.000000e+00> : vector<128xf32>
    %22 = vector.multi_reduction <add>, %21, %cst_14 [0] : vector<32x128xf32> to vector<128xf32>
    %23 = vector.shape_cast %22 : vector<128xf32> to vector<1x128xf32>
    %24 = tpu.concatenate %20, %23 in 0 : vector<1x128xf32>, vector<1x128xf32> -> vector<2x128xf32>
    %cst_15 = arith.constant dense<0.000000e+00> : vector<2x128xf32>
    %25 = tpu.matmul %24, %4, %cst_15 {dimension_numbers = #tpu.dot_dimension_numbers<[1], [0], [0], [1], [0, 0, 1, 1], [], []>, precision = #tpu.contract_precision<fp32>} : vector<2x128xf32>, vector<128x128xf32>, vector<2x128xf32> -> vector<2x128xf32>
    %26 = vector.extract_strided_slice %25 {offsets = [0, 0], sizes = [1, 128], strides = [1, 1]} : vector<2x128xf32> to vector<1x128xf32>
    %cst_16 = arith.constant 0.001953125 : f32
    %27 = vector.broadcast %cst_16 : f32 to vector<1x128xf32>
    %28 = arith.mulf %26, %27 : vector<1x128xf32>
    %29 = vector.extract_strided_slice %25 {offsets = [1, 0], sizes = [1, 128], strides = [1, 1]} : vector<2x128xf32> to vector<1x128xf32>
    %cst_17 = arith.constant 0.001953125 : f32
    %30 = vector.broadcast %cst_17 : f32 to vector<1x128xf32>
    %31 = arith.mulf %29, %30 : vector<1x128xf32>
    %32 = arith.mulf %28, %28 : vector<1x128xf32>
    %33 = arith.subf %31, %32 : vector<1x128xf32>
    %cst_18 = arith.constant 9.99999974E-6 : f32
    %34 = vector.broadcast %cst_18 : f32 to vector<1x128xf32>
    %35 = arith.addf %33, %34 : vector<1x128xf32>
    %36 = math.rsqrt %35 : vector<1x128xf32>
    %37 = arith.mulf %5, %36 : vector<1x128xf32>
    %38 = arith.mulf %28, %37 : vector<1x128xf32>
    %39 = arith.subf %6, %38 : vector<1x128xf32>
    %40 = vector.broadcast %37 : vector<1x128xf32> to vector<32x128xf32>
    %41 = arith.mulf %18, %40 : vector<32x128xf32>
    %42 = vector.broadcast %39 : vector<1x128xf32> to vector<32x128xf32>
    %43 = arith.addf %41, %42 : vector<32x128xf32>
    %cst_19 = arith.constant 0.000000e+00 : f32
    %44 = vector.broadcast %cst_19 : f32 to vector<32x128xf32>
    %45 = arith.maximumf %43, %44 : vector<32x128xf32>
    %c0_20 = arith.constant 0 : index
    %c0_21 = arith.constant 0 : index
    %46 = vector.load %arg7[%c0_20, %c0_21] : memref<384x128xf32, #tpu.memory_space<vmem>>, vector<384x128xf32>
    %c0_22 = arith.constant 0 : index
    %c0_23 = arith.constant 0 : index
    %47 = vector.load %arg8[%c0_22, %c0_23] : memref<128x128xf32, #tpu.memory_space<vmem>>, vector<128x128xf32>
    %c0_24 = arith.constant 0 : index
    %c0_25 = arith.constant 0 : index
    %48 = vector.load %arg9[%c0_24, %c0_25] : memref<1x128xf32, #tpu.memory_space<vmem>>, vector<1x128xf32>
    %c0_26 = arith.constant 0 : index
    %c0_27 = arith.constant 0 : index
    %49 = vector.load %arg10[%c0_26, %c0_27] : memref<1x128xf32, #tpu.memory_space<vmem>>, vector<1x128xf32>
    %50 = vector.extract_strided_slice %45 {offsets = [31, 0], sizes = [1, 128], strides = [1, 1]} : vector<32x128xf32> to vector<1x128xf32>
    %51 = vector.extract_strided_slice %45 {offsets = [0, 0], sizes = [31, 128], strides = [1, 1]} : vector<32x128xf32> to vector<31x128xf32>
    %52 = tpu.concatenate %50, %51 in 0 : vector<1x128xf32>, vector<31x128xf32> -> vector<32x128xf32>
    %53 = vector.broadcast %1 : vector<32x1xf32> to vector<32x128xf32>
    %54 = arith.mulf %52, %53 : vector<32x128xf32>
    %55 = vector.extract_strided_slice %45 {offsets = [1, 0], sizes = [31, 128], strides = [1, 1]} : vector<32x128xf32> to vector<31x128xf32>
    %56 = vector.extract_strided_slice %45 {offsets = [0, 0], sizes = [1, 128], strides = [1, 1]} : vector<32x128xf32> to vector<1x128xf32>
    %57 = tpu.concatenate %55, %56 in 0 : vector<31x128xf32>, vector<1x128xf32> -> vector<32x128xf32>
    %58 = vector.broadcast %2 : vector<32x1xf32> to vector<32x128xf32>
    %59 = arith.mulf %57, %58 : vector<32x128xf32>
    %60 = tpu.concatenate %54, %45, %59 in 1 : vector<32x128xf32>, vector<32x128xf32>, vector<32x128xf32> -> vector<32x384xf32>
    %cst_28 = arith.constant dense<0.000000e+00> : vector<32x128xf32>
    %61 = tpu.matmul %60, %46, %cst_28 {dimension_numbers = #tpu.dot_dimension_numbers<[1], [0], [0], [1], [0, 0, 1, 1], [], []>, precision = #tpu.contract_precision<fp32>} : vector<32x384xf32>, vector<384x128xf32>, vector<32x128xf32> -> vector<32x128xf32>
    %cst_29 = arith.constant dense<0.000000e+00> : vector<128xf32>
    %62 = vector.multi_reduction <add>, %61, %cst_29 [0] : vector<32x128xf32> to vector<128xf32>
    %63 = vector.shape_cast %62 : vector<128xf32> to vector<1x128xf32>
    %64 = arith.mulf %61, %61 : vector<32x128xf32>
    %cst_30 = arith.constant dense<0.000000e+00> : vector<128xf32>
    %65 = vector.multi_reduction <add>, %64, %cst_30 [0] : vector<32x128xf32> to vector<128xf32>
    %66 = vector.shape_cast %65 : vector<128xf32> to vector<1x128xf32>
    %67 = tpu.concatenate %63, %66 in 0 : vector<1x128xf32>, vector<1x128xf32> -> vector<2x128xf32>
    %cst_31 = arith.constant dense<0.000000e+00> : vector<2x128xf32>
    %68 = tpu.matmul %67, %47, %cst_31 {dimension_numbers = #tpu.dot_dimension_numbers<[1], [0], [0], [1], [0, 0, 1, 1], [], []>, precision = #tpu.contract_precision<fp32>} : vector<2x128xf32>, vector<128x128xf32>, vector<2x128xf32> -> vector<2x128xf32>
    %69 = vector.extract_strided_slice %68 {offsets = [0, 0], sizes = [1, 128], strides = [1, 1]} : vector<2x128xf32> to vector<1x128xf32>
    %cst_32 = arith.constant 0.001953125 : f32
    %70 = vector.broadcast %cst_32 : f32 to vector<1x128xf32>
    %71 = arith.mulf %69, %70 : vector<1x128xf32>
    %72 = vector.extract_strided_slice %68 {offsets = [1, 0], sizes = [1, 128], strides = [1, 1]} : vector<2x128xf32> to vector<1x128xf32>
    %cst_33 = arith.constant 0.001953125 : f32
    %73 = vector.broadcast %cst_33 : f32 to vector<1x128xf32>
    %74 = arith.mulf %72, %73 : vector<1x128xf32>
    %75 = arith.mulf %71, %71 : vector<1x128xf32>
    %76 = arith.subf %74, %75 : vector<1x128xf32>
    %cst_34 = arith.constant 9.99999974E-6 : f32
    %77 = vector.broadcast %cst_34 : f32 to vector<1x128xf32>
    %78 = arith.addf %76, %77 : vector<1x128xf32>
    %79 = math.rsqrt %78 : vector<1x128xf32>
    %80 = arith.mulf %48, %79 : vector<1x128xf32>
    %81 = arith.mulf %71, %80 : vector<1x128xf32>
    %82 = arith.subf %49, %81 : vector<1x128xf32>
    %83 = vector.broadcast %80 : vector<1x128xf32> to vector<32x128xf32>
    %84 = arith.mulf %61, %83 : vector<32x128xf32>
    %85 = vector.broadcast %82 : vector<1x128xf32> to vector<32x128xf32>
    %86 = arith.addf %84, %85 : vector<32x128xf32>
    %cst_35 = arith.constant 0.000000e+00 : f32
    %87 = vector.broadcast %cst_35 : f32 to vector<32x128xf32>
    %88 = arith.maximumf %86, %87 : vector<32x128xf32>
    %c0_36 = arith.constant 0 : index
    %c0_37 = arith.constant 0 : index
    %89 = vector.load %arg11[%c0_36, %c0_37] : memref<32x128xf32, #tpu.memory_space<vmem>>, vector<32x128xf32>
    tpu.vector_store %arg11[%c0_36, %c0_37], %88 {strides = array<i32>} : memref<32x128xf32, #tpu.memory_space<vmem>>, vector<32x128xf32>,
    return
  }
}

</mosaic_0001>

<llo_original>
// kernel: double_conv_forward.1
$region0: #{double_conv_forward.1}
  #allocation0 [shape = 'u32[]', space=smem, size = 0x4, offset = 0x4, fixed_abs, tag = 'smem constant byte address 0x4 - core index']
  #allocation1 [shape = 'u32[144,128]{1,0:T(1,128)}', space=vmem, size = 0x12000, scoped, tag = 'internal scratch']
  %s0 = inlined_call_operand.vmem [shape: f32[32,64], index: 0, kind: input, shape index: {}]
  %s1 = inlined_call_operand.vmem [shape: f32[32,1], index: 1, kind: input, shape index: {}]
  %s2 = inlined_call_operand.vmem [shape: f32[32,1], index: 2, kind: input, shape index: {}]
  %s3 = inlined_call_operand.hbm [shape: f32[192,128], index: 3, kind: input, shape index: {}]
  %s4 = inlined_call_operand.vmem [shape: f32[128,128], index: 4, kind: input, shape index: {}, may-alias: {4,8}]
  %s5 = inlined_call_operand.vmem [shape: f32[1,128], index: 5, kind: input, shape index: {}, may-alias: {5,9}]
  %s6 = inlined_call_operand.vmem [shape: f32[1,128], index: 6, kind: input, shape index: {}, may-alias: {6,10}]
  %s7 = inlined_call_operand.vmem [shape: f32[384,128], index: 7, kind: input, shape index: {}]
  %s8 = inlined_call_operand.vmem [shape: f32[128,128], index: 8, kind: input, shape index: {}, may-alias: {4,8}]
  %s9 = inlined_call_operand.vmem [shape: f32[1,128], index: 9, kind: input, shape index: {}, may-alias: {5,9}]
  %s10 = inlined_call_operand.vmem [shape: f32[1,128], index: 10, kind: input, shape index: {}, may-alias: {6,10}]
  %s11 = inlined_call_operand.vmem [shape: f32[32,128], index: 11, kind: output, shape index: {}]
  %s12 = sld [smem:[#allocation0]]
  $region58: #{double_conv_forward.1} parent=0
    _
  %s14 = ssub.s32 1, %s12
  %s15 = scalar_select 0, %s14, %s12
  $region1: #{double_conv_forward.1} parent=0
    #allocation2 [shape = 'u8[98304]{0}', space=vmem, size = 0x18000, scoped, tag = 'input window, operand 3, single buffered']
    #allocation3 [shape = 's32[1]{0}', space=sflag, size = 0x4, scoped, tag = 'scoped memory for double_conv_forward.1']
    %16 = vsyncpa [#allocation3], 0
    // Predicated region
    $region2: #{double_conv_forward.1} parent=1 // pred_check
      _
    $region3: #{double_conv_forward.1} parent=1 // pred_check_branch
      %18 = sbr.rel (0) target = $region5
    $region4: #{double_conv_forward.1} parent=1 // pred_region
      _
    $region5: #{double_conv_forward.1} parent=1 // pred_fallthru
      _
    // Predicated region
    $region6: #{double_conv_forward.1} parent=1 // pred_check
      _
    $region7: #{double_conv_forward.1} parent=1 // pred_check_branch
      %20 = sbr.rel (0) target = $region9
    $region8: #{double_conv_forward.1} parent=1 // pred_region
      _
    $region9: #{double_conv_forward.1} parent=1 // pred_fallthru
      _
    // Predicated region
    $region10: #{double_conv_forward.1} parent=1 // pred_check
      _
    $region11: #{double_conv_forward.1} parent=1 // pred_check_branch
      %22 = sbr.rel (0) target = $region13
    $region12: #{double_conv_forward.1} parent=1 // pred_region
      _
    $region13: #{double_conv_forward.1} parent=1 // pred_fallthru
      _
    // Predicated region
    $region14: #{double_conv_forward.1} parent=1 // pred_check
      _
    $region15: #{double_conv_forward.1} parent=1 // pred_check_branch
      %24 = sbr.rel (0) target = $region17
    $region16: #{double_conv_forward.1} parent=1 // pred_region
      %s26 = ssub.s32 3072, 3072
      %27 = vsyncadd [#allocation3], %s26
      %s28 = sshll.u32 [#allocation2], 4
      %s29 = int_to_ptr.vmem [resolvable:$true] %s28
      %34 = dma.hbm_to_vmem [thread:$0]  %s3, 3072, %s29, [#allocation3], 128, 128, 8
    $region17: #{double_conv_forward.1} parent=1 // pred_fallthru
      _
    // Predicated region
    $region18: #{double_conv_forward.1} parent=1 // pred_check
      _
    $region19: #{double_conv_forward.1} parent=1 // pred_check_branch
      %36 = sbr.rel (0) target = $region21
    $region20: #{double_conv_forward.1} parent=1 // pred_region
      _
    $region21: #{double_conv_forward.1} parent=1 // pred_fallthru
      _
    // Predicated region
    $region22: #{double_conv_forward.1} parent=1 // pred_check
      _
    $region23: #{double_conv_forward.1} parent=1 // pred_check_branch
      %38 = sbr.rel (0) target = $region25
    $region24: #{double_conv_forward.1} parent=1 // pred_region
      _
    $region25: #{double_conv_forward.1} parent=1 // pred_fallthru
      _
    // Predicated region
    $region26: #{double_conv_forward.1} parent=1 // pred_check
      _
    $region27: #{double_conv_forward.1} parent=1 // pred_check_branch
      %40 = sbr.rel (0) target = $region29
    $region28: #{double_conv_forward.1} parent=1 // pred_region
      _
    $region29: #{double_conv_forward.1} parent=1 // pred_fallthru
      _
    // Predicated region
    $region30: #{double_conv_forward.1} parent=1 // pred_check
      _
    $region31: #{double_conv_forward.1} parent=1 // pred_check_branch
      %42 = sbr.rel (0) target = $region33
    $region32: #{double_conv_forward.1} parent=1 // pred_region
      _
    $region33: #{double_conv_forward.1} parent=1 // pred_fallthru
      _
    // Predicated region
    $region34: #{double_conv_forward.1} parent=1 // pred_check
      _
    $region35: #{double_conv_forward.1} parent=1 // pred_check_branch
      %44 = sbr.rel (0) target = $region37
    $region36: #{double_conv_forward.1} parent=1 // pred_region
      _
    $region37: #{double_conv_forward.1} parent=1 // pred_fallthru
      _
    // Predicated region
    $region38: #{double_conv_forward.1} parent=1 // pred_check
      _
    $region39: #{double_conv_forward.1} parent=1 // pred_check_branch
      %46 = sbr.rel (0) target = $region41
    $region40: #{double_conv_forward.1} parent=1 // pred_region
      _
    $region41: #{double_conv_forward.1} parent=1 // pred_fallthru
      _
    // Predicated region
    $region42: #{double_conv_forward.1} parent=1 // pred_check
      _
    $region43: #{double_conv_forward.1} parent=1 // pred_check_branch
      %48 = sbr.rel (0) target = $region45
    $region44: #{double_conv_forward.1} parent=1 // pred_region
      _
    $region45: #{double_conv_forward.1} parent=1 // pred_fallthru
      _
    // Predicated region
    $region46: #{double_conv_forward.1} parent=1 // pred_check
      _
    $region47: #{double_conv_forward.1} parent=1 // pred_check_branch
      %50 = sbr.rel (0) target = $region49
    $region48: #{double_conv_forward.1} parent=1 // pred_region
      %51 = dma.done [#allocation3], 3072
    $region49: #{double_conv_forward.1} parent=1 // pred_fallthru
      _
    %v52 = vld [vmem:[%s0] sm:$0xff]
    %v53 = vld [vmem:[%s0 + $0x8] sm:$0xff]
    %v54 = vld [vmem:[%s0 + $0x10] sm:$0xff]
    %v55 = vld [vmem:[%s0 + $0x18] sm:$0xff]
    %v56 = vld [vmem:[%s1] sm:$0xff]
    %v57 = vld [vmem:[%s1 + $0x8] sm:$0xff]
    %v58 = vld [vmem:[%s1 + $0x10] sm:$0xff]
    %v59 = vld [vmem:[%s1 + $0x18] sm:$0xff]
    %v60 = vld [vmem:[%s2] sm:$0xff]
    %v61 = vld [vmem:[%s2 + $0x8] sm:$0xff]
    %v62 = vld [vmem:[%s2 + $0x10] sm:$0xff]
    %v63 = vld [vmem:[%s2 + $0x18] sm:$0xff]
    %v64 = vld [vmem:[#allocation2] sm:$0xff]
    %v65 = vld [vmem:[#allocation2 + $0x8] sm:$0xff]
    %v66 = vld [vmem:[#allocation2 + $0x10] sm:$0xff]
    %v67 = vld [vmem:[#allocation2 + $0x18] sm:$0xff]
    %v68 = vld [vmem:[#allocation2 + $0x20] sm:$0xff]
    %v69 = vld [vmem:[#allocation2 + $0x28] sm:$0xff]
    %v70 = vld [vmem:[#allocation2 + $0x30] sm:$0xff]
    %v71 = vld [vmem:[#allocation2 + $0x38] sm:$0xff]
    %v72 = vld [vmem:[#allocation2 + $0x40] sm:$0xff]
    %v73 = vld [vmem:[#allocation2 + $0x48] sm:$0xff]
    %v74 = vld [vmem:[#allocation2 + $0x50] sm:$0xff]
    %v75 = vld [vmem:[#allocation2 + $0x58] sm:$0xff]
    %v76 = vld [vmem:[#allocation2 + $0x60] sm:$0xff]
    %v77 = vld [vmem:[#allocation2 + $0x68] sm:$0xff]
    %v78 = vld [vmem:[#allocation2 + $0x70] sm:$0xff]
    %v79 = vld [vmem:[#allocation2 + $0x78] sm:$0xff]
    %v80 = vld [vmem:[#allocation2 + $0x80] sm:$0xff]
    %v81 = vld [vmem:[#allocation2 + $0x88] sm:$0xff]
    %v82 = vld [vmem:[#allocation2 + $0x90] sm:$0xff]
    %v83 = vld [vmem:[#allocation2 + $0x98] sm:$0xff]
    %v84 = vld [vmem:[#allocation2 + $0xa0] sm:$0xff]
    %v85 = vld [vmem:[#allocation2 + $0xa8] sm:$0xff]
    %v86 = vld [vmem:[#allocation2 + $0xb0] sm:$0xff]
    %v87 = vld [vmem:[#allocation2 + $0xb8] sm:$0xff]
    %v88 = vld [vmem:[%s4] sm:$0xff]
    %v89 = vld [vmem:[%s4 + $0x8] sm:$0xff]
    %v90 = vld [vmem:[%s4 + $0x10] sm:$0xff]
    %v91 = vld [vmem:[%s4 + $0x18] sm:$0xff]
    %v92 = vld [vmem:[%s4 + $0x20] sm:$0xff]
    %v93 = vld [vmem:[%s4 + $0x28] sm:$0xff]
    %v94 = vld [vmem:[%s4 + $0x30] sm:$0xff]
    %v95 = vld [vmem:[%s4 + $0x38] sm:$0xff]
    %v96 = vld [vmem:[%s4 + $0x40] sm:$0xff]
    %v97 = vld [vmem:[%s4 + $0x48] sm:$0xff]
    %v98 = vld [vmem:[%s4 + $0x50] sm:$0xff]
    %v99 = vld [vmem:[%s4 + $0x58] sm:$0xff]
    %v100 = vld [vmem:[%s4 + $0x60] sm:$0xff]
    %v101 = vld [vmem:[%s4 + $0x68] sm:$0xff]
    %v102 = vld [vmem:[%s4 + $0x70] sm:$0xff]
    %v103 = vld [vmem:[%s4 + $0x78] sm:$0xff]
    %v104 = vld [vmem:[%s5] sm:$0x1]
    %v105 = vld [vmem:[%s6] sm:$0x1]
    %v107 = vrot.slane %v55, 7
    %vm112 = vcmask 1040384
    %v113 = vrot.slane %v52, 7
    %v114 = vrot.slane %v53, 7
    %v115 = vsel %vm112, %v113, %v114
    %v116 = vrot.slane %v54, 7
    %v117 = vsel %vm112, %v114, %v116
    %v118 = vsel %vm112, %v116, %v107
    %v123 = vsel %vm112, %v107, %v113
    %125 = vset.pattern.permute.xlu0 0
    %126 = vperm.xlu0 %125, %v56
    %v127 = vpop.permute.xlu0 %126
    %130 = vset.pattern.permute.xlu0 0
    %131 = vperm.xlu0 %130, %v57
    %v132 = vpop.permute.xlu0 %131
    %135 = vset.pattern.permute.xlu0 0
    %136 = vperm.xlu0 %135, %v58
    %v137 = vpop.permute.xlu0 %136
    %140 = vset.pattern.permute.xlu0 0
    %141 = vperm.xlu0 %140, %v59
    %v142 = vpop.permute.xlu0 %141
    %v144 = vmul.f32 %v123, %v127
    %v145 = vmul.f32 %v115, %v132
    %v146 = vmul.f32 %v117, %v137
    %v147 = vmul.f32 %v118, %v142
    %vm148 = vcmask 1046528
    %v149 = vrot.slane %v52, 1
    %v150 = vrot.slane %v53, 1
    %v151 = vsel %vm148, %v149, %v150
    %v152 = vrot.slane %v54, 1
    %v153 = vsel %vm148, %v150, %v152
    %v154 = vrot.slane %v55, 1
    %v155 = vsel %vm148, %v152, %v154
    %v161 = vsel %vm148, %v154, %v149
    %163 = vset.pattern.permute.xlu0 0
    %164 = vperm.xlu0 %163, %v60
    %v165 = vpop.permute.xlu0 %164
    %168 = vset.pattern.permute.xlu0 0
    %169 = vperm.xlu0 %168, %v61
    %v170 = vpop.permute.xlu0 %169
    %173 = vset.pattern.permute.xlu0 0
    %174 = vperm.xlu0 %173, %v62
    %v175 = vpop.permute.xlu0 %174
    %178 = vset.pattern.permute.xlu0 0
    %179 = vperm.xlu0 %178, %v63
    %v180 = vpop.permute.xlu0 %179
    %v182 = vmul.f32 %v151, %v165
    %v183 = vmul.f32 %v153, %v170
    %v184 = vmul.f32 %v155, %v175
    %v185 = vmul.f32 %v161, %v180
    %186 = vrot.lane.b32.xlu0 %v52, 64
    %v187 = vpop.permute.xlu0 %186
    %188 = vrot.lane.b32.xlu0 %v53, 64
    %v189 = vpop.permute.xlu0 %188
    %190 = vrot.lane.b32.xlu0 %v54, 64
    %v191 = vpop.permute.xlu0 %190
    %192 = vrot.lane.b32.xlu0 %v55, 64
    %v193 = vpop.permute.xlu0 %192
    %vm198 = vcmask 523264
    %v199 = vsel %vm198, %v144, %v187
    %v200 = vsel %vm198, %v145, %v189
    %v201 = vsel %vm198, %v146, %v191
    %v202 = vsel %vm198, %v147, %v193
    %v204 = vsel %vm198, %v182, 0
    %v207 = vsel %vm198, %v183, 0
    %v210 = vsel %vm198, %v184, 0
    %v213 = vsel %vm198, %v185, 0
    %215 = vmatprep.subr.mxu0 0.0
    %v216 = vand.u32 %v64, 4294901760
    %217 = vmatpush1.msra.mxu0 %v216
    %218 = vmatprep.subr.mxu0 0.0
    %v219 = vand.u32 %v65, 4294901760
    %220 = vmatpush1.msra.mxu0 %v219
    %221 = vmatprep.subr.mxu0 0.0
    %v222 = vand.u32 %v66, 4294901760
    %223 = vmatpush1.msra.mxu0 %v222
    %224 = vmatprep.subr.mxu0 0.0
    %v225 = vand.u32 %v67, 4294901760
    %226 = vmatpush1.msra.mxu0 %v225
    %227 = vmatprep.subr.mxu0 0.0
    %v228 = vand.u32 %v68, 4294901760
    %229 = vmatpush1.msra.mxu0 %v228
    %230 = vmatprep.subr.mxu0 0.0
    %v231 = vand.u32 %v69, 4294901760
    %232 = vmatpush1.msra.mxu0 %v231
    %233 = vmatprep.subr.mxu0 0.0
    %v234 = vand.u32 %v70, 4294901760
    %235 = vmatpush1.msra.mxu0 %v234
    %236 = vmatprep.subr.mxu0 0.0
    %v237 = vand.u32 %v71, 4294901760
    %238 = vmatpush1.msra.mxu0 %v237
    %239 = vmatprep.subr.mxu0 0.0
    %v240 = vand.u32 %v72, 4294901760
    %241 = vmatpush1.msra.mxu0 %v240
    %242 = vmatprep.subr.mxu0 0.0
    %v243 = vand.u32 %v73, 4294901760
    %244 = vmatpush1.msra.mxu0 %v243
    %245 = vmatprep.subr.mxu0 0.0
    %v246 = vand.u32 %v74, 4294901760
    %247 = vmatpush1.msra.mxu0 %v246
    %248 = vmatprep.subr.mxu0 0.0
    %v249 = vand.u32 %v75, 4294901760
    %250 = vmatpush1.msra.mxu0 %v249
    %251 = vmatprep.subr.mxu0 0.0
    %v252 = vand.u32 %v76, 4294901760
    %253 = vmatpush1.msra.mxu0 %v252
    %254 = vmatprep.subr.mxu0 0.0
    %v255 = vand.u32 %v77, 4294901760
    %256 = vmatpush1.msra.mxu0 %v255
    %257 = vmatprep.subr.mxu0 0.0
    %v258 = vand.u32 %v78, 4294901760
    %259 = vmatpush1.msra.mxu0 %v258
    %260 = vmatprep.subr.mxu0 0.0
    %v261 = vand.u32 %v79, 4294901760
    %262 = vmatpush1.msra.mxu0 %v261
    %263 = vmatprep.subr.mxu0 0.0
    %v264 = vand.u32 %v80, 4294901760
    %265 = vmatpush1.msra.mxu0 %v264
    %266 = vmatprep.subr.mxu0 0.0
    %v267 = vand.u32 %v81, 4294901760
    %268 = vmatpush1.msra.mxu0 %v267
    %269 = vmatprep.subr.mxu0 0.0
    %v270 = vand.u32 %v82, 4294901760
    %271 = vmatpush1.msra.mxu0 %v270
    %272 = vmatprep.subr.mxu0 0.0
    %v273 = vand.u32 %v83, 4294901760
    %274 = vmatpush1.msra.mxu0 %v273
    %275 = vmatprep.subr.mxu0 0.0
    %v276 = vand.u32 %v84, 4294901760
    %277 = vmatpush1.msra.mxu0 %v276
    %278 = vmatprep.subr.mxu0 0.0
    %v279 = vand.u32 %v85, 4294901760
    %280 = vmatpush1.msra.mxu0 %v279
    %281 = vmatprep.subr.mxu0 0.0
    %v282 = vand.u32 %v86, 4294901760
    %283 = vmatpush1.msra.mxu0 %v282
    %284 = vmatprep.subr.mxu0 0.0
    %v285 = vand.u32 %v87, 4294901760
    %286 = vmatpush1.msra.mxu0 %v285
    %287 = vmatprep.subr.mxu0 0.0
    %288 = vmatpush1.msra.mxu0 0.0
    %289 = vmatprep.subr.mxu0 0.0
    %290 = vmatpush1.msra.mxu0 0.0
    %291 = vmatprep.subr.mxu0 0.0
    %292 = vmatpush1.msra.mxu0 0.0
    %293 = vmatprep.subr.mxu0 0.0
    %294 = vmatpush1.msra.mxu0 0.0
    %295 = vmatprep.subr.mxu0 0.0
    %296 = vmatpush1.msra.mxu0 0.0
    %297 = vmatprep.subr.mxu0 0.0
    %298 = vmatpush1.msra.mxu0 0.0
    %299 = vmatprep.subr.mxu0 0.0
    %300 = vmatpush1.msra.mxu0 0.0
    %301 = vmatprep.subr.mxu0 0.0
    %302 = vmatpush1.msra.mxu0 0.0
    %v303 = vand.u32 %v204, 4294901760
    %v304 = vsub.f32 %v204, %v303
    %v305 = vand.u32 %v304, 4294901760
    %v306 = vsub.f32 %v304, %v305
    %v307 = vand.u32 %v306, 4294901760
    %308 = vmatprep.mubr.f32.mxu0 %v307
    %v309 = vand.u32 %v199, 4294901760
    %v310 = vsub.f32 %v199, %v309
    %v311 = vand.u32 %v310, 4294901760
    %v312 = vsub.f32 %v310, %v311
    %v313 = vand.u32 %v312, 4294901760
    %314 = vmatmul.mubr.f32.gmra.mrb[0].mxu0 %v313
    %v315 = vpop.f32.mrb[0].mxu0
    %v316 = vadd.f32 0.0, %v315
    %v317 = vpop.f32.mrb[0].mxu0
    %v318 = vand.u32 %v207, 4294901760
    %v319 = vsub.f32 %v207, %v318
    %v320 = vand.u32 %v319, 4294901760
    %v321 = vsub.f32 %v319, %v320
    %v322 = vand.u32 %v321, 4294901760
    %323 = vmatprep.mubr.f32.mxu0 %v322
    %v324 = vand.u32 %v200, 4294901760
    %v325 = vsub.f32 %v200, %v324
    %v326 = vand.u32 %v325, 4294901760
    %v327 = vsub.f32 %v325, %v326
    %v328 = vand.u32 %v327, 4294901760
    %329 = vmatmul.mubr.f32.gmra.mrb[0].mxu0 %v328
    %v330 = vpop.f32.mrb[0].mxu0
    %v331 = vadd.f32 0.0, %v330
    %v332 = vpop.f32.mrb[0].mxu0
    %v333 = vand.u32 %v210, 4294901760
    %v334 = vsub.f32 %v210, %v333
    %v335 = vand.u32 %v334, 4294901760
    %v336 = vsub.f32 %v334, %v335
    %v337 = vand.u32 %v336, 4294901760
    %338 = vmatprep.mubr.f32.mxu0 %v337
    %v339 = vand.u32 %v201, 4294901760
    %v340 = vsub.f32 %v201, %v339
    %v341 = vand.u32 %v340, 4294901760
    %v342 = vsub.f32 %v340, %v341
    %v343 = vand.u32 %v342, 4294901760
    %344 = vmatmul.mubr.f32.gmra.mrb[0].mxu0 %v343
    %v345 = vpop.f32.mrb[0].mxu0
    %v346 = vadd.f32 0.0, %v345
    %v347 = vpop.f32.mrb[0].mxu0
    %v348 = vand.u32 %v213, 4294901760
    %v349 = vsub.f32 %v213, %v348
    %v350 = vand.u32 %v349, 4294901760
    %v351 = vsub.f32 %v349, %v350
    %v352 = vand.u32 %v351, 4294901760
    %353 = vmatprep.mubr.f32.mxu0 %v352
    %v354 = vand.u32 %v202, 4294901760
    %v355 = vsub.f32 %v202, %v354
    %v356 = vand.u32 %v355, 4294901760
    %v357 = vsub.f32 %v355, %v356
    %v358 = vand.u32 %v357, 4294901760
    %359 = vmatmul.mubr.f32.gmra.mrb[0].mxu0 %v358
    %v360 = vpop.f32.mrb[0].mxu0
    %v361 = vadd.f32 0.0, %v360
    %v362 = vpop.f32.mrb[0].mxu0
    %363 = vdwg.mxu0
    %364 = vmatprep.subr.mxu0 0.0
    %v365 = vand.u32 %v64, 4294901760
    %v366 = vsub.f32 %v64, %v365
    %v367 = vand.u32 %v366, 4294901760
    %v368 = vsub.f32 %v366, %v367
    %v369 = vand.u32 %v368, 4294901760
    %370 = vmatpush1.msra.mxu0 %v369
    %371 = vmatprep.subr.mxu0 0.0
    %v372 = vand.u32 %v65, 4294901760
    %v373 = vsub.f32 %v65, %v372
    %v374 = vand.u32 %v373, 4294901760
    %v375 = vsub.f32 %v373, %v374
    %v376 = vand.u32 %v375, 4294901760
    %377 = vmatpush1.msra.mxu0 %v376
    %378 = vmatprep.subr.mxu0 0.0
    %v379 = vand.u32 %v66, 4294901760
    %v380 = vsub.f32 %v66, %v379
    %v381 = vand.u32 %v380, 4294901760
    %v382 = vsub.f32 %v380, %v381
    %v383 = vand.u32 %v382, 4294901760
    %384 = vmatpush1.msra.mxu0 %v383
    %385 = vmatprep.subr.mxu0 0.0
    %v386 = vand.u32 %v67, 4294901760
    %v387 = vsub.f32 %v67, %v386
    %v388 = vand.u32 %v387, 4294901760
    %v389 = vsub.f32 %v387, %v388
    %v390 = vand.u32 %v389, 4294901760
    %391 = vmatpush1.msra.mxu0 %v390
    %392 = vmatprep.subr.mxu0 0.0
    %v393 = vand.u32 %v68, 4294901760
    %v394 = vsub.f32 %v68, %v393
    %v395 = vand.u32 %v394, 4294901760
    %v396 = vsub.f32 %v394, %v395
    %v397 = vand.u32 %v396, 4294901760
    %398 = vmatpush1.msra.mxu0 %v397
    %399 = vmatprep.subr.mxu0 0.0
    %v400 = vand.u32 %v69, 4294901760
    %v401 = vsub.f32 %v69, %v400
    %v402 = vand.u32 %v401, 4294901760
    %v403 = vsub.f32 %v401, %v402
    %v404 = vand.u32 %v403, 4294901760
    %405 = vmatpush1.msra.mxu0 %v404
    %406 = vmatprep.subr.mxu0 0.0
    %v407 = vand.u32 %v70, 4294901760
    %v408 = vsub.f32 %v70, %v407
    %v409 = vand.u32 %v408, 4294901760
    %v410 = vsub.f32 %v408, %v409
    %v411 = vand.u32 %v410, 4294901760
    %412 = vmatpush1.msra.mxu0 %v411
    %413 = vmatprep.subr.mxu0 0.0
    %v414 = vand.u32 %v71, 4294901760
    %v415 = vsub.f32 %v71, %v414
    %v416 = vand.u32 %v415, 4294901760
    %v417 = vsub.f32 %v415, %v416
    %v418 = vand.u32 %v417, 4294901760
    %419 = vmatpush1.msra.mxu0 %v418
    %420 = vmatprep.subr.mxu0 0.0
    %v421 = vand.u32 %v72, 4294901760
    %v422 = vsub.f32 %v72, %v421
    %v423 = vand.u32 %v422, 4294901760
    %v424 = vsub.f32 %v422, %v423
    %v425 = vand.u32 %v424, 4294901760
    %426 = vmatpush1.msra.mxu0 %v425
    %427 = vmatprep.subr.mxu0 0.0
    %v428 = vand.u32 %v73, 4294901760
    %v429 = vsub.f32 %v73, %v428
    %v430 = vand.u32 %v429, 4294901760
    %v431 = vsub.f32 %v429, %v430
    %v432 = vand.u32 %v431, 4294901760
    %433 = vmatpush1.msra.mxu0 %v432
    %434 = vmatprep.subr.mxu0 0.0
    %v435 = vand.u32 %v74, 4294901760
    %v436 = vsub.f32 %v74, %v435
    %v437 = vand.u32 %v436, 4294901760
    %v438 = vsub.f32 %v436, %v437
    %v439 = vand.u32 %v438, 4294901760
    %440 = vmatpush1.msra.mxu0 %v439
    %441 = vmatprep.subr.mxu0 0.0
    %v442 = vand.u32 %v75, 4294901760
    %v443 = vsub.f32 %v75, %v442
    %v444 = vand.u32 %v443, 4294901760
    %v445 = vsub.f32 %v443, %v444
    %v446 = vand.u32 %v445, 4294901760
    %447 = vmatpush1.msra.mxu0 %v446
    %448 = vmatprep.subr.mxu0 0.0
    %v449 = vand.u32 %v76, 4294901760
    %v450 = vsub.f32 %v76, %v449
    %v451 = vand.u32 %v450, 4294901760
    %v452 = vsub.f32 %v450, %v451
    %v453 = vand.u32 %v452, 4294901760
    %454 = vmatpush1.msra.mxu0 %v453
    %455 = vmatprep.subr.mxu0 0.0
    %v456 = vand.u32 %v77, 4294901760
    %v457 = vsub.f32 %v77, %v456
    %v458 = vand.u32 %v457, 4294901760
    %v459 = vsub.f32 %v457, %v458
    %v460 = vand.u32 %v459, 4294901760
    %461 = vmatpush1.msra.mxu0 %v460
    %462 = vmatprep.subr.mxu0 0.0
    %v463 = vand.u32 %v78, 4294901760
    %v464 = vsub.f32 %v78, %v463
    %v465 = vand.u32 %v464, 4294901760
    %v466 = vsub.f32 %v464, %v465
    %v467 = vand.u32 %v466, 4294901760
    %468 = vmatpush1.msra.mxu0 %v467
    %469 = vmatprep.subr.mxu0 0.0
    %v470 = vand.u32 %v79, 4294901760
    %v471 = vsub.f32 %v79, %v470
    %v472 = vand.u32 %v471, 4294901760
    %v473 = vsub.f32 %v471, %v472
    %v474 = vand.u32 %v473, 4294901760
    %475 = vmatpush1.msra.mxu0 %v474
    %476 = vmatprep.subr.mxu0 0.0
    %v477 = vand.u32 %v80, 4294901760
    %v478 = vsub.f32 %v80, %v477
    %v479 = vand.u32 %v478, 4294901760
    %v480 = vsub.f32 %v478, %v479
    %v481 = vand.u32 %v480, 4294901760
    %482 = vmatpush1.msra.mxu0 %v481
    %483 = vmatprep.subr.mxu0 0.0
    %v484 = vand.u32 %v81, 4294901760
    %v485 = vsub.f32 %v81, %v484
    %v486 = vand.u32 %v485, 4294901760
    %v487 = vsub.f32 %v485, %v486
    %v488 = vand.u32 %v487, 4294901760
    %489 = vmatpush1.msra.mxu0 %v488
    %490 = vmatprep.subr.mxu0 0.0
    %v491 = vand.u32 %v82, 4294901760
    %v492 = vsub.f32 %v82, %v491
    %v493 = vand.u32 %v492, 4294901760
    %v494 = vsub.f32 %v492, %v493
    %v495 = vand.u32 %v494, 4294901760
    %496 = vmatpush1.msra.mxu0 %v495
    %497 = vmatprep.subr.mxu0 0.0
    %v498 = vand.u32 %v83, 4294901760
    %v499 = vsub.f32 %v83, %v498
    %v500 = vand.u32 %v499, 4294901760
    %v501 = vsub.f32 %v499, %v500
    %v502 = vand.u32 %v501, 4294901760
    %503 = vmatpush1.msra.mxu0 %v502
    %504 = vmatprep.subr.mxu0 0.0
    %v505 = vand.u32 %v84, 4294901760
    %v506 = vsub.f32 %v84, %v505
    %v507 = vand.u32 %v506, 4294901760
    %v508 = vsub.f32 %v506, %v507
    %v509 = vand.u32 %v508, 4294901760
    %510 = vmatpush1.msra.mxu0 %v509
    %511 = vmatprep.subr.mxu0 0.0
    %v512 = vand.u32 %v85, 4294901760
    %v513 = vsub.f32 %v85, %v512
    %v514 = vand.u32 %v513, 4294901760
    %v515 = vsub.f32 %v513, %v514
    %v516 = vand.u32 %v515, 4294901760
    %517 = vmatpush1.msra.mxu0 %v516
    %518 = vmatprep.subr.mxu0 0.0
    %v519 = vand.u32 %v86, 4294901760
    %v520 = vsub.f32 %v86, %v519
    %v521 = vand.u32 %v520, 4294901760
    %v522 = vsub.f32 %v520, %v521
    %v523 = vand.u32 %v522, 4294901760
    %524 = vmatpush1.msra.mxu0 %v523
    %525 = vmatprep.subr.mxu0 0.0
    %v526 = vand.u32 %v87, 4294901760
    %v527 = vsub.f32 %v87, %v526
    %v528 = vand.u32 %v527, 4294901760
    %v529 = vsub.f32 %v527, %v528
    %v530 = vand.u32 %v529, 4294901760
    %531 = vmatpush1.msra.mxu0 %v530
    %532 = vmatprep.subr.mxu0 0.0
    %533 = vmatpush1.msra.mxu0 0.0
    %534 = vmatprep.subr.mxu0 0.0
    %535 = vmatpush1.msra.mxu0 0.0
    %536 = vmatprep.subr.mxu0 0.0
    %537 = vmatpush1.msra.mxu0 0.0
    %538 = vmatprep.subr.mxu0 0.0
    %539 = vmatpush1.msra.mxu0 0.0
    %540 = vmatprep.subr.mxu0 0.0
    %541 = vmatpush1.msra.mxu0 0.0
    %542 = vmatprep.subr.mxu0 0.0
    %543 = vmatpush1.msra.mxu0 0.0
    %544 = vmatprep.subr.mxu0 0.0
    %545 = vmatpush1.msra.mxu0 0.0
    %546 = vmatprep.subr.mxu0 0.0
    %547 = vmatpush1.msra.mxu0 0.0
    %v548 = vand.u32 %v204, 4294901760
    %549 = vmatprep.mubr.f32.mxu0 %v548
    %v550 = vand.u32 %v199, 4294901760
    %551 = vmatmul.mubr.f32.gmra.mrb[0].mxu0 %v550
    %v552 = vpop.f32.mrb[0].mxu0
    %v553 = vadd.f32 %v316, %v552
    %v554 = vpop.f32.mrb[0].mxu0
    %v555 = vand.u32 %v207, 4294901760
    %556 = vmatprep.mubr.f32.mxu0 %v555
    %v557 = vand.u32 %v200, 4294901760
    %558 = vmatmul.mubr.f32.gmra.mrb[0].mxu0 %v557
    %v559 = vpop.f32.mrb[0].mxu0
    %v560 = vadd.f32 %v331, %v559
    %v561 = vpop.f32.mrb[0].mxu0
    %v562 = vand.u32 %v210, 4294901760
    %563 = vmatprep.mubr.f32.mxu0 %v562
    %v564 = vand.u32 %v201, 4294901760
    %565 = vmatmul.mubr.f32.gmra.mrb[0].mxu0 %v564
    %v566 = vpop.f32.mrb[0].mxu0
    %v567 = vadd.f32 %v346, %v566
    %v568 = vpop.f32.mrb[0].mxu0
    %v569 = vand.u32 %v213, 4294901760
    %570 = vmatprep.mubr.f32.mxu0 %v569
    %v571 = vand.u32 %v202, 4294901760
    %572 = vmatmul.mubr.f32.gmra.mrb[0].mxu0 %v571
    %v573 = vpop.f32.mrb[0].mxu0
    %v574 = vadd.f32 %v361, %v573
    %v575 = vpop.f32.mrb[0].mxu0
    %576 = vdwg.mxu0
    %577 = vmatprep.subr.mxu0 0.0
    %v578 = vand.u32 %v64, 4294901760
    %v579 = vsub.f32 %v64, %v578
    %580 = vmatpush1.msra.mxu0 %v579
    %581 = vmatprep.subr.mxu0 0.0
    %v582 = vand.u32 %v65, 4294901760
    %v583 = vsub.f32 %v65, %v582
    %584 = vmatpush1.msra.mxu0 %v583
    %585 = vmatprep.subr.mxu0 0.0
    %v586 = vand.u32 %v66, 4294901760
    %v587 = vsub.f32 %v66, %v586
    %588 = vmatpush1.msra.mxu0 %v587
    %589 = vmatprep.subr.mxu0 0.0
    %v590 = vand.u32 %v67, 4294901760
    %v591 = vsub.f32 %v67, %v590
    %592 = vmatpush1.msra.mxu0 %v591
    %593 = vmatprep.subr.mxu0 0.0
    %v594 = vand.u32 %v68, 4294901760
    %v595 = vsub.f32 %v68, %v594
    %596 = vmatpush1.msra.mxu0 %v595
    %597 = vmatprep.subr.mxu0 0.0
    %v598 = vand.u32 %v69, 4294901760
    %v599 = vsub.f32 %v69, %v598
    %600 = vmatpush1.msra.mxu0 %v599
    %601 = vmatprep.subr.mxu0 0.0
    %v602 = vand.u32 %v70, 4294901760
    %v603 = vsub.f32 %v70, %v602
    %604 = vmatpush1.msra.mxu0 %v603
    %605 = vmatprep.subr.mxu0 0.0
    %v606 = vand.u32 %v71, 4294901760
    %v607 = vsub.f32 %v71, %v606
    %608 = vmatpush1.msra.mxu0 %v607
    %609 = vmatprep.subr.mxu0 0.0
    %v610 = vand.u32 %v72, 4294901760
    %v611 = vsub.f32 %v72, %v610
    %612 = vmatpush1.msra.mxu0 %v611
    %613 = vmatprep.subr.mxu0 0.0
    %v614 = vand.u32 %v73, 4294901760
    %v615 = vsub.f32 %v73, %v614
    %616 = vmatpush1.msra.mxu0 %v615
    %617 = vmatprep.subr.mxu0 0.0
    %v618 = vand.u32 %v74, 4294901760
    %v619 = vsub.f32 %v74, %v618
    %620 = vmatpush1.msra.mxu0 %v619
    %621 = vmatprep.subr.mxu0 0.0
    %v622 = vand.u32 %v75, 4294901760
    %v623 = vsub.f32 %v75, %v622
    %624 = vmatpush1.msra.mxu0 %v623
    %625 = vmatprep.subr.mxu0 0.0
    %v626 = vand.u32 %v76, 4294901760
    %v627 = vsub.f32 %v76, %v626
    %628 = vmatpush1.msra.mxu0 %v627
    %629 = vmatprep.subr.mxu0 0.0
    %v630 = vand.u32 %v77, 4294901760
    %v631 = vsub.f32 %v77, %v630
    %632 = vmatpush1.msra.mxu0 %v631
    %633 = vmatprep.subr.mxu0 0.0
    %v634 = vand.u32 %v78, 4294901760
    %v635 = vsub.f32 %v78, %v634
    %636 = vmatpush1.msra.mxu0 %v635
    %637 = vmatprep.subr.mxu0 0.0
    %v638 = vand.u32 %v79, 4294901760
    %v639 = vsub.f32 %v79, %v638
    %640 = vmatpush1.msra.mxu0 %v639
    %641 = vmatprep.subr.mxu0 0.0
    %v642 = vand.u32 %v80, 4294901760
    %v643 = vsub.f32 %v80, %v642
    %644 = vmatpush1.msra.mxu0 %v643
    %645 = vmatprep.subr.mxu0 0.0
    %v646 = vand.u32 %v81, 4294901760
    %v647 = vsub.f32 %v81, %v646
    %648 = vmatpush1.msra.mxu0 %v647
    %649 = vmatprep.subr.mxu0 0.0
    %v650 = vand.u32 %v82, 4294901760
    %v651 = vsub.f32 %v82, %v650
    %652 = vmatpush1.msra.mxu0 %v651
    %653 = vmatprep.subr.mxu0 0.0
    %v654 = vand.u32 %v83, 4294901760
    %v655 = vsub.f32 %v83, %v654
    %656 = vmatpush1.msra.mxu0 %v655
    %657 = vmatprep.subr.mxu0 0.0
    %v658 = vand.u32 %v84, 4294901760
    %v659 = vsub.f32 %v84, %v658
    %660 = vmatpush1.msra.mxu0 %v659
    %661 = vmatprep.subr.mxu0 0.0
    %v662 = vand.u32 %v85, 4294901760
    %v663 = vsub.f32 %v85, %v662
    %664 = vmatpush1.msra.mxu0 %v663
    %665 = vmatprep.subr.mxu0 0.0
    %v666 = vand.u32 %v86, 4294901760
    %v667 = vsub.f32 %v86, %v666
    %668 = vmatpush1.msra.mxu0 %v667
    %669 = vmatprep.subr.mxu0 0.0
    %v670 = vand.u32 %v87, 4294901760
    %v671 = vsub.f32 %v87, %v670
    %672 = vmatpush1.msra.mxu0 %v671
    %673 = vmatprep.subr.mxu0 0.0
    %674 = vmatpush1.msra.mxu0 0.0
    %675 = vmatprep.subr.mxu0 0.0
    %676 = vmatpush1.msra.mxu0 0.0
    %677 = vmatprep.subr.mxu0 0.0
    %678 = vmatpush1.msra.mxu0 0.0
    %679 = vmatprep.subr.mxu0 0.0
    %680 = vmatpush1.msra.mxu0 0.0
    %681 = vmatprep.subr.mxu0 0.0
    %682 = vmatpush1.msra.mxu0 0.0
    %683 = vmatprep.subr.mxu0 0.0
    %684 = vmatpush1.msra.mxu0 0.0
    %685 = vmatprep.subr.mxu0 0.0
    %686 = vmatpush1.msra.mxu0 0.0
    %687 = vmatprep.subr.mxu0 0.0
    %688 = vmatpush1.msra.mxu0 0.0
    %v689 = vand.u32 %v204, 4294901760
    %v690 = vsub.f32 %v204, %v689
    %691 = vmatprep.mubr.f32.mxu0 %v690
    %v692 = vand.u32 %v199, 4294901760
    %v693 = vsub.f32 %v199, %v692
    %694 = vmatmul.mubr.f32.gmra.mrb[0].mxu0 %v693
    %v695 = vpop.f32.mrb[0].mxu0
    %v696 = vadd.f32 %v553, %v695
    %v697 = vpop.f32.mrb[0].mxu0
    %v698 = vand.u32 %v207, 4294901760
    %v699 = vsub.f32 %v207, %v698
    %700 = vmatprep.mubr.f32.mxu0 %v699
    %v701 = vand.u32 %v200, 4294901760
    %v702 = vsub.f32 %v200, %v701
    %703 = vmatmul.mubr.f32.gmra.mrb[0].mxu0 %v702
    %v704 = vpop.f32.mrb[0].mxu0
    %v705 = vadd.f32 %v560, %v704
    %v706 = vpop.f32.mrb[0].mxu0
    %v707 = vand.u32 %v210, 4294901760
    %v708 = vsub.f32 %v210, %v707
    %709 = vmatprep.mubr.f32.mxu0 %v708
    %v710 = vand.u32 %v201, 4294901760
    %v711 = vsub.f32 %v201, %v710
    %712 = vmatmul.mubr.f32.gmra.mrb[0].mxu0 %v711
    %v713 = vpop.f32.mrb[0].mxu0
    %v714 = vadd.f32 %v567, %v713
    %v715 = vpop.f32.mrb[0].mxu0
    %v716 = vand.u32 %v213, 4294901760
    %v717 = vsub.f32 %v213, %v716
    %718 = vmatprep.mubr.f32.mxu0 %v717
    %v719 = vand.u32 %v202, 4294901760
    %v720 = vsub.f32 %v202, %v719
    %721 = vmatmul.mubr.f32.gmra.mrb[0].mxu0 %v720
    %v722 = vpop.f32.mrb[0].mxu0
    %v723 = vadd.f32 %v574, %v722
    %v724 = vpop.f32.mrb[0].mxu0
    %725 = vdwg.mxu0
    %726 = vmatprep.subr.mxu0 0.0
    %v727 = vand.u32 %v64, 4294901760
    %728 = vmatpush1.msra.mxu0 %v727
    %729 = vmatprep.subr.mxu0 0.0
    %v730 = vand.u32 %v65, 4294901760
    %731 = vmatpush1.msra.mxu0 %v730
    %732 = vmatprep.subr.mxu0 0.0
    %v733 = vand.u32 %v66, 4294901760
    %734 = vmatpush1.msra.mxu0 %v733
    %735 = vmatprep.subr.mxu0 0.0
    %v736 = vand.u32 %v67, 4294901760
    %737 = vmatpush1.msra.mxu0 %v736
    %738 = vmatprep.subr.mxu0 0.0
    %v739 = vand.u32 %v68, 4294901760
    %740 = vmatpush1.msra.mxu0 %v739
    %741 = vmatprep.subr.mxu0 0.0
    %v742 = vand.u32 %v69, 4294901760
    %743 = vmatpush1.msra.mxu0 %v742
    %744 = vmatprep.subr.mxu0 0.0
    %v745 = vand.u32 %v70, 4294901760
    %746 = vmatpush1.msra.mxu0 %v745
    %747 = vmatprep.subr.mxu0 0.0
    %v748 = vand.u32 %v71, 4294901760
    %749 = vmatpush1.msra.mxu0 %v748
    %750 = vmatprep.subr.mxu0 0.0
    %v751 = vand.u32 %v72, 4294901760
    %752 = vmatpush1.msra.mxu0 %v751
    %753 = vmatprep.subr.mxu0 0.0
    %v754 = vand.u32 %v73, 4294901760
    %755 = vmatpush1.msra.mxu0 %v754
    %756 = vmatprep.subr.mxu0 0.0
    %v757 = vand.u32 %v74, 4294901760
    %758 = vmatpush1.msra.mxu0 %v757
    %759 = vmatprep.subr.mxu0 0.0
    %v760 = vand.u32 %v75, 4294901760
    %761 = vmatpush1.msra.mxu0 %v760
    %762 = vmatprep.subr.mxu0 0.0
    %v763 = vand.u32 %v76, 4294901760
    %764 = vmatpush1.msra.mxu0 %v763
    %765 = vmatprep.subr.mxu0 0.0
    %v766 = vand.u32 %v77, 4294901760
    %767 = vmatpush1.msra.mxu0 %v766
    %768 = vmatprep.subr.mxu0 0.0
    %v769 = vand.u32 %v78, 4294901760
    %770 = vmatpush1.msra.mxu0 %v769
    %771 = vmatprep.subr.mxu0 0.0
    %v772 = vand.u32 %v79, 4294901760
    %773 = vmatpush1.msra.mxu0 %v772
    %774 = vmatprep.subr.mxu0 0.0
    %v775 = vand.u32 %v80, 4294901760
    %776 = vmatpush1.msra.mxu0 %v775
    %777 = vmatprep.subr.mxu0 0.0
    %v778 = vand.u32 %v81, 4294901760
    %779 = vmatpush1.msra.mxu0 %v778
    %780 = vmatprep.subr.mxu0 0.0
    %v781 = vand.u32 %v82, 4294901760
    %782 = vmatpush1.msra.mxu0 %v781
    %783 = vmatprep.subr.mxu0 0.0
    %v784 = vand.u32 %v83, 4294901760
    %785 = vmatpush1.msra.mxu0 %v784
    %786 = vmatprep.subr.mxu0 0.0
    %v787 = vand.u32 %v84, 4294901760
    %788 = vmatpush1.msra.mxu0 %v787
    %789 = vmatprep.subr.mxu0 0.0
    %v790 = vand.u32 %v85, 4294901760
    %791 = vmatpush1.msra.mxu0 %v790
    %792 = vmatprep.subr.mxu0 0.0
    %v793 = vand.u32 %v86, 4294901760
    %794 = vmatpush1.msra.mxu0 %v793
    %795 = vmatprep.subr.mxu0 0.0
    %v796 = vand.u32 %v87, 4294901760
    %797 = vmatpush1.msra.mxu0 %v796
    %798 = vmatprep.subr.mxu0 0.0
    %799 = vmatpush1.msra.mxu0 0.0
    %800 = vmatprep.subr.mxu0 0.0
    %801 = vmatpush1.msra.mxu0 0.0
    %802 = vmatprep.subr.mxu0 0.0
    %803 = vmatpush1.msra.mxu0 0.0
    %804 = vmatprep.subr.mxu0 0.0
    %805 = vmatpush1.msra.mxu0 0.0
    %806 = vmatprep.subr.mxu0 0.0
    %807 = vmatpush1.msra.mxu0 0.0
    %808 = vmatprep.subr.mxu0 0.0
    %809 = vmatpush1.msra.mxu0 0.0
    %810 = vmatprep.subr.mxu0 0.0
    %811 = vmatpush1.msra.mxu0 0.0
    %812 = vmatprep.subr.mxu0 0.0
    %813 = vmatpush1.msra.mxu0 0.0
    %v814 = vand.u32 %v204, 4294901760
    %v815 = vsub.f32 %v204, %v814
    %v816 = vand.u32 %v815, 4294901760
    %817 = vmatprep.mubr.f32.mxu0 %v816
    %v818 = vand.u32 %v199, 4294901760
    %v819 = vsub.f32 %v199, %v818
    %v820 = vand.u32 %v819, 4294901760
    %821 = vmatmul.mubr.f32.gmra.mrb[0].mxu0 %v820
    %v822 = vpop.f32.mrb[0].mxu0
    %v823 = vadd.f32 %v696, %v822
    %v824 = vpop.f32.mrb[0].mxu0
    %v825 = vand.u32 %v207, 4294901760
    %v826 = vsub.f32 %v207, %v825
    %v827 = vand.u32 %v826, 4294901760
    %828 = vmatprep.mubr.f32.mxu0 %v827
    %v829 = vand.u32 %v200, 4294901760
    %v830 = vsub.f32 %v200, %v829
    %v831 = vand.u32 %v830, 4294901760
    %832 = vmatmul.mubr.f32.gmra.mrb[0].mxu0 %v831
    %v833 = vpop.f32.mrb[0].mxu0
    %v834 = vadd.f32 %v705, %v833
    %v835 = vpop.f32.mrb[0].mxu0
    %v836 = vand.u32 %v210, 4294901760
    %v837 = vsub.f32 %v210, %v836
    %v838 = vand.u32 %v837, 4294901760
    %839 = vmatprep.mubr.f32.mxu0 %v838
    %v840 = vand.u32 %v201, 4294901760
    %v841 = vsub.f32 %v201, %v840
    %v842 = vand.u32 %v841, 4294901760
    %843 = vmatmul.mubr.f32.gmra.mrb[0].mxu0 %v842
    %v844 = vpop.f32.mrb[0].mxu0
    %v845 = vadd.f32 %v714, %v844
    %v846 = vpop.f32.mrb[0].mxu0
    %v847 = vand.u32 %v213, 4294901760
    %v848 = vsub.f32 %v213, %v847
    %v849 = vand.u32 %v848, 4294901760
    %850 = vmatprep.mubr.f32.mxu0 %v849
    %v851 = vand.u32 %v202, 4294901760
    %v852 = vsub.f32 %v202, %v851
    %v853 = vand.u32 %v852, 4294901760
    %854 = vmatmul.mubr.f32.gmra.mrb[0].mxu0 %v853
    %v855 = vpop.f32.mrb[0].mxu0
    %v856 = vadd.f32 %v723, %v855
    %v857 = vpop.f32.mrb[0].mxu0
    %858 = vdwg.mxu0
    %859 = vmatprep.subr.mxu0 0.0
    %v860 = vand.u32 %v64, 4294901760
    %v861 = vsub.f32 %v64, %v860
    %v862 = vand.u32 %v861, 4294901760
    %863 = vmatpush1.msra.mxu0 %v862
    %864 = vmatprep.subr.mxu0 0.0
    %v865 = vand.u32 %v65, 4294901760
    %v866 = vsub.f32 %v65, %v865
    %v867 = vand.u32 %v866, 4294901760
    %868 = vmatpush1.msra.mxu0 %v867
    %869 = vmatprep.subr.mxu0 0.0
    %v870 = vand.u32 %v66, 4294901760
    %v871 = vsub.f32 %v66, %v870
    %v872 = vand.u32 %v871, 4294901760
    %873 = vmatpush1.msra.mxu0 %v872
    %874 = vmatprep.subr.mxu0 0.0
    %v875 = vand.u32 %v67, 4294901760
    %v876 = vsub.f32 %v67, %v875
    %v877 = vand.u32 %v876, 4294901760
    %878 = vmatpush1.msra.mxu0 %v877
    %879 = vmatprep.subr.mxu0 0.0
    %v880 = vand.u32 %v68, 4294901760
    %v881 = vsub.f32 %v68, %v880
    %v882 = vand.u32 %v881, 4294901760
    %883 = vmatpush1.msra.mxu0 %v882
    %884 = vmatprep.subr.mxu0 0.0
    %v885 = vand.u32 %v69, 4294901760
    %v886 = vsub.f32 %v69, %v885
    %v887 = vand.u32 %v886, 4294901760
    %888 = vmatpush1.msra.mxu0 %v887
    %889 = vmatprep.subr.mxu0 0.0
    %v890 = vand.u32 %v70, 4294901760
    %v891 = vsub.f32 %v70, %v890
    %v892 = vand.u32 %v891, 4294901760
    %893 = vmatpush1.msra.mxu0 %v892
    %894 = vmatprep.subr.mxu0 0.0
    %v895 = vand.u32 %v71, 4294901760
    %v896 = vsub.f32 %v71, %v895
    %v897 = vand.u32 %v896, 4294901760
    %898 = vmatpush1.msra.mxu0 %v897
    %899 = vmatprep.subr.mxu0 0.0
    %v900 = vand.u32 %v72, 4294901760
    %v901 = vsub.f32 %v72, %v900
    %v902 = vand.u32 %v901, 4294901760
    %903 = vmatpush1.msra.mxu0 %v902
    %904 = vmatprep.subr.mxu0 0.0
    %v905 = vand.u32 %v73, 4294901760
    %v906 = vsub.f32 %v73, %v905
    %v907 = vand.u32 %v906, 4294901760
    %908 = vmatpush1.msra.mxu0 %v907
    %909 = vmatprep.subr.mxu0 0.0
    %v910 = vand.u32 %v74, 4294901760
    %v911 = vsub.f32 %v74, %v910
    %v912 = vand.u32 %v911, 4294901760
    %913 = vmatpush1.msra.mxu0 %v912
    %914 = vmatprep.subr.mxu0 0.0
    %v915 = vand.u32 %v75, 4294901760
    %v916 = vsub.f32 %v75, %v915
    %v917 = vand.u32 %v916, 4294901760
    %918 = vmatpush1.msra.mxu0 %v917
    %919 = vmatprep.subr.mxu0 0.0
    %v920 = vand.u32 %v76, 4294901760
    %v921 = vsub.f32 %v76, %v920
    %v922 = vand.u32 %v921, 4294901760
    %923 = vmatpush1.msra.mxu0 %v922
    %924 = vmatprep.subr.mxu0 0.0
    %v925 = vand.u32 %v77, 4294901760
    %v926 = vsub.f32 %v77, %v925
    %v927 = vand.u32 %v926, 4294901760
    %928 = vmatpush1.msra.mxu0 %v927
    %929 = vmatprep.subr.mxu0 0.0
    %v930 = vand.u32 %v78, 4294901760
    %v931 = vsub.f32 %v78, %v930
    %v932 = vand.u32 %v931, 4294901760
    %933 = vmatpush1.msra.mxu0 %v932
    %934 = vmatprep.subr.mxu0 0.0
    %v935 = vand.u32 %v79, 4294901760
    %v936 = vsub.f32 %v79, %v935
    %v937 = vand.u32 %v936, 4294901760
    %938 = vmatpush1.msra.mxu0 %v937
    %939 = vmatprep.subr.mxu0 0.0
    %v940 = vand.u32 %v80, 4294901760
    %v941 = vsub.f32 %v80, %v940
    %v942 = vand.u32 %v941, 4294901760
    %943 = vmatpush1.msra.mxu0 %v942
    %944 = vmatprep.subr.mxu0 0.0
    %v945 = vand.u32 %v81, 4294901760
    %v946 = vsub.f32 %v81, %v945
    %v947 = vand.u32 %v946, 4294901760
    %948 = vmatpush1.msra.mxu0 %v947
    %949 = vmatprep.subr.mxu0 0.0
    %v950 = vand.u32 %v82, 4294901760
    %v951 = vsub.f32 %v82, %v950
    %v952 = vand.u32 %v951, 4294901760
    %953 = vmatpush1.msra.mxu0 %v952
    %954 = vmatprep.subr.mxu0 0.0
    %v955 = vand.u32 %v83, 4294901760
    %v956 = vsub.f32 %v83, %v955
    %v957 = vand.u32 %v956, 4294901760
    %958 = vmatpush1.msra.mxu0 %v957
    %959 = vmatprep.subr.mxu0 0.0
    %v960 = vand.u32 %v84, 4294901760
    %v961 = vsub.f32 %v84, %v960
    %v962 = vand.u32 %v961, 4294901760
    %963 = vmatpush1.msra.mxu0 %v962
    %964 = vmatprep.subr.mxu0 0.0
    %v965 = vand.u32 %v85, 4294901760
    %v966 = vsub.f32 %v85, %v965
    %v967 = vand.u32 %v966, 4294901760
    %968 = vmatpush1.msra.mxu0 %v967
    %969 = vmatprep.subr.mxu0 0.0
    %v970 = vand.u32 %v86, 4294901760
    %v971 = vsub.f32 %v86, %v970
    %v972 = vand.u32 %v971, 4294901760
    %973 = vmatpush1.msra.mxu0 %v972
    %974 = vmatprep.subr.mxu0 0.0
    %v975 = vand.u32 %v87, 4294901760
    %v976 = vsub.f32 %v87, %v975
    %v977 = vand.u32 %v976, 4294901760
    %978 = vmatpush1.msra.mxu0 %v977
    %979 = vmatprep.subr.mxu0 0.0
    %980 = vmatpush1.msra.mxu0 0.0
    %981 = vmatprep.subr.mxu0 0.0
    %982 = vmatpush1.msra.mxu0 0.0
    %983 = vmatprep.subr.mxu0 0.0
    %984 = vmatpush1.msra.mxu0 0.0
    %985 = vmatprep.subr.mxu0 0.0
    %986 = vmatpush1.msra.mxu0 0.0
    %987 = vmatprep.subr.mxu0 0.0
    %988 = vmatpush1.msra.mxu0 0.0
    %989 = vmatprep.subr.mxu0 0.0
    %990 = vmatpush1.msra.mxu0 0.0
    %991 = vmatprep.subr.mxu0 0.0
    %992 = vmatpush1.msra.mxu0 0.0
    %993 = vmatprep.subr.mxu0 0.0
    %994 = vmatpush1.msra.mxu0 0.0
    %v995 = vand.u32 %v204, 4294901760
    %996 = vmatprep.mubr.f32.mxu0 %v995
    %v997 = vand.u32 %v199, 4294901760
    %998 = vmatmul.mubr.f32.gmra.mrb[0].mxu0 %v997
    %v999 = vpop.f32.mrb[0].mxu0
    %v1000 = vadd.f32 %v823, %v999
    %v1001 = vpop.f32.mrb[0].mxu0
    %v1002 = vand.u32 %v207, 4294901760
    %1003 = vmatprep.mubr.f32.mxu0 %v1002
    %v1004 = vand.u32 %v200, 4294901760
    %1005 = vmatmul.mubr.f32.gmra.mrb[0].mxu0 %v1004
    %v1006 = vpop.f32.mrb[0].mxu0
    %v1007 = vadd.f32 %v834, %v1006
    %v1008 = vpop.f32.mrb[0].mxu0
    %v1009 = vand.u32 %v210, 4294901760
    %1010 = vmatprep.mubr.f32.mxu0 %v1009
    %v1011 = vand.u32 %v201, 4294901760
    %1012 = vmatmul.mubr.f32.gmra.mrb[0].mxu0 %v1011
    %v1013 = vpop.f32.mrb[0].mxu0
    %v1014 = vadd.f32 %v845, %v1013
    %v1015 = vpop.f32.mrb[0].mxu0
    %v1016 = vand.u32 %v213, 4294901760
    %1017 = vmatprep.mubr.f32.mxu0 %v1016
    %v1018 = vand.u32 %v202, 4294901760
    %1019 = vmatmul.mubr.f32.gmra.mrb[0].mxu0 %v1018
    %v1020 = vpop.f32.mrb[0].mxu0
    %v1021 = vadd.f32 %v856, %v1020
    %v1022 = vpop.f32.mrb[0].mxu0
    %1023 = vdwg.mxu0
    %1024 = vmatprep.subr.mxu0 0.0
    %v1025 = vand.u32 %v64, 4294901760
    %1026 = vmatpush1.msra.mxu0 %v1025
    %1027 = vmatprep.subr.mxu0 0.0
    %v1028 = vand.u32 %v65, 4294901760
    %1029 = vmatpush1.msra.mxu0 %v1028
    %1030 = vmatprep.subr.mxu0 0.0
    %v1031 = vand.u32 %v66, 4294901760
    %1032 = vmatpush1.msra.mxu0 %v1031
    %1033 = vmatprep.subr.mxu0 0.0
    %v1034 = vand.u32 %v67, 4294901760
    %1035 = vmatpush1.msra.mxu0 %v1034
    %1036 = vmatprep.subr.mxu0 0.0
    %v1037 = vand.u32 %v68, 4294901760
    %1038 = vmatpush1.msra.mxu0 %v1037
    %1039 = vmatprep.subr.mxu0 0.0
    %v1040 = vand.u32 %v69, 4294901760
    %1041 = vmatpush1.msra.mxu0 %v1040
    %1042 = vmatprep.subr.mxu0 0.0
    %v1043 = vand.u32 %v70, 4294901760
    %1044 = vmatpush1.msra.mxu0 %v1043
    %1045 = vmatprep.subr.mxu0 0.0
    %v1046 = vand.u32 %v71, 4294901760
    %1047 = vmatpush1.msra.mxu0 %v1046
    %1048 = vmatprep.subr.mxu0 0.0
    %v1049 = vand.u32 %v72, 4294901760
    %1050 = vmatpush1.msra.mxu0 %v1049
    %1051 = vmatprep.subr.mxu0 0.0
    %v1052 = vand.u32 %v73, 4294901760
    %1053 = vmatpush1.msra.mxu0 %v1052
    %1054 = vmatprep.subr.mxu0 0.0
    %v1055 = vand.u32 %v74, 4294901760
    %1056 = vmatpush1.msra.mxu0 %v1055
    %1057 = vmatprep.subr.mxu0 0.0
    %v1058 = vand.u32 %v75, 4294901760
    %1059 = vmatpush1.msra.mxu0 %v1058
    %1060 = vmatprep.subr.mxu0 0.0
    %v1061 = vand.u32 %v76, 4294901760
    %1062 = vmatpush1.msra.mxu0 %v1061
    %1063 = vmatprep.subr.mxu0 0.0
    %v1064 = vand.u32 %v77, 4294901760
    %1065 = vmatpush1.msra.mxu0 %v1064
    %1066 = vmatprep.subr.mxu0 0.0
    %v1067 = vand.u32 %v78, 4294901760
    %1068 = vmatpush1.msra.mxu0 %v1067
    %1069 = vmatprep.subr.mxu0 0.0
    %v1070 = vand.u32 %v79, 4294901760
    %1071 = vmatpush1.msra.mxu0 %v1070
    %1072 = vmatprep.subr.mxu0 0.0
    %v1073 = vand.u32 %v80, 4294901760
    %1074 = vmatpush1.msra.mxu0 %v1073
    %1075 = vmatprep.subr.mxu0 0.0
    %v1076 = vand.u32 %v81, 4294901760
    %1077 = vmatpush1.msra.mxu0 %v1076
    %1078 = vmatprep.subr.mxu0 0.0
    %v1079 = vand.u32 %v82, 4294901760
    %1080 = vmatpush1.msra.mxu0 %v1079
    %1081 = vmatprep.subr.mxu0 0.0
    %v1082 = vand.u32 %v83, 4294901760
    %1083 = vmatpush1.msra.mxu0 %v1082
    %1084 = vmatprep.subr.mxu0 0.0
    %v1085 = vand.u32 %v84, 4294901760
    %1086 = vmatpush1.msra.mxu0 %v1085
    %1087 = vmatprep.subr.mxu0 0.0
    %v1088 = vand.u32 %v85, 4294901760
    %1089 = vmatpush1.msra.mxu0 %v1088
    %1090 = vmatprep.subr.mxu0 0.0
    %v1091 = vand.u32 %v86, 4294901760
    %1092 = vmatpush1.msra.mxu0 %v1091
    %1093 = vmatprep.subr.mxu0 0.0
    %v1094 = vand.u32 %v87, 4294901760
    %1095 = vmatpush1.msra.mxu0 %v1094
    %1096 = vmatprep.subr.mxu0 0.0
    %1097 = vmatpush1.msra.mxu0 0.0
    %1098 = vmatprep.subr.mxu0 0.0
    %1099 = vmatpush1.msra.mxu0 0.0
    %1100 = vmatprep.subr.mxu0 0.0
    %1101 = vmatpush1.msra.mxu0 0.0
    %1102 = vmatprep.subr.mxu0 0.0
    %1103 = vmatpush1.msra.mxu0 0.0
    %1104 = vmatprep.subr.mxu0 0.0
    %1105 = vmatpush1.msra.mxu0 0.0
    %1106 = vmatprep.subr.mxu0 0.0
    %1107 = vmatpush1.msra.mxu0 0.0
    %1108 = vmatprep.subr.mxu0 0.0
    %1109 = vmatpush1.msra.mxu0 0.0
    %1110 = vmatprep.subr.mxu0 0.0
    %1111 = vmatpush1.msra.mxu0 0.0
    %v1112 = vand.u32 %v204, 4294901760
    %1113 = vmatprep.mubr.f32.mxu0 %v1112
    %v1114 = vand.u32 %v199, 4294901760
    %1115 = vmatmul.mubr.f32.gmra.mrb[0].mxu0 %v1114
    %v1116 = vpop.f32.mrb[0].mxu0
    %v1117 = vadd.f32 %v1000, %v1116
    %v1118 = vpop.f32.mrb[0].mxu0
    %v1119 = vand.u32 %v207, 4294901760
    %1120 = vmatprep.mubr.f32.mxu0 %v1119
    %v1121 = vand.u32 %v200, 4294901760
    %1122 = vmatmul.mubr.f32.gmra.mrb[0].mxu0 %v1121
    %v1123 = vpop.f32.mrb[0].mxu0
    %v1124 = vadd.f32 %v1007, %v1123
    %v1125 = vpop.f32.mrb[0].mxu0
    %v1126 = vand.u32 %v210, 4294901760
    %1127 = vmatprep.mubr.f32.mxu0 %v1126
    %v1128 = vand.u32 %v201, 4294901760
    %1129 = vmatmul.mubr.f32.gmra.mrb[0].mxu0 %v1128
    %v1130 = vpop.f32.mrb[0].mxu0
    %v1131 = vadd.f32 %v1014, %v1130
    %v1132 = vpop.f32.mrb[0].mxu0
    %v1133 = vand.u32 %v213, 4294901760
    %1134 = vmatprep.mubr.f32.mxu0 %v1133
    %v1135 = vand.u32 %v202, 4294901760
    %1136 = vmatmul.mubr.f32.gmra.mrb[0].mxu0 %v1135
    %v1137 = vpop.f32.mrb[0].mxu0
    %v1138 = vadd.f32 %v1021, %v1137
    %v1139 = vpop.f32.mrb[0].mxu0
    %1140 = vdwg.mxu0
    %v1141 = vadd.f32 %v1117, %v1124
    %v1142 = vadd.f32 %v1141, %v1131
    %v1143 = vadd.f32 %v1142, %v1138
    %v1144 = vrot.slane %v1143, 4
    %v1145 = vadd.f32 %v1143, %v1144
    %v1146 = vrot.slane %v1145, 2
    %v1147 = vadd.f32 %v1145, %v1146
    %v1148 = vrot.slane %v1147, 1
    %v1149 = vadd.f32 %v1147, %v1148
    %v1150 = vmul.f32 %v1117, %v1117
    %v1151 = vmul.f32 %v1124, %v1124
    %v1152 = vmul.f32 %v1131, %v1131
    %v1153 = vmul.f32 %v1138, %v1138
    %v1154 = vadd.f32 %v1150, %v1151
    %v1155 = vadd.f32 %v1154, %v1152
    %v1156 = vadd.f32 %v1155, %v1153
    %v1157 = vrot.slane %v1156, 4
    %v1158 = vadd.f32 %v1156, %v1157
    %v1159 = vrot.slane %v1158, 2
    %v1160 = vadd.f32 %v1158, %v1159
    %v1161 = vrot.slane %v1160, 1
    %v1162 = vadd.f32 %v1160, %v1161
    %v1163 = vsel %vm112, %v1149, %v1162
    %1164 = vmatprep.subr.mxu0 0.0
    %v1165 = vand.u32 %v88, 4294901760
    %1166 = vmatpush1.msra.mxu0 %v1165
    %1167 = vmatprep.subr.mxu0 0.0
    %v1168 = vand.u32 %v89, 4294901760
    %1169 = vmatpush1.msra.mxu0 %v1168
    %1170 = vmatprep.subr.mxu0 0.0
    %v1171 = vand.u32 %v90, 4294901760
    %1172 = vmatpush1.msra.mxu0 %v1171
    %1173 = vmatprep.subr.mxu0 0.0
    %v1174 = vand.u32 %v91, 4294901760
    %1175 = vmatpush1.msra.mxu0 %v1174
    %1176 = vmatprep.subr.mxu0 0.0
    %v1177 = vand.u32 %v92, 4294901760
    %1178 = vmatpush1.msra.mxu0 %v1177
    %1179 = vmatprep.subr.mxu0 0.0
    %v1180 = vand.u32 %v93, 4294901760
    %1181 = vmatpush1.msra.mxu0 %v1180
    %1182 = vmatprep.subr.mxu0 0.0
    %v1183 = vand.u32 %v94, 4294901760
    %1184 = vmatpush1.msra.mxu0 %v1183
    %1185 = vmatprep.subr.mxu0 0.0
    %v1186 = vand.u32 %v95, 4294901760
    %1187 = vmatpush1.msra.mxu0 %v1186
    %1188 = vmatprep.subr.mxu0 0.0
    %v1189 = vand.u32 %v96, 4294901760
    %1190 = vmatpush1.msra.mxu0 %v1189
    %1191 = vmatprep.subr.mxu0 0.0
    %v1192 = vand.u32 %v97, 4294901760
    %1193 = vmatpush1.msra.mxu0 %v1192
    %1194 = vmatprep.subr.mxu0 0.0
    %v1195 = vand.u32 %v98, 4294901760
    %1196 = vmatpush1.msra.mxu0 %v1195
    %1197 = vmatprep.subr.mxu0 0.0
    %v1198 = vand.u32 %v99, 4294901760
    %1199 = vmatpush1.msra.mxu0 %v1198
    %1200 = vmatprep.subr.mxu0 0.0
    %v1201 = vand.u32 %v100, 4294901760
    %1202 = vmatpush1.msra.mxu0 %v1201
    %1203 = vmatprep.subr.mxu0 0.0
    %v1204 = vand.u32 %v101, 4294901760
    %1205 = vmatpush1.msra.mxu0 %v1204
    %1206 = vmatprep.subr.mxu0 0.0
    %v1207 = vand.u32 %v102, 4294901760
    %1208 = vmatpush1.msra.mxu0 %v1207
    %1209 = vmatprep.subr.mxu0 0.0
    %v1210 = vand.u32 %v103, 4294901760
    %1211 = vmatpush1.msra.mxu0 %v1210
    %1212 = vmatprep.subr.mxu0 0.0
    %1213 = vmatpush1.msra.mxu0 0.0
    %1214 = vmatprep.subr.mxu0 0.0
    %1215 = vmatpush1.msra.mxu0 0.0
    %1216 = vmatprep.subr.mxu0 0.0
    %1217 = vmatpush1.msra.mxu0 0.0
    %1218 = vmatprep.subr.mxu0 0.0
    %1219 = vmatpush1.msra.mxu0 0.0
    %1220 = vmatprep.subr.mxu0 0.0
    %1221 = vmatpush1.msra.mxu0 0.0
    %1222 = vmatprep.subr.mxu0 0.0
    %1223 = vmatpush1.msra.mxu0 0.0
    %1224 = vmatprep.subr.mxu0 0.0
    %1225 = vmatpush1.msra.mxu0 0.0
    %1226 = vmatprep.subr.mxu0 0.0
    %1227 = vmatpush1.msra.mxu0 0.0
    %1228 = vmatprep.subr.mxu0 0.0
    %1229 = vmatpush1.msra.mxu0 0.0
    %1230 = vmatprep.subr.mxu0 0.0
    %1231 = vmatpush1.msra.mxu0 0.0
    %1232 = vmatprep.subr.mxu0 0.0
    %1233 = vmatpush1.msra.mxu0 0.0
    %1234 = vmatprep.subr.mxu0 0.0
    %1235 = vmatpush1.msra.mxu0 0.0
    %1236 = vmatprep.subr.mxu0 0.0
    %1237 = vmatpush1.msra.mxu0 0.0
    %1238 = vmatprep.subr.mxu0 0.0
    %1239 = vmatpush1.msra.mxu0 0.0
    %1240 = vmatprep.subr.mxu0 0.0
    %1241 = vmatpush1.msra.mxu0 0.0
    %1242 = vmatprep.subr.mxu0 0.0
    %1243 = vmatpush1.msra.mxu0 0.0
    %1244 = vmatprep.mubr.f32.mxu0 0.0
    %v1245 = vand.u32 %v1163, 4294901760
    %v1246 = vsub.f32 %v1163, %v1245
    %v1247 = vand.u32 %v1246, 4294901760
    %v1248 = vsub.f32 %v1246, %v1247
    %v1249 = vand.u32 %v1248, 4294901760
    %1250 = vmatmul.mubr.f32.gmra.mrb[0].mxu0 %v1249
    %v1251 = vpop.f32.mrb[0].mxu0
    %v1252 = vadd.f32 0.0, %v1251
    %v1253 = vpop.f32.mrb[0].mxu0
    %1254 = vdwg.mxu0
    %1255 = vmatprep.subr.mxu0 0.0
    %v1256 = vand.u32 %v88, 4294901760
    %v1257 = vsub.f32 %v88, %v1256
    %v1258 = vand.u32 %v1257, 4294901760
    %v1259 = vsub.f32 %v1257, %v1258
    %v1260 = vand.u32 %v1259, 4294901760
    %1261 = vmatpush1.msra.mxu0 %v1260
    %1262 = vmatprep.subr.mxu0 0.0
    %v1263 = vand.u32 %v89, 4294901760
    %v1264 = vsub.f32 %v89, %v1263
    %v1265 = vand.u32 %v1264, 4294901760
    %v1266 = vsub.f32 %v1264, %v1265
    %v1267 = vand.u32 %v1266, 4294901760
    %1268 = vmatpush1.msra.mxu0 %v1267
    %1269 = vmatprep.subr.mxu0 0.0
    %v1270 = vand.u32 %v90, 4294901760
    %v1271 = vsub.f32 %v90, %v1270
    %v1272 = vand.u32 %v1271, 4294901760
    %v1273 = vsub.f32 %v1271, %v1272
    %v1274 = vand.u32 %v1273, 4294901760
    %1275 = vmatpush1.msra.mxu0 %v1274
    %1276 = vmatprep.subr.mxu0 0.0
    %v1277 = vand.u32 %v91, 4294901760
    %v1278 = vsub.f32 %v91, %v1277
    %v1279 = vand.u32 %v1278, 4294901760
    %v1280 = vsub.f32 %v1278, %v1279
    %v1281 = vand.u32 %v1280, 4294901760
    %1282 = vmatpush1.msra.mxu0 %v1281
    %1283 = vmatprep.subr.mxu0 0.0
    %v1284 = vand.u32 %v92, 4294901760
    %v1285 = vsub.f32 %v92, %v1284
    %v1286 = vand.u32 %v1285, 4294901760
    %v1287 = vsub.f32 %v1285, %v1286
    %v1288 = vand.u32 %v1287, 4294901760
    %1289 = vmatpush1.msra.mxu0 %v1288
    %1290 = vmatprep.subr.mxu0 0.0
    %v1291 = vand.u32 %v93, 4294901760
    %v1292 = vsub.f32 %v93, %v1291
    %v1293 = vand.u32 %v1292, 4294901760
    %v1294 = vsub.f32 %v1292, %v1293
    %v1295 = vand.u32 %v1294, 4294901760
    %1296 = vmatpush1.msra.mxu0 %v1295
    %1297 = vmatprep.subr.mxu0 0.0
    %v1298 = vand.u32 %v94, 4294901760
    %v1299 = vsub.f32 %v94, %v1298
    %v1300 = vand.u32 %v1299, 4294901760
    %v1301 = vsub.f32 %v1299, %v1300
    %v1302 = vand.u32 %v1301, 4294901760
    %1303 = vmatpush1.msra.mxu0 %v1302
    %1304 = vmatprep.subr.mxu0 0.0
    %v1305 = vand.u32 %v95, 4294901760
    %v1306 = vsub.f32 %v95, %v1305
    %v1307 = vand.u32 %v1306, 4294901760
    %v1308 = vsub.f32 %v1306, %v1307
    %v1309 = vand.u32 %v1308, 4294901760
    %1310 = vmatpush1.msra.mxu0 %v1309
    %1311 = vmatprep.subr.mxu0 0.0
    %v1312 = vand.u32 %v96, 4294901760
    %v1313 = vsub.f32 %v96, %v1312
    %v1314 = vand.u32 %v1313, 4294901760
    %v1315 = vsub.f32 %v1313, %v1314
    %v1316 = vand.u32 %v1315, 4294901760
    %1317 = vmatpush1.msra.mxu0 %v1316
    %1318 = vmatprep.subr.mxu0 0.0
    %v1319 = vand.u32 %v97, 4294901760
    %v1320 = vsub.f32 %v97, %v1319
    %v1321 = vand.u32 %v1320, 4294901760
    %v1322 = vsub.f32 %v1320, %v1321
    %v1323 = vand.u32 %v1322, 4294901760
    %1324 = vmatpush1.msra.mxu0 %v1323
    %1325 = vmatprep.subr.mxu0 0.0
    %v1326 = vand.u32 %v98, 4294901760
    %v1327 = vsub.f32 %v98, %v1326
    %v1328 = vand.u32 %v1327, 4294901760
    %v1329 = vsub.f32 %v1327, %v1328
    %v1330 = vand.u32 %v1329, 4294901760
    %1331 = vmatpush1.msra.mxu0 %v1330
    %1332 = vmatprep.subr.mxu0 0.0
    %v1333 = vand.u32 %v99, 4294901760
    %v1334 = vsub.f32 %v99, %v1333
    %v1335 = vand.u32 %v1334, 4294901760
    %v1336 = vsub.f32 %v1334, %v1335
    %v1337 = vand.u32 %v1336, 4294901760
    %1338 = vmatpush1.msra.mxu0 %v1337
    %1339 = vmatprep.subr.mxu0 0.0
    %v1340 = vand.u32 %v100, 4294901760
    %v1341 = vsub.f32 %v100, %v1340
    %v1342 = vand.u32 %v1341, 4294901760
    %v1343 = vsub.f32 %v1341, %v1342
    %v1344 = vand.u32 %v1343, 4294901760
    %1345 = vmatpush1.msra.mxu0 %v1344
    %1346 = vmatprep.subr.mxu0 0.0
    %v1347 = vand.u32 %v101, 4294901760
    %v1348 = vsub.f32 %v101, %v1347
    %v1349 = vand.u32 %v1348, 4294901760
    %v1350 = vsub.f32 %v1348, %v1349
    %v1351 = vand.u32 %v1350, 4294901760
    %1352 = vmatpush1.msra.mxu0 %v1351
    %1353 = vmatprep.subr.mxu0 0.0
    %v1354 = vand.u32 %v102, 4294901760
    %v1355 = vsub.f32 %v102, %v1354
    %v1356 = vand.u32 %v1355, 4294901760
    %v1357 = vsub.f32 %v1355, %v1356
    %v1358 = vand.u32 %v1357, 4294901760
    %1359 = vmatpush1.msra.mxu0 %v1358
    %1360 = vmatprep.subr.mxu0 0.0
    %v1361 = vand.u32 %v103, 4294901760
    %v1362 = vsub.f32 %v103, %v1361
    %v1363 = vand.u32 %v1362, 4294901760
    %v1364 = vsub.f32 %v1362, %v1363
    %v1365 = vand.u32 %v1364, 4294901760
    %1366 = vmatpush1.msra.mxu0 %v1365
    %1367 = vmatprep.subr.mxu0 0.0
    %1368 = vmatpush1.msra.mxu0 0.0
    %1369 = vmatprep.subr.mxu0 0.0
    %1370 = vmatpush1.msra.mxu0 0.0
    %1371 = vmatprep.subr.mxu0 0.0
    %1372 = vmatpush1.msra.mxu0 0.0
    %1373 = vmatprep.subr.mxu0 0.0
    %1374 = vmatpush1.msra.mxu0 0.0
    %1375 = vmatprep.subr.mxu0 0.0
    %1376 = vmatpush1.msra.mxu0 0.0
    %1377 = vmatprep.subr.mxu0 0.0
    %1378 = vmatpush1.msra.mxu0 0.0
    %1379 = vmatprep.subr.mxu0 0.0
    %1380 = vmatpush1.msra.mxu0 0.0
    %1381 = vmatprep.subr.mxu0 0.0
    %1382 = vmatpush1.msra.mxu0 0.0
    %1383 = vmatprep.subr.mxu0 0.0
    %1384 = vmatpush1.msra.mxu0 0.0
    %1385 = vmatprep.subr.mxu0 0.0
    %1386 = vmatpush1.msra.mxu0 0.0
    %1387 = vmatprep.subr.mxu0 0.0
    %1388 = vmatpush1.msra.mxu0 0.0
    %1389 = vmatprep.subr.mxu0 0.0
    %1390 = vmatpush1.msra.mxu0 0.0
    %1391 = vmatprep.subr.mxu0 0.0
    %1392 = vmatpush1.msra.mxu0 0.0
    %1393 = vmatprep.subr.mxu0 0.0
    %1394 = vmatpush1.msra.mxu0 0.0
    %1395 = vmatprep.subr.mxu0 0.0
    %1396 = vmatpush1.msra.mxu0 0.0
    %1397 = vmatprep.subr.mxu0 0.0
    %1398 = vmatpush1.msra.mxu0 0.0
    %1399 = vmatprep.mubr.f32.mxu0 0.0
    %v1400 = vand.u32 %v1163, 4294901760
    %1401 = vmatmul.mubr.f32.gmra.mrb[0].mxu0 %v1400
    %v1402 = vpop.f32.mrb[0].mxu0
    %v1403 = vadd.f32 %v1252, %v1402
    %v1404 = vpop.f32.mrb[0].mxu0
    %1405 = vdwg.mxu0
    %1406 = vmatprep.subr.mxu0 0.0
    %v1407 = vand.u32 %v88, 4294901760
    %v1408 = vsub.f32 %v88, %v1407
    %1409 = vmatpush1.msra.mxu0 %v1408
    %1410 = vmatprep.subr.mxu0 0.0
    %v1411 = vand.u32 %v89, 4294901760
    %v1412 = vsub.f32 %v89, %v1411
    %1413 = vmatpush1.msra.mxu0 %v1412
    %1414 = vmatprep.subr.mxu0 0.0
    %v1415 = vand.u32 %v90, 4294901760
    %v1416 = vsub.f32 %v90, %v1415
    %1417 = vmatpush1.msra.mxu0 %v1416
    %1418 = vmatprep.subr.mxu0 0.0
    %v1419 = vand.u32 %v91, 4294901760
    %v1420 = vsub.f32 %v91, %v1419
    %1421 = vmatpush1.msra.mxu0 %v1420
    %1422 = vmatprep.subr.mxu0 0.0
    %v1423 = vand.u32 %v92, 4294901760
    %v1424 = vsub.f32 %v92, %v1423
    %1425 = vmatpush1.msra.mxu0 %v1424
    %1426 = vmatprep.subr.mxu0 0.0
    %v1427 = vand.u32 %v93, 4294901760
    %v1428 = vsub.f32 %v93, %v1427
    %1429 = vmatpush1.msra.mxu0 %v1428
    %1430 = vmatprep.subr.mxu0 0.0
    %v1431 = vand.u32 %v94, 4294901760
    %v1432 = vsub.f32 %v94, %v1431
    %1433 = vmatpush1.msra.mxu0 %v1432
    %1434 = vmatprep.subr.mxu0 0.0
    %v1435 = vand.u32 %v95, 4294901760
    %v1436 = vsub.f32 %v95, %v1435
    %1437 = vmatpush1.msra.mxu0 %v1436
    %1438 = vmatprep.subr.mxu0 0.0
    %v1439 = vand.u32 %v96, 4294901760
    %v1440 = vsub.f32 %v96, %v1439
    %1441 = vmatpush1.msra.mxu0 %v1440
    %1442 = vmatprep.subr.mxu0 0.0
    %v1443 = vand.u32 %v97, 4294901760
    %v1444 = vsub.f32 %v97, %v1443
    %1445 = vmatpush1.msra.mxu0 %v1444
    %1446 = vmatprep.subr.mxu0 0.0
    %v1447 = vand.u32 %v98, 4294901760
    %v1448 = vsub.f32 %v98, %v1447
    %1449 = vmatpush1.msra.mxu0 %v1448
    %1450 = vmatprep.subr.mxu0 0.0
    %v1451 = vand.u32 %v99, 4294901760
    %v1452 = vsub.f32 %v99, %v1451
    %1453 = vmatpush1.msra.mxu0 %v1452
    %1454 = vmatprep.subr.mxu0 0.0
    %v1455 = vand.u32 %v100, 4294901760
    %v1456 = vsub.f32 %v100, %v1455
    %1457 = vmatpush1.msra.mxu0 %v1456
    %1458 = vmatprep.subr.mxu0 0.0
    %v1459 = vand.u32 %v101, 4294901760
    %v1460 = vsub.f32 %v101, %v1459
    %1461 = vmatpush1.msra.mxu0 %v1460
    %1462 = vmatprep.subr.mxu0 0.0
    %v1463 = vand.u32 %v102, 4294901760
    %v1464 = vsub.f32 %v102, %v1463
    %1465 = vmatpush1.msra.mxu0 %v1464
    %1466 = vmatprep.subr.mxu0 0.0
    %v1467 = vand.u32 %v103, 4294901760
    %v1468 = vsub.f32 %v103, %v1467
    %1469 = vmatpush1.msra.mxu0 %v1468
    %1470 = vmatprep.subr.mxu0 0.0
    %1471 = vmatpush1.msra.mxu0 0.0
    %1472 = vmatprep.subr.mxu0 0.0
    %1473 = vmatpush1.msra.mxu0 0.0
    %1474 = vmatprep.subr.mxu0 0.0
    %1475 = vmatpush1.msra.mxu0 0.0
    %1476 = vmatprep.subr.mxu0 0.0
    %1477 = vmatpush1.msra.mxu0 0.0
    %1478 = vmatprep.subr.mxu0 0.0
    %1479 = vmatpush1.msra.mxu0 0.0
    %1480 = vmatprep.subr.mxu0 0.0
    %1481 = vmatpush1.msra.mxu0 0.0
    %1482 = vmatprep.subr.mxu0 0.0
    %1483 = vmatpush1.msra.mxu0 0.0
    %1484 = vmatprep.subr.mxu0 0.0
    %1485 = vmatpush1.msra.mxu0 0.0
    %1486 = vmatprep.subr.mxu0 0.0
    %1487 = vmatpush1.msra.mxu0 0.0
    %1488 = vmatprep.subr.mxu0 0.0
    %1489 = vmatpush1.msra.mxu0 0.0
    %1490 = vmatprep.subr.mxu0 0.0
    %1491 = vmatpush1.msra.mxu0 0.0
    %1492 = vmatprep.subr.mxu0 0.0
    %1493 = vmatpush1.msra.mxu0 0.0
    %1494 = vmatprep.subr.mxu0 0.0
    %1495 = vmatpush1.msra.mxu0 0.0
    %1496 = vmatprep.subr.mxu0 0.0
    %1497 = vmatpush1.msra.mxu0 0.0
    %1498 = vmatprep.subr.mxu0 0.0
    %1499 = vmatpush1.msra.mxu0 0.0
    %1500 = vmatprep.subr.mxu0 0.0
    %1501 = vmatpush1.msra.mxu0 0.0
    %1502 = vmatprep.mubr.f32.mxu0 0.0
    %v1503 = vand.u32 %v1163, 4294901760
    %v1504 = vsub.f32 %v1163, %v1503
    %1505 = vmatmul.mubr.f32.gmra.mrb[0].mxu0 %v1504
    %v1506 = vpop.f32.mrb[0].mxu0
    %v1507 = vadd.f32 %v1403, %v1506
    %v1508 = vpop.f32.mrb[0].mxu0
    %1509 = vdwg.mxu0
    %1510 = vmatprep.subr.mxu0 0.0
    %v1511 = vand.u32 %v88, 4294901760
    %1512 = vmatpush1.msra.mxu0 %v1511
    %1513 = vmatprep.subr.mxu0 0.0
    %v1514 = vand.u32 %v89, 4294901760
    %1515 = vmatpush1.msra.mxu0 %v1514
    %1516 = vmatprep.subr.mxu0 0.0
    %v1517 = vand.u32 %v90, 4294901760
    %1518 = vmatpush1.msra.mxu0 %v1517
    %1519 = vmatprep.subr.mxu0 0.0
    %v1520 = vand.u32 %v91, 4294901760
    %1521 = vmatpush1.msra.mxu0 %v1520
    %1522 = vmatprep.subr.mxu0 0.0
    %v1523 = vand.u32 %v92, 4294901760
    %1524 = vmatpush1.msra.mxu0 %v1523
    %1525 = vmatprep.subr.mxu0 0.0
    %v1526 = vand.u32 %v93, 4294901760
    %1527 = vmatpush1.msra.mxu0 %v1526
    %1528 = vmatprep.subr.mxu0 0.0
    %v1529 = vand.u32 %v94, 4294901760
    %1530 = vmatpush1.msra.mxu0 %v1529
    %1531 = vmatprep.subr.mxu0 0.0
    %v1532 = vand.u32 %v95, 4294901760
    %1533 = vmatpush1.msra.mxu0 %v1532
    %1534 = vmatprep.subr.mxu0 0.0
    %v1535 = vand.u32 %v96, 4294901760
    %1536 = vmatpush1.msra.mxu0 %v1535
    %1537 = vmatprep.subr.mxu0 0.0
    %v1538 = vand.u32 %v97, 4294901760
    %1539 = vmatpush1.msra.mxu0 %v1538
    %1540 = vmatprep.subr.mxu0 0.0
    %v1541 = vand.u32 %v98, 4294901760
    %1542 = vmatpush1.msra.mxu0 %v1541
    %1543 = vmatprep.subr.mxu0 0.0
    %v1544 = vand.u32 %v99, 4294901760
    %1545 = vmatpush1.msra.mxu0 %v1544
    %1546 = vmatprep.subr.mxu0 0.0
    %v1547 = vand.u32 %v100, 4294901760
    %1548 = vmatpush1.msra.mxu0 %v1547
    %1549 = vmatprep.subr.mxu0 0.0
    %v1550 = vand.u32 %v101, 4294901760
    %1551 = vmatpush1.msra.mxu0 %v1550
    %1552 = vmatprep.subr.mxu0 0.0
    %v1553 = vand.u32 %v102, 4294901760
    %1554 = vmatpush1.msra.mxu0 %v1553
    %1555 = vmatprep.subr.mxu0 0.0
    %v1556 = vand.u32 %v103, 4294901760
    %1557 = vmatpush1.msra.mxu0 %v1556
    %1558 = vmatprep.subr.mxu0 0.0
    %1559 = vmatpush1.msra.mxu0 0.0
    %1560 = vmatprep.subr.mxu0 0.0
    %1561 = vmatpush1.msra.mxu0 0.0
    %1562 = vmatprep.subr.mxu0 0.0
    %1563 = vmatpush1.msra.mxu0 0.0
    %1564 = vmatprep.subr.mxu0 0.0
    %1565 = vmatpush1.msra.mxu0 0.0
    %1566 = vmatprep.subr.mxu0 0.0
    %1567 = vmatpush1.msra.mxu0 0.0
    %1568 = vmatprep.subr.mxu0 0.0
    %1569 = vmatpush1.msra.mxu0 0.0
    %1570 = vmatprep.subr.mxu0 0.0
    %1571 = vmatpush1.msra.mxu0 0.0
    %1572 = vmatprep.subr.mxu0 0.0
    %1573 = vmatpush1.msra.mxu0 0.0
    %1574 = vmatprep.subr.mxu0 0.0
    %1575 = vmatpush1.msra.mxu0 0.0
    %1576 = vmatprep.subr.mxu0 0.0
    %1577 = vmatpush1.msra.mxu0 0.0
    %1578 = vmatprep.subr.mxu0 0.0
    %1579 = vmatpush1.msra.mxu0 0.0
    %1580 = vmatprep.subr.mxu0 0.0
    %1581 = vmatpush1.msra.mxu0 0.0
    %1582 = vmatprep.subr.mxu0 0.0
    %1583 = vmatpush1.msra.mxu0 0.0
    %1584 = vmatprep.subr.mxu0 0.0
    %1585 = vmatpush1.msra.mxu0 0.0
    %1586 = vmatprep.subr.mxu0 0.0
    %1587 = vmatpush1.msra.mxu0 0.0
    %1588 = vmatprep.subr.mxu0 0.0
    %1589 = vmatpush1.msra.mxu0 0.0
    %1590 = vmatprep.mubr.f32.mxu0 0.0
    %v1591 = vand.u32 %v1163, 4294901760
    %v1592 = vsub.f32 %v1163, %v1591
    %v1593 = vand.u32 %v1592, 4294901760
    %1594 = vmatmul.mubr.f32.gmra.mrb[0].mxu0 %v1593
    %v1595 = vpop.f32.mrb[0].mxu0
    %v1596 = vadd.f32 %v1507, %v1595
    %v1597 = vpop.f32.mrb[0].mxu0
    %1598 = vdwg.mxu0
    %1599 = vmatprep.subr.mxu0 0.0
    %v1600 = vand.u32 %v88, 4294901760
    %v1601 = vsub.f32 %v88, %v1600
    %v1602 = vand.u32 %v1601, 4294901760
    %1603 = vmatpush1.msra.mxu0 %v1602
    %1604 = vmatprep.subr.mxu0 0.0
    %v1605 = vand.u32 %v89, 4294901760
    %v1606 = vsub.f32 %v89, %v1605
    %v1607 = vand.u32 %v1606, 4294901760
    %1608 = vmatpush1.msra.mxu0 %v1607
    %1609 = vmatprep.subr.mxu0 0.0
    %v1610 = vand.u32 %v90, 4294901760
    %v1611 = vsub.f32 %v90, %v1610
    %v1612 = vand.u32 %v1611, 4294901760
    %1613 = vmatpush1.msra.mxu0 %v1612
    %1614 = vmatprep.subr.mxu0 0.0
    %v1615 = vand.u32 %v91, 4294901760
    %v1616 = vsub.f32 %v91, %v1615
    %v1617 = vand.u32 %v1616, 4294901760
    %1618 = vmatpush1.msra.mxu0 %v1617
    %1619 = vmatprep.subr.mxu0 0.0
    %v1620 = vand.u32 %v92, 4294901760
    %v1621 = vsub.f32 %v92, %v1620
    %v1622 = vand.u32 %v1621, 4294901760
    %1623 = vmatpush1.msra.mxu0 %v1622
    %1624 = vmatprep.subr.mxu0 0.0
    %v1625 = vand.u32 %v93, 4294901760
    %v1626 = vsub.f32 %v93, %v1625
    %v1627 = vand.u32 %v1626, 4294901760
    %1628 = vmatpush1.msra.mxu0 %v1627
    %1629 = vmatprep.subr.mxu0 0.0
    %v1630 = vand.u32 %v94, 4294901760
    %v1631 = vsub.f32 %v94, %v1630
    %v1632 = vand.u32 %v1631, 4294901760
    %1633 = vmatpush1.msra.mxu0 %v1632
    %1634 = vmatprep.subr.mxu0 0.0
    %v1635 = vand.u32 %v95, 4294901760
    %v1636 = vsub.f32 %v95, %v1635
    %v1637 = vand.u32 %v1636, 4294901760
    %1638 = vmatpush1.msra.mxu0 %v1637
    %1639 = vmatprep.subr.mxu0 0.0
    %v1640 = vand.u32 %v96, 4294901760
    %v1641 = vsub.f32 %v96, %v1640
    %v1642 = vand.u32 %v1641, 4294901760
    %1643 = vmatpush1.msra.mxu0 %v1642
    %1644 = vmatprep.subr.mxu0 0.0
    %v1645 = vand.u32 %v97, 4294901760
    %v1646 = vsub.f32 %v97, %v1645
    %v1647 = vand.u32 %v1646, 4294901760
    %1648 = vmatpush1.msra.mxu0 %v1647
    %1649 = vmatprep.subr.mxu0 0.0
    %v1650 = vand.u32 %v98, 4294901760
    %v1651 = vsub.f32 %v98, %v1650
    %v1652 = vand.u32 %v1651, 4294901760
    %1653 = vmatpush1.msra.mxu0 %v1652
    %1654 = vmatprep.subr.mxu0 0.0
    %v1655 = vand.u32 %v99, 4294901760
    %v1656 = vsub.f32 %v99, %v1655
    %v1657 = vand.u32 %v1656, 4294901760
    %1658 = vmatpush1.msra.mxu0 %v1657
    %1659 = vmatprep.subr.mxu0 0.0
    %v1660 = vand.u32 %v100, 4294901760
    %v1661 = vsub.f32 %v100, %v1660
    %v1662 = vand.u32 %v1661, 4294901760
    %1663 = vmatpush1.msra.mxu0 %v1662
    %1664 = vmatprep.subr.mxu0 0.0
    %v1665 = vand.u32 %v101, 4294901760
    %v1666 = vsub.f32 %v101, %v1665
    %v1667 = vand.u32 %v1666, 4294901760
    %1668 = vmatpush1.msra.mxu0 %v1667
    %1669 = vmatprep.subr.mxu0 0.0
    %v1670 = vand.u32 %v102, 4294901760
    %v1671 = vsub.f32 %v102, %v1670
    %v1672 = vand.u32 %v1671, 4294901760
    %1673 = vmatpush1.msra.mxu0 %v1672
    %1674 = vmatprep.subr.mxu0 0.0
    %v1675 = vand.u32 %v103, 4294901760
    %v1676 = vsub.f32 %v103, %v1675
    %v1677 = vand.u32 %v1676, 4294901760
    %1678 = vmatpush1.msra.mxu0 %v1677
    %1679 = vmatprep.subr.mxu0 0.0
    %1680 = vmatpush1.msra.mxu0 0.0
    %1681 = vmatprep.subr.mxu0 0.0
    %1682 = vmatpush1.msra.mxu0 0.0
    %1683 = vmatprep.subr.mxu0 0.0
    %1684 = vmatpush1.msra.mxu0 0.0
    %1685 = vmatprep.subr.mxu0 0.0
    %1686 = vmatpush1.msra.mxu0 0.0
    %1687 = vmatprep.subr.mxu0 0.0
    %1688 = vmatpush1.msra.mxu0 0.0
    %1689 = vmatprep.subr.mxu0 0.0
    %1690 = vmatpush1.msra.mxu0 0.0
    %1691 = vmatprep.subr.mxu0 0.0
    %1692 = vmatpush1.msra.mxu0 0.0
    %1693 = vmatprep.subr.mxu0 0.0
    %1694 = vmatpush1.msra.mxu0 0.0
    %1695 = vmatprep.subr.mxu0 0.0
    %1696 = vmatpush1.msra.mxu0 0.0
    %1697 = vmatprep.subr.mxu0 0.0
    %1698 = vmatpush1.msra.mxu0 0.0
    %1699 = vmatprep.subr.mxu0 0.0
    %1700 = vmatpush1.msra.mxu0 0.0
    %1701 = vmatprep.subr.mxu0 0.0
    %1702 = vmatpush1.msra.mxu0 0.0
    %1703 = vmatprep.subr.mxu0 0.0
    %1704 = vmatpush1.msra.mxu0 0.0
    %1705 = vmatprep.subr.mxu0 0.0
    %1706 = vmatpush1.msra.mxu0 0.0
    %1707 = vmatprep.subr.mxu0 0.0
    %1708 = vmatpush1.msra.mxu0 0.0
    %1709 = vmatprep.subr.mxu0 0.0
    %1710 = vmatpush1.msra.mxu0 0.0
    %1711 = vmatprep.mubr.f32.mxu0 0.0
    %v1712 = vand.u32 %v1163, 4294901760
    %1713 = vmatmul.mubr.f32.gmra.mrb[0].mxu0 %v1712
    %v1714 = vpop.f32.mrb[0].mxu0
    %v1715 = vadd.f32 %v1596, %v1714
    %v1716 = vpop.f32.mrb[0].mxu0
    %1717 = vdwg.mxu0
    %1718 = vmatprep.subr.mxu0 0.0
    %v1719 = vand.u32 %v88, 4294901760
    %1720 = vmatpush1.msra.mxu0 %v1719
    %1721 = vmatprep.subr.mxu0 0.0
    %v1722 = vand.u32 %v89, 4294901760
    %1723 = vmatpush1.msra.mxu0 %v1722
    %1724 = vmatprep.subr.mxu0 0.0
    %v1725 = vand.u32 %v90, 4294901760
    %1726 = vmatpush1.msra.mxu0 %v1725
    %1727 = vmatprep.subr.mxu0 0.0
    %v1728 = vand.u32 %v91, 4294901760
    %1729 = vmatpush1.msra.mxu0 %v1728
    %1730 = vmatprep.subr.mxu0 0.0
    %v1731 = vand.u32 %v92, 4294901760
    %1732 = vmatpush1.msra.mxu0 %v1731
    %1733 = vmatprep.subr.mxu0 0.0
    %v1734 = vand.u32 %v93, 4294901760
    %1735 = vmatpush1.msra.mxu0 %v1734
    %1736 = vmatprep.subr.mxu0 0.0
    %v1737 = vand.u32 %v94, 4294901760
    %1738 = vmatpush1.msra.mxu0 %v1737
    %1739 = vmatprep.subr.mxu0 0.0
    %v1740 = vand.u32 %v95, 4294901760
    %1741 = vmatpush1.msra.mxu0 %v1740
    %1742 = vmatprep.subr.mxu0 0.0
    %v1743 = vand.u32 %v96, 4294901760
    %1744 = vmatpush1.msra.mxu0 %v1743
    %1745 = vmatprep.subr.mxu0 0.0
    %v1746 = vand.u32 %v97, 4294901760
    %1747 = vmatpush1.msra.mxu0 %v1746
    %1748 = vmatprep.subr.mxu0 0.0
    %v1749 = vand.u32 %v98, 4294901760
    %1750 = vmatpush1.msra.mxu0 %v1749
    %1751 = vmatprep.subr.mxu0 0.0
    %v1752 = vand.u32 %v99, 4294901760
    %1753 = vmatpush1.msra.mxu0 %v1752
    %1754 = vmatprep.subr.mxu0 0.0
    %v1755 = vand.u32 %v100, 4294901760
    %1756 = vmatpush1.msra.mxu0 %v1755
    %1757 = vmatprep.subr.mxu0 0.0
    %v1758 = vand.u32 %v101, 4294901760
    %1759 = vmatpush1.msra.mxu0 %v1758
    %1760 = vmatprep.subr.mxu0 0.0
    %v1761 = vand.u32 %v102, 4294901760
    %1762 = vmatpush1.msra.mxu0 %v1761
    %1763 = vmatprep.subr.mxu0 0.0
    %v1764 = vand.u32 %v103, 4294901760
    %1765 = vmatpush1.msra.mxu0 %v1764
    %1766 = vmatprep.subr.mxu0 0.0
    %1767 = vmatpush1.msra.mxu0 0.0
    %1768 = vmatprep.subr.mxu0 0.0
    %1769 = vmatpush1.msra.mxu0 0.0
    %1770 = vmatprep.subr.mxu0 0.0
    %1771 = vmatpush1.msra.mxu0 0.0
    %1772 = vmatprep.subr.mxu0 0.0
    %1773 = vmatpush1.msra.mxu0 0.0
    %1774 = vmatprep.subr.mxu0 0.0
    %1775 = vmatpush1.msra.mxu0 0.0
    %1776 = vmatprep.subr.mxu0 0.0
    %1777 = vmatpush1.msra.mxu0 0.0
    %1778 = vmatprep.subr.mxu0 0.0
    %1779 = vmatpush1.msra.mxu0 0.0
    %1780 = vmatprep.subr.mxu0 0.0
    %1781 = vmatpush1.msra.mxu0 0.0
    %1782 = vmatprep.subr.mxu0 0.0
    %1783 = vmatpush1.msra.mxu0 0.0
    %1784 = vmatprep.subr.mxu0 0.0
    %1785 = vmatpush1.msra.mxu0 0.0
    %1786 = vmatprep.subr.mxu0 0.0
    %1787 = vmatpush1.msra.mxu0 0.0
    %1788 = vmatprep.subr.mxu0 0.0
    %1789 = vmatpush1.msra.mxu0 0.0
    %1790 = vmatprep.subr.mxu0 0.0
    %1791 = vmatpush1.msra.mxu0 0.0
    %1792 = vmatprep.subr.mxu0 0.0
    %1793 = vmatpush1.msra.mxu0 0.0
    %1794 = vmatprep.subr.mxu0 0.0
    %1795 = vmatpush1.msra.mxu0 0.0
    %1796 = vmatprep.subr.mxu0 0.0
    %1797 = vmatpush1.msra.mxu0 0.0
    %1798 = vmatprep.mubr.f32.mxu0 0.0
    %v1799 = vand.u32 %v1163, 4294901760
    %1800 = vmatmul.mubr.f32.gmra.mrb[0].mxu0 %v1799
    %v1801 = vpop.f32.mrb[0].mxu0
    %v1802 = vadd.f32 %v1715, %v1801
    %v1803 = vpop.f32.mrb[0].mxu0
    %1804 = vdwg.mxu0
    %v1805 = vmul.f32 %v1802, 0.001953125
    %v1806 = vmul.f32 %v1805, %v1805
    %v1808 = vrot.slane %v1806, 7
    %v1810 = vsub.f32 %v1805, %v1808
    %v1811 = vadd.f32 %v1810, 1e-05
    %v1812 = vrsqrt.pop %v1811
    %v1815 = vunpack.c.l.s4 1966171168
    %v1816 = vunpack.c.0.s8 %v1815
    %v1817 = vlaneseq
    %v1818 = vshrl.u32 %v1817, 7
    %v1819 = vsub.s32 %v1816, %v1818
    %v1820 = vrot.slane %v1812, %v1819
    %v1821 = vcombine.high %v1820, %v1820
    %v1823 = vunpack.c.l.s4 1966171168
    %v1824 = vunpack.c.0.s8 %v1823
    %v1825 = vlaneseq
    %v1826 = vshrl.u32 %v1825, 7
    %v1827 = vsub.s32 %v1824, %v1826
    %v1828 = vrot.slane %v1821, %v1827
    %v1830 = vmul.f32 %v104, %v1828
    %v1831 = vmul.f32 %v1805, %v1830
    %v1832 = vsub.f32 %v105, %v1831
    %v1834 = vlaneseq
    %v1835 = vshrl.u32 %v1834, 7
    %v1836 = vsub.s32 0, %v1835
    %v1837 = vrot.slane %v1830, %v1836
    %v1839 = vmul.f32 %v1117, %v1837
    %v1840 = vmul.f32 %v1124, %v1837
    %v1841 = vmul.f32 %v1131, %v1837
    %v1842 = vmul.f32 %v1138, %v1837
    %v1844 = vlaneseq
    %v1845 = vshrl.u32 %v1844, 7
    %v1846 = vsub.s32 0, %v1845
    %v1847 = vrot.slane %v1832, %v1846
    %v1849 = vadd.f32 %v1839, %v1847
    %v1850 = vadd.f32 %v1840, %v1847
    %v1851 = vadd.f32 %v1841, %v1847
    %v1852 = vadd.f32 %v1842, %v1847
    %v1853 = vmax.f32 %v1849, 0.0
    %v1854 = vmax.f32 %v1850, 0.0
    %v1855 = vmax.f32 %v1851, 0.0
    %v1856 = vmax.f32 %v1852, 0.0
    %v1857 = vld [vmem:[%s7] sm:$0xff]
    %v1858 = vld [vmem:[%s7 + $0x8] sm:$0xff]
    %v1859 = vld [vmem:[%s7 + $0x10] sm:$0xff]
    %v1860 = vld [vmem:[%s7 + $0x18] sm:$0xff]
    %v1861 = vld [vmem:[%s7 + $0x20] sm:$0xff]
    %v1862 = vld [vmem:[%s7 + $0x28] sm:$0xff]
    %v1863 = vld [vmem:[%s7 + $0x30] sm:$0xff]
    %v1864 = vld [vmem:[%s7 + $0x38] sm:$0xff]
    %v1865 = vld [vmem:[%s7 + $0x40] sm:$0xff]
    %v1866 = vld [vmem:[%s7 + $0x48] sm:$0xff]
    %v1867 = vld [vmem:[%s7 + $0x50] sm:$0xff]
    %v1868 = vld [vmem:[%s7 + $0x58] sm:$0xff]
    %v1869 = vld [vmem:[%s7 + $0x60] sm:$0xff]
    %v1870 = vld [vmem:[%s7 + $0x68] sm:$0xff]
    %v1871 = vld [vmem:[%s7 + $0x70] sm:$0xff]
    %v1872 = vld [vmem:[%s7 + $0x78] sm:$0xff]
    %v1873 = vld [vmem:[%s7 + $0x80] sm:$0xff]
    %v1874 = vld [vmem:[%s7 + $0x88] sm:$0xff]
    %v1875 = vld [vmem:[%s7 + $0x90] sm:$0xff]
    %v1876 = vld [vmem:[%s7 + $0x98] sm:$0xff]
    %v1877 = vld [vmem:[%s7 + $0xa0] sm:$0xff]
    %v1878 = vld [vmem:[%s7 + $0xa8] sm:$0xff]
    %v1879 = vld [vmem:[%s7 + $0xb0] sm:$0xff]
    %v1880 = vld [vmem:[%s7 + $0xb8] sm:$0xff]
    %v1881 = vld [vmem:[%s7 + $0xc0] sm:$0xff]
    %v1882 = vld [vmem:[%s7 + $0xc8] sm:$0xff]
    %v1883 = vld [vmem:[%s7 + $0xd0] sm:$0xff]
    %v1884 = vld [vmem:[%s7 + $0xd8] sm:$0xff]
    %v1885 = vld [vmem:[%s7 + $0xe0] sm:$0xff]
    %v1886 = vld [vmem:[%s7 + $0xe8] sm:$0xff]
    %v1887 = vld [vmem:[%s7 + $0xf0] sm:$0xff]
    %v1888 = vld [vmem:[%s7 + $0xf8] sm:$0xff]
    %v1889 = vld [vmem:[%s7 + $0x100] sm:$0xff]
    %v1890 = vld [vmem:[%s7 + $0x108] sm:$0xff]
    %v1891 = vld [vmem:[%s7 + $0x110] sm:$0xff]
    %v1892 = vld [vmem:[%s7 + $0x118] sm:$0xff]
    %v1893 = vld [vmem:[%s7 + $0x120] sm:$0xff]
    %v1894 = vld [vmem:[%s7 + $0x128] sm:$0xff]
    %v1895 = vld [vmem:[%s7 + $0x130] sm:$0xff]
    %v1896 = vld [vmem:[%s7 + $0x138] sm:$0xff]
    %v1897 = vld [vmem:[%s7 + $0x140] sm:$0xff]
    %v1898 = vld [vmem:[%s7 + $0x148] sm:$0xff]
    %v1899 = vld [vmem:[%s7 + $0x150] sm:$0xff]
    %v1900 = vld [vmem:[%s7 + $0x158] sm:$0xff]
    %v1901 = vld [vmem:[%s7 + $0x160] sm:$0xff]
    %v1902 = vld [vmem:[%s7 + $0x168] sm:$0xff]
    %v1903 = vld [vmem:[%s7 + $0x170] sm:$0xff]
    %v1904 = vld [vmem:[%s7 + $0x178] sm:$0xff]
    %v1905 = vld [vmem:[%s8] sm:$0xff]
    %v1906 = vld [vmem:[%s8 + $0x8] sm:$0xff]
    %v1907 = vld [vmem:[%s8 + $0x10] sm:$0xff]
    %v1908 = vld [vmem:[%s8 + $0x18] sm:$0xff]
    %v1909 = vld [vmem:[%s8 + $0x20] sm:$0xff]
    %v1910 = vld [vmem:[%s8 + $0x28] sm:$0xff]
    %v1911 = vld [vmem:[%s8 + $0x30] sm:$0xff]
    %v1912 = vld [vmem:[%s8 + $0x38] sm:$0xff]
    %v1913 = vld [vmem:[%s8 + $0x40] sm:$0xff]
    %v1914 = vld [vmem:[%s8 + $0x48] sm:$0xff]
    %v1915 = vld [vmem:[%s8 + $0x50] sm:$0xff]
    %v1916 = vld [vmem:[%s8 + $0x58] sm:$0xff]
    %v1917 = vld [vmem:[%s8 + $0x60] sm:$0xff]
    %v1918 = vld [vmem:[%s8 + $0x68] sm:$0xff]
    %v1919 = vld [vmem:[%s8 + $0x70] sm:$0xff]
    %v1920 = vld [vmem:[%s8 + $0x78] sm:$0xff]
    %v1921 = vld [vmem:[%s9] sm:$0x1]
    %v1922 = vld [vmem:[%s10] sm:$0x1]
    %v1924 = vrot.slane %v1856, 7
    %v1929 = vrot.slane %v1853, 7
    %v1930 = vrot.slane %v1854, 7
    %v1931 = vsel %vm112, %v1929, %v1930
    %v1932 = vrot.slane %v1855, 7
    %v1933 = vsel %vm112, %v1930, %v1932
    %v1934 = vsel %vm112, %v1932, %v1924
    %v1939 = vsel %vm112, %v1924, %v1929
    %v1940 = vmul.f32 %v1939, %v127
    %v1941 = vmul.f32 %v1931, %v132
    %v1942 = vmul.f32 %v1933, %v137
    %v1943 = vmul.f32 %v1934, %v142
    %v1944 = vrot.slane %v1853, 1
    %v1945 = vrot.slane %v1854, 1
    %v1946 = vsel %vm148, %v1944, %v1945
    %v1947 = vrot.slane %v1855, 1
    %v1948 = vsel %vm148, %v1945, %v1947
    %v1949 = vrot.slane %v1856, 1
    %v1950 = vsel %vm148, %v1947, %v1949
    %v1956 = vsel %vm148, %v1949, %v1944
    %v1957 = vmul.f32 %v1946, %v165
    %v1958 = vmul.f32 %v1948, %v170
    %v1959 = vmul.f32 %v1950, %v175
    %v1960 = vmul.f32 %v1956, %v180
    %1961 = vmatprep.subr.mxu0 0.0
    %v1962 = vand.u32 %v1857, 4294901760
    %1963 = vmatpush1.msra.mxu0 %v1962
    %1964 = vmatprep.subr.mxu0 0.0
    %v1965 = vand.u32 %v1858, 4294901760
    %1966 = vmatpush1.msra.mxu0 %v1965
    %1967 = vmatprep.subr.mxu0 0.0
    %v1968 = vand.u32 %v1859, 4294901760
    %1969 = vmatpush1.msra.mxu0 %v1968
    %1970 = vmatprep.subr.mxu0 0.0
    %v1971 = vand.u32 %v1860, 4294901760
    %1972 = vmatpush1.msra.mxu0 %v1971
    %1973 = vmatprep.subr.mxu0 0.0
    %v1974 = vand.u32 %v1861, 4294901760
    %1975 = vmatpush1.msra.mxu0 %v1974
    %1976 = vmatprep.subr.mxu0 0.0
    %v1977 = vand.u32 %v1862, 4294901760
    %1978 = vmatpush1.msra.mxu0 %v1977
    %1979 = vmatprep.subr.mxu0 0.0
    %v1980 = vand.u32 %v1863, 4294901760
    %1981 = vmatpush1.msra.mxu0 %v1980
    %1982 = vmatprep.subr.mxu0 0.0
    %v1983 = vand.u32 %v1864, 4294901760
    %1984 = vmatpush1.msra.mxu0 %v1983
    %1985 = vmatprep.subr.mxu0 0.0
    %v1986 = vand.u32 %v1865, 4294901760
    %1987 = vmatpush1.msra.mxu0 %v1986
    %1988 = vmatprep.subr.mxu0 0.0
    %v1989 = vand.u32 %v1866, 4294901760
    %1990 = vmatpush1.msra.mxu0 %v1989
    %1991 = vmatprep.subr.mxu0 0.0
    %v1992 = vand.u32 %v1867, 4294901760
    %1993 = vmatpush1.msra.mxu0 %v1992
    %1994 = vmatprep.subr.mxu0 0.0
    %v1995 = vand.u32 %v1868, 4294901760
    %1996 = vmatpush1.msra.mxu0 %v1995
    %1997 = vmatprep.subr.mxu0 0.0
    %v1998 = vand.u32 %v1869, 4294901760
    %1999 = vmatpush1.msra.mxu0 %v1998
    %2000 = vmatprep.subr.mxu0 0.0
    %v2001 = vand.u32 %v1870, 4294901760
    %2002 = vmatpush1.msra.mxu0 %v2001
    %2003 = vmatprep.subr.mxu0 0.0
    %v2004 = vand.u32 %v1871, 4294901760
    %2005 = vmatpush1.msra.mxu0 %v2004
    %2006 = vmatprep.subr.mxu0 0.0
    %v2007 = vand.u32 %v1872, 4294901760
    %2008 = vmatpush1.msra.mxu0 %v2007
    %2009 = vmatprep.subr.mxu0 0.0
    %v2010 = vand.u32 %v1873, 4294901760
    %2011 = vmatpush1.msra.mxu0 %v2010
    %2012 = vmatprep.subr.mxu0 0.0
    %v2013 = vand.u32 %v1874, 4294901760
    %2014 = vmatpush1.msra.mxu0 %v2013
    %2015 = vmatprep.subr.mxu0 0.0
    %v2016 = vand.u32 %v1875, 4294901760
    %2017 = vmatpush1.msra.mxu0 %v2016
    %2018 = vmatprep.subr.mxu0 0.0
    %v2019 = vand.u32 %v1876, 4294901760
    %2020 = vmatpush1.msra.mxu0 %v2019
    %2021 = vmatprep.subr.mxu0 0.0
    %v2022 = vand.u32 %v1877, 4294901760
    %2023 = vmatpush1.msra.mxu0 %v2022
    %2024 = vmatprep.subr.mxu0 0.0
    %v2025 = vand.u32 %v1878, 4294901760
    %2026 = vmatpush1.msra.mxu0 %v2025
    %2027 = vmatprep.subr.mxu0 0.0
    %v2028 = vand.u32 %v1879, 4294901760
    %2029 = vmatpush1.msra.mxu0 %v2028
    %2030 = vmatprep.subr.mxu0 0.0
    %v2031 = vand.u32 %v1880, 4294901760
    %2032 = vmatpush1.msra.mxu0 %v2031
    %2033 = vmatprep.subr.mxu0 0.0
    %v2034 = vand.u32 %v1881, 4294901760
    %2035 = vmatpush1.msra.mxu0 %v2034
    %2036 = vmatprep.subr.mxu0 0.0
    %v2037 = vand.u32 %v1882, 4294901760
    %2038 = vmatpush1.msra.mxu0 %v2037
    %2039 = vmatprep.subr.mxu0 0.0
    %v2040 = vand.u32 %v1883, 4294901760
    %2041 = vmatpush1.msra.mxu0 %v2040
    %2042 = vmatprep.subr.mxu0 0.0
    %v2043 = vand.u32 %v1884, 4294901760
    %2044 = vmatpush1.msra.mxu0 %v2043
    %2045 = vmatprep.subr.mxu0 0.0
    %v2046 = vand.u32 %v1885, 4294901760
    %2047 = vmatpush1.msra.mxu0 %v2046
    %2048 = vmatprep.subr.mxu0 0.0
    %v2049 = vand.u32 %v1886, 4294901760
    %2050 = vmatpush1.msra.mxu0 %v2049
    %2051 = vmatprep.subr.mxu0 0.0
    %v2052 = vand.u32 %v1887, 4294901760
    %2053 = vmatpush1.msra.mxu0 %v2052
    %2054 = vmatprep.subr.mxu0 0.0
    %v2055 = vand.u32 %v1888, 4294901760
    %2056 = vmatpush1.msra.mxu0 %v2055
    %v2057 = vand.u32 %v1853, 4294901760
    %v2058 = vsub.f32 %v1853, %v2057
    %v2059 = vand.u32 %v2058, 4294901760
    %v2060 = vsub.f32 %v2058, %v2059
    %v2061 = vand.u32 %v2060, 4294901760
    %2062 = vmatprep.mubr.f32.mxu0 %v2061
    %v2063 = vand.u32 %v1940, 4294901760
    %v2064 = vsub.f32 %v1940, %v2063
    %v2065 = vand.u32 %v2064, 4294901760
    %v2066 = vsub.f32 %v2064, %v2065
    %v2067 = vand.u32 %v2066, 4294901760
    %2068 = vmatmul.mubr.f32.gmra.mrb[0].mxu0 %v2067
    %v2069 = vpop.f32.mrb[0].mxu0
    %v2070 = vadd.f32 0.0, %v2069
    %v2071 = vpop.f32.mrb[0].mxu0
    %v2072 = vand.u32 %v1854, 4294901760
    %v2073 = vsub.f32 %v1854, %v2072
    %v2074 = vand.u32 %v2073, 4294901760
    %v2075 = vsub.f32 %v2073, %v2074
    %v2076 = vand.u32 %v2075, 4294901760
    %2077 = vmatprep.mubr.f32.mxu0 %v2076
    %v2078 = vand.u32 %v1941, 4294901760
    %v2079 = vsub.f32 %v1941, %v2078
    %v2080 = vand.u32 %v2079, 4294901760
    %v2081 = vsub.f32 %v2079, %v2080
    %v2082 = vand.u32 %v2081, 4294901760
    %2083 = vmatmul.mubr.f32.gmra.mrb[0].mxu0 %v2082
    %v2084 = vpop.f32.mrb[0].mxu0
    %v2085 = vadd.f32 0.0, %v2084
    %v2086 = vpop.f32.mrb[0].mxu0
    %v2087 = vand.u32 %v1855, 4294901760
    %v2088 = vsub.f32 %v1855, %v2087
    %v2089 = vand.u32 %v2088, 4294901760
    %v2090 = vsub.f32 %v2088, %v2089
    %v2091 = vand.u32 %v2090, 4294901760
    %2092 = vmatprep.mubr.f32.mxu0 %v2091
    %v2093 = vand.u32 %v1942, 4294901760
    %v2094 = vsub.f32 %v1942, %v2093
    %v2095 = vand.u32 %v2094, 4294901760
    %v2096 = vsub.f32 %v2094, %v2095
    %v2097 = vand.u32 %v2096, 4294901760
    %2098 = vmatmul.mubr.f32.gmra.mrb[0].mxu0 %v2097
    %v2099 = vpop.f32.mrb[0].mxu0
    %v2100 = vadd.f32 0.0, %v2099
    %v2101 = vpop.f32.mrb[0].mxu0
    %v2102 = vand.u32 %v1856, 4294901760
    %v2103 = vsub.f32 %v1856, %v2102
    %v2104 = vand.u32 %v2103, 4294901760
    %v2105 = vsub.f32 %v2103, %v2104
    %v2106 = vand.u32 %v2105, 4294901760
    %2107 = vmatprep.mubr.f32.mxu0 %v2106
    %v2108 = vand.u32 %v1943, 4294901760
    %v2109 = vsub.f32 %v1943, %v2108
    %v2110 = vand.u32 %v2109, 4294901760
    %v2111 = vsub.f32 %v2109, %v2110
    %v2112 = vand.u32 %v2111, 4294901760
    %2113 = vmatmul.mubr.f32.gmra.mrb[0].mxu0 %v2112
    %v2114 = vpop.f32.mrb[0].mxu0
    %v2115 = vadd.f32 0.0, %v2114
    %v2116 = vpop.f32.mrb[0].mxu0
    %2117 = vdwg.mxu0
    %2118 = vmatprep.subr.mxu0 0.0
    %v2119 = vand.u32 %v1857, 4294901760
    %v2120 = vsub.f32 %v1857, %v2119
    %v2121 = vand.u32 %v2120, 4294901760
    %v2122 = vsub.f32 %v2120, %v2121
    %v2123 = vand.u32 %v2122, 4294901760
    %2124 = vmatpush1.msra.mxu0 %v2123
    %2125 = vmatprep.subr.mxu0 0.0
    %v2126 = vand.u32 %v1858, 4294901760
    %v2127 = vsub.f32 %v1858, %v2126
    %v2128 = vand.u32 %v2127, 4294901760
    %v2129 = vsub.f32 %v2127, %v2128
    %v2130 = vand.u32 %v2129, 4294901760
    %2131 = vmatpush1.msra.mxu0 %v2130
    %2132 = vmatprep.subr.mxu0 0.0
    %v2133 = vand.u32 %v1859, 4294901760
    %v2134 = vsub.f32 %v1859, %v2133
    %v2135 = vand.u32 %v2134, 4294901760
    %v2136 = vsub.f32 %v2134, %v2135
    %v2137 = vand.u32 %v2136, 4294901760
    %2138 = vmatpush1.msra.mxu0 %v2137
    %2139 = vmatprep.subr.mxu0 0.0
    %v2140 = vand.u32 %v1860, 4294901760
    %v2141 = vsub.f32 %v1860, %v2140
    %v2142 = vand.u32 %v2141, 4294901760
    %v2143 = vsub.f32 %v2141, %v2142
    %v2144 = vand.u32 %v2143, 4294901760
    %2145 = vmatpush1.msra.mxu0 %v2144
    %2146 = vmatprep.subr.mxu0 0.0
    %v2147 = vand.u32 %v1861, 4294901760
    %v2148 = vsub.f32 %v1861, %v2147
    %v2149 = vand.u32 %v2148, 4294901760
    %v2150 = vsub.f32 %v2148, %v2149
    %v2151 = vand.u32 %v2150, 4294901760
    %2152 = vmatpush1.msra.mxu0 %v2151
    %2153 = vmatprep.subr.mxu0 0.0
    %v2154 = vand.u32 %v1862, 4294901760
    %v2155 = vsub.f32 %v1862, %v2154
    %v2156 = vand.u32 %v2155, 4294901760
    %v2157 = vsub.f32 %v2155, %v2156
    %v2158 = vand.u32 %v2157, 4294901760
    %2159 = vmatpush1.msra.mxu0 %v2158
    %2160 = vmatprep.subr.mxu0 0.0
    %v2161 = vand.u32 %v1863, 4294901760
    %v2162 = vsub.f32 %v1863, %v2161
    %v2163 = vand.u32 %v2162, 4294901760
    %v2164 = vsub.f32 %v2162, %v2163
    %v2165 = vand.u32 %v2164, 4294901760
    %2166 = vmatpush1.msra.mxu0 %v2165
    %2167 = vmatprep.subr.mxu0 0.0
    %v2168 = vand.u32 %v1864, 4294901760
    %v2169 = vsub.f32 %v1864, %v2168
    %v2170 = vand.u32 %v2169, 4294901760
    %v2171 = vsub.f32 %v2169, %v2170
    %v2172 = vand.u32 %v2171, 4294901760
    %2173 = vmatpush1.msra.mxu0 %v2172
    %2174 = vmatprep.subr.mxu0 0.0
    %v2175 = vand.u32 %v1865, 4294901760
    %v2176 = vsub.f32 %v1865, %v2175
    %v2177 = vand.u32 %v2176, 4294901760
    %v2178 = vsub.f32 %v2176, %v2177
    %v2179 = vand.u32 %v2178, 4294901760
    %2180 = vmatpush1.msra.mxu0 %v2179
    %2181 = vmatprep.subr.mxu0 0.0
    %v2182 = vand.u32 %v1866, 4294901760
    %v2183 = vsub.f32 %v1866, %v2182
    %v2184 = vand.u32 %v2183, 4294901760
    %v2185 = vsub.f32 %v2183, %v2184
    %v2186 = vand.u32 %v2185, 4294901760
    %2187 = vmatpush1.msra.mxu0 %v2186
    %2188 = vmatprep.subr.mxu0 0.0
    %v2189 = vand.u32 %v1867, 4294901760
    %v2190 = vsub.f32 %v1867, %v2189
    %v2191 = vand.u32 %v2190, 4294901760
    %v2192 = vsub.f32 %v2190, %v2191
    %v2193 = vand.u32 %v2192, 4294901760
    %2194 = vmatpush1.msra.mxu0 %v2193
    %2195 = vmatprep.subr.mxu0 0.0
    %v2196 = vand.u32 %v1868, 4294901760
    %v2197 = vsub.f32 %v1868, %v2196
    %v2198 = vand.u32 %v2197, 4294901760
    %v2199 = vsub.f32 %v2197, %v2198
    %v2200 = vand.u32 %v2199, 4294901760
    %2201 = vmatpush1.msra.mxu0 %v2200
    %2202 = vmatprep.subr.mxu0 0.0
    %v2203 = vand.u32 %v1869, 4294901760
    %v2204 = vsub.f32 %v1869, %v2203
    %v2205 = vand.u32 %v2204, 4294901760
    %v2206 = vsub.f32 %v2204, %v2205
    %v2207 = vand.u32 %v2206, 4294901760
    %2208 = vmatpush1.msra.mxu0 %v2207
    %2209 = vmatprep.subr.mxu0 0.0
    %v2210 = vand.u32 %v1870, 4294901760
    %v2211 = vsub.f32 %v1870, %v2210
    %v2212 = vand.u32 %v2211, 4294901760
    %v2213 = vsub.f32 %v2211, %v2212
    %v2214 = vand.u32 %v2213, 4294901760
    %2215 = vmatpush1.msra.mxu0 %v2214
    %2216 = vmatprep.subr.mxu0 0.0
    %v2217 = vand.u32 %v1871, 4294901760
    %v2218 = vsub.f32 %v1871, %v2217
    %v2219 = vand.u32 %v2218, 4294901760
    %v2220 = vsub.f32 %v2218, %v2219
    %v2221 = vand.u32 %v2220, 4294901760
    %2222 = vmatpush1.msra.mxu0 %v2221
    %2223 = vmatprep.subr.mxu0 0.0
    %v2224 = vand.u32 %v1872, 4294901760
    %v2225 = vsub.f32 %v1872, %v2224
    %v2226 = vand.u32 %v2225, 4294901760
    %v2227 = vsub.f32 %v2225, %v2226
    %v2228 = vand.u32 %v2227, 4294901760
    %2229 = vmatpush1.msra.mxu0 %v2228
    %2230 = vmatprep.subr.mxu0 0.0
    %v2231 = vand.u32 %v1873, 4294901760
    %v2232 = vsub.f32 %v1873, %v2231
    %v2233 = vand.u32 %v2232, 4294901760
    %v2234 = vsub.f32 %v2232, %v2233
    %v2235 = vand.u32 %v2234, 4294901760
    %2236 = vmatpush1.msra.mxu0 %v2235
    %2237 = vmatprep.subr.mxu0 0.0
    %v2238 = vand.u32 %v1874, 4294901760
    %v2239 = vsub.f32 %v1874, %v2238
    %v2240 = vand.u32 %v2239, 4294901760
    %v2241 = vsub.f32 %v2239, %v2240
    %v2242 = vand.u32 %v2241, 4294901760
    %2243 = vmatpush1.msra.mxu0 %v2242
    %2244 = vmatprep.subr.mxu0 0.0
    %v2245 = vand.u32 %v1875, 4294901760
    %v2246 = vsub.f32 %v1875, %v2245
    %v2247 = vand.u32 %v2246, 4294901760
    %v2248 = vsub.f32 %v2246, %v2247
    %v2249 = vand.u32 %v2248, 4294901760
    %2250 = vmatpush1.msra.mxu0 %v2249
    %2251 = vmatprep.subr.mxu0 0.0
    %v2252 = vand.u32 %v1876, 4294901760
    %v2253 = vsub.f32 %v1876, %v2252
    %v2254 = vand.u32 %v2253, 4294901760
    %v2255 = vsub.f32 %v2253, %v2254
    %v2256 = vand.u32 %v2255, 4294901760
    %2257 = vmatpush1.msra.mxu0 %v2256
    %2258 = vmatprep.subr.mxu0 0.0
    %v2259 = vand.u32 %v1877, 4294901760
    %v2260 = vsub.f32 %v1877, %v2259
    %v2261 = vand.u32 %v2260, 4294901760
    %v2262 = vsub.f32 %v2260, %v2261
    %v2263 = vand.u32 %v2262, 4294901760
    %2264 = vmatpush1.msra.mxu0 %v2263
    %2265 = vmatprep.subr.mxu0 0.0
    %v2266 = vand.u32 %v1878, 4294901760
    %v2267 = vsub.f32 %v1878, %v2266
    %v2268 = vand.u32 %v2267, 4294901760
    %v2269 = vsub.f32 %v2267, %v2268
    %v2270 = vand.u32 %v2269, 4294901760
    %2271 = vmatpush1.msra.mxu0 %v2270
    %2272 = vmatprep.subr.mxu0 0.0
    %v2273 = vand.u32 %v1879, 4294901760
    %v2274 = vsub.f32 %v1879, %v2273
    %v2275 = vand.u32 %v2274, 4294901760
    %v2276 = vsub.f32 %v2274, %v2275
    %v2277 = vand.u32 %v2276, 4294901760
    %2278 = vmatpush1.msra.mxu0 %v2277
    %2279 = vmatprep.subr.mxu0 0.0
    %v2280 = vand.u32 %v1880, 4294901760
    %v2281 = vsub.f32 %v1880, %v2280
    %v2282 = vand.u32 %v2281, 4294901760
    %v2283 = vsub.f32 %v2281, %v2282
    %v2284 = vand.u32 %v2283, 4294901760
    %2285 = vmatpush1.msra.mxu0 %v2284
    %2286 = vmatprep.subr.mxu0 0.0
    %v2287 = vand.u32 %v1881, 4294901760
    %v2288 = vsub.f32 %v1881, %v2287
    %v2289 = vand.u32 %v2288, 4294901760
    %v2290 = vsub.f32 %v2288, %v2289
    %v2291 = vand.u32 %v2290, 4294901760
    %2292 = vmatpush1.msra.mxu0 %v2291
    %2293 = vmatprep.subr.mxu0 0.0
    %v2294 = vand.u32 %v1882, 4294901760
    %v2295 = vsub.f32 %v1882, %v2294
    %v2296 = vand.u32 %v2295, 4294901760
    %v2297 = vsub.f32 %v2295, %v2296
    %v2298 = vand.u32 %v2297, 4294901760
    %2299 = vmatpush1.msra.mxu0 %v2298
    %2300 = vmatprep.subr.mxu0 0.0
    %v2301 = vand.u32 %v1883, 4294901760
    %v2302 = vsub.f32 %v1883, %v2301
    %v2303 = vand.u32 %v2302, 4294901760
    %v2304 = vsub.f32 %v2302, %v2303
    %v2305 = vand.u32 %v2304, 4294901760
    %2306 = vmatpush1.msra.mxu0 %v2305
    %2307 = vmatprep.subr.mxu0 0.0
    %v2308 = vand.u32 %v1884, 4294901760
    %v2309 = vsub.f32 %v1884, %v2308
    %v2310 = vand.u32 %v2309, 4294901760
    %v2311 = vsub.f32 %v2309, %v2310
    %v2312 = vand.u32 %v2311, 4294901760
    %2313 = vmatpush1.msra.mxu0 %v2312
    %2314 = vmatprep.subr.mxu0 0.0
    %v2315 = vand.u32 %v1885, 4294901760
    %v2316 = vsub.f32 %v1885, %v2315
    %v2317 = vand.u32 %v2316, 4294901760
    %v2318 = vsub.f32 %v2316, %v2317
    %v2319 = vand.u32 %v2318, 4294901760
    %2320 = vmatpush1.msra.mxu0 %v2319
    %2321 = vmatprep.subr.mxu0 0.0
    %v2322 = vand.u32 %v1886, 4294901760
    %v2323 = vsub.f32 %v1886, %v2322
    %v2324 = vand.u32 %v2323, 4294901760
    %v2325 = vsub.f32 %v2323, %v2324
    %v2326 = vand.u32 %v2325, 4294901760
    %2327 = vmatpush1.msra.mxu0 %v2326
    %2328 = vmatprep.subr.mxu0 0.0
    %v2329 = vand.u32 %v1887, 4294901760
    %v2330 = vsub.f32 %v1887, %v2329
    %v2331 = vand.u32 %v2330, 4294901760
    %v2332 = vsub.f32 %v2330, %v2331
    %v2333 = vand.u32 %v2332, 4294901760
    %2334 = vmatpush1.msra.mxu0 %v2333
    %2335 = vmatprep.subr.mxu0 0.0
    %v2336 = vand.u32 %v1888, 4294901760
    %v2337 = vsub.f32 %v1888, %v2336
    %v2338 = vand.u32 %v2337, 4294901760
    %v2339 = vsub.f32 %v2337, %v2338
    %v2340 = vand.u32 %v2339, 4294901760
    %2341 = vmatpush1.msra.mxu0 %v2340
    %v2342 = vand.u32 %v1853, 4294901760
    %2343 = vmatprep.mubr.f32.mxu0 %v2342
    %v2344 = vand.u32 %v1940, 4294901760
    %2345 = vmatmul.mubr.f32.gmra.mrb[0].mxu0 %v2344
    %v2346 = vpop.f32.mrb[0].mxu0
    %v2347 = vadd.f32 %v2070, %v2346
    %v2348 = vpop.f32.mrb[0].mxu0
    %v2349 = vand.u32 %v1854, 4294901760
    %2350 = vmatprep.mubr.f32.mxu0 %v2349
    %v2351 = vand.u32 %v1941, 4294901760
    %2352 = vmatmul.mubr.f32.gmra.mrb[0].mxu0 %v2351
    %v2353 = vpop.f32.mrb[0].mxu0
    %v2354 = vadd.f32 %v2085, %v2353
    %v2355 = vpop.f32.mrb[0].mxu0
    %v2356 = vand.u32 %v1855, 4294901760
    %2357 = vmatprep.mubr.f32.mxu0 %v2356
    %v2358 = vand.u32 %v1942, 4294901760
    %2359 = vmatmul.mubr.f32.gmra.mrb[0].mxu0 %v2358
    %v2360 = vpop.f32.mrb[0].mxu0
    %v2361 = vadd.f32 %v2100, %v2360
    %v2362 = vpop.f32.mrb[0].mxu0
    %v2363 = vand.u32 %v1856, 4294901760
    %2364 = vmatprep.mubr.f32.mxu0 %v2363
    %v2365 = vand.u32 %v1943, 4294901760
    %2366 = vmatmul.mubr.f32.gmra.mrb[0].mxu0 %v2365
    %v2367 = vpop.f32.mrb[0].mxu0
    %v2368 = vadd.f32 %v2115, %v2367
    %v2369 = vpop.f32.mrb[0].mxu0
    %2370 = vdwg.mxu0
    %2371 = vmatprep.subr.mxu0 0.0
    %v2372 = vand.u32 %v1857, 4294901760
    %v2373 = vsub.f32 %v1857, %v2372
    %2374 = vmatpush1.msra.mxu0 %v2373
    %2375 = vmatprep.subr.mxu0 0.0
    %v2376 = vand.u32 %v1858, 4294901760
    %v2377 = vsub.f32 %v1858, %v2376
    %2378 = vmatpush1.msra.mxu0 %v2377
    %2379 = vmatprep.subr.mxu0 0.0
    %v2380 = vand.u32 %v1859, 4294901760
    %v2381 = vsub.f32 %v1859, %v2380
    %2382 = vmatpush1.msra.mxu0 %v2381
    %2383 = vmatprep.subr.mxu0 0.0
    %v2384 = vand.u32 %v1860, 4294901760
    %v2385 = vsub.f32 %v1860, %v2384
    %2386 = vmatpush1.msra.mxu0 %v2385
    %2387 = vmatprep.subr.mxu0 0.0
    %v2388 = vand.u32 %v1861, 4294901760
    %v2389 = vsub.f32 %v1861, %v2388
    %2390 = vmatpush1.msra.mxu0 %v2389
    %2391 = vmatprep.subr.mxu0 0.0
    %v2392 = vand.u32 %v1862, 4294901760
    %v2393 = vsub.f32 %v1862, %v2392
    %2394 = vmatpush1.msra.mxu0 %v2393
    %2395 = vmatprep.subr.mxu0 0.0
    %v2396 = vand.u32 %v1863, 4294901760
    %v2397 = vsub.f32 %v1863, %v2396
    %2398 = vmatpush1.msra.mxu0 %v2397
    %2399 = vmatprep.subr.mxu0 0.0
    %v2400 = vand.u32 %v1864, 4294901760
    %v2401 = vsub.f32 %v1864, %v2400
    %2402 = vmatpush1.msra.mxu0 %v2401
    %2403 = vmatprep.subr.mxu0 0.0
    %v2404 = vand.u32 %v1865, 4294901760
    %v2405 = vsub.f32 %v1865, %v2404
    %2406 = vmatpush1.msra.mxu0 %v2405
    %2407 = vmatprep.subr.mxu0 0.0
    %v2408 = vand.u32 %v1866, 4294901760
    %v2409 = vsub.f32 %v1866, %v2408
    %2410 = vmatpush1.msra.mxu0 %v2409
    %2411 = vmatprep.subr.mxu0 0.0
    %v2412 = vand.u32 %v1867, 4294901760
    %v2413 = vsub.f32 %v1867, %v2412
    %2414 = vmatpush1.msra.mxu0 %v2413
    %2415 = vmatprep.subr.mxu0 0.0
    %v2416 = vand.u32 %v1868, 4294901760
    %v2417 = vsub.f32 %v1868, %v2416
    %2418 = vmatpush1.msra.mxu0 %v2417
    %2419 = vmatprep.subr.mxu0 0.0
    %v2420 = vand.u32 %v1869, 4294901760
    %v2421 = vsub.f32 %v1869, %v2420
    %2422 = vmatpush1.msra.mxu0 %v2421
    %2423 = vmatprep.subr.mxu0 0.0
    %v2424 = vand.u32 %v1870, 4294901760
    %v2425 = vsub.f32 %v1870, %v2424
    %2426 = vmatpush1.msra.mxu0 %v2425
    %2427 = vmatprep.subr.mxu0 0.0
    %v2428 = vand.u32 %v1871, 4294901760
    %v2429 = vsub.f32 %v1871, %v2428
    %2430 = vmatpush1.msra.mxu0 %v2429
    %2431 = vmatprep.subr.mxu0 0.0
    %v2432 = vand.u32 %v1872, 4294901760
    %v2433 = vsub.f32 %v1872, %v2432
    %2434 = vmatpush1.msra.mxu0 %v2433
    %2435 = vmatprep.subr.mxu0 0.0
    %v2436 = vand.u32 %v1873, 4294901760
    %v2437 = vsub.f32 %v1873, %v2436
    %2438 = vmatpush1.msra.mxu0 %v2437
    %2439 = vmatprep.subr.mxu0 0.0
    %v2440 = vand.u32 %v1874, 4294901760
    %v2441 = vsub.f32 %v1874, %v2440
    %2442 = vmatpush1.msra.mxu0 %v2441
    %2443 = vmatprep.subr.mxu0 0.0
    %v2444 = vand.u32 %v1875, 4294901760
    %v2445 = vsub.f32 %v1875, %v2444
    %2446 = vmatpush1.msra.mxu0 %v2445
    %2447 = vmatprep.subr.mxu0 0.0
    %v2448 = vand.u32 %v1876, 4294901760
    %v2449 = vsub.f32 %v1876, %v2448
    %2450 = vmatpush1.msra.mxu0 %v2449
    %2451 = vmatprep.subr.mxu0 0.0
    %v2452 = vand.u32 %v1877, 4294901760
    %v2453 = vsub.f32 %v1877, %v2452
    %2454 = vmatpush1.msra.mxu0 %v2453
    %2455 = vmatprep.subr.mxu0 0.0
    %v2456 = vand.u32 %v1878, 4294901760
    %v2457 = vsub.f32 %v1878, %v2456
    %2458 = vmatpush1.msra.mxu0 %v2457
    %2459 = vmatprep.subr.mxu0 0.0
    %v2460 = vand.u32 %v1879, 4294901760
    %v2461 = vsub.f32 %v1879, %v2460
    %2462 = vmatpush1.msra.mxu0 %v2461
    %2463 = vmatprep.subr.mxu0 0.0
    %v2464 = vand.u32 %v1880, 4294901760
    %v2465 = vsub.f32 %v1880, %v2464
    %2466 = vmatpush1.msra.mxu0 %v2465
    %2467 = vmatprep.subr.mxu0 0.0
    %v2468 = vand.u32 %v1881, 4294901760
    %v2469 = vsub.f32 %v1881, %v2468
    %2470 = vmatpush1.msra.mxu0 %v2469
    %2471 = vmatprep.subr.mxu0 0.0
    %v2472 = vand.u32 %v1882, 4294901760
    %v2473 = vsub.f32 %v1882, %v2472
    %2474 = vmatpush1.msra.mxu0 %v2473
    %2475 = vmatprep.subr.mxu0 0.0
    %v2476 = vand.u32 %v1883, 4294901760
    %v2477 = vsub.f32 %v1883, %v2476
    %2478 = vmatpush1.msra.mxu0 %v2477
    %2479 = vmatprep.subr.mxu0 0.0
    %v2480 = vand.u32 %v1884, 4294901760
    %v2481 = vsub.f32 %v1884, %v2480
    %2482 = vmatpush1.msra.mxu0 %v2481
    %2483 = vmatprep.subr.mxu0 0.0
    %v2484 = vand.u32 %v1885, 4294901760
    %v2485 = vsub.f32 %v1885, %v2484
    %2486 = vmatpush1.msra.mxu0 %v2485
    %2487 = vmatprep.subr.mxu0 0.0
    %v2488 = vand.u32 %v1886, 4294901760
    %v2489 = vsub.f32 %v1886, %v2488
    %2490 = vmatpush1.msra.mxu0 %v2489
    %2491 = vmatprep.subr.mxu0 0.0
    %v2492 = vand.u32 %v1887, 4294901760
    %v2493 = vsub.f32 %v1887, %v2492
    %2494 = vmatpush1.msra.mxu0 %v2493
    %2495 = vmatprep.subr.mxu0 0.0
    %v2496 = vand.u32 %v1888, 4294901760
    %v2497 = vsub.f32 %v1888, %v2496
    %2498 = vmatpush1.msra.mxu0 %v2497
    %v2499 = vand.u32 %v1853, 4294901760
    %v2500 = vsub.f32 %v1853, %v2499
    %2501 = vmatprep.mubr.f32.mxu0 %v2500
    %v2502 = vand.u32 %v1940, 4294901760
    %v2503 = vsub.f32 %v1940, %v2502
    %2504 = vmatmul.mubr.f32.gmra.mrb[0].mxu0 %v2503
    %v2505 = vpop.f32.mrb[0].mxu0
    %v2506 = vadd.f32 %v2347, %v2505
    %v2507 = vpop.f32.mrb[0].mxu0
    %v2508 = vand.u32 %v1854, 4294901760
    %v2509 = vsub.f32 %v1854, %v2508
    %2510 = vmatprep.mubr.f32.mxu0 %v2509
    %v2511 = vand.u32 %v1941, 4294901760
    %v2512 = vsub.f32 %v1941, %v2511
    %2513 = vmatmul.mubr.f32.gmra.mrb[0].mxu0 %v2512
    %v2514 = vpop.f32.mrb[0].mxu0
    %v2515 = vadd.f32 %v2354, %v2514
    %v2516 = vpop.f32.mrb[0].mxu0
    %v2517 = vand.u32 %v1855, 4294901760
    %v2518 = vsub.f32 %v1855, %v2517
    %2519 = vmatprep.mubr.f32.mxu0 %v2518
    %v2520 = vand.u32 %v1942, 4294901760
    %v2521 = vsub.f32 %v1942, %v2520
    %2522 = vmatmul.mubr.f32.gmra.mrb[0].mxu0 %v2521
    %v2523 = vpop.f32.mrb[0].mxu0
    %v2524 = vadd.f32 %v2361, %v2523
    %v2525 = vpop.f32.mrb[0].mxu0
    %v2526 = vand.u32 %v1856, 4294901760
    %v2527 = vsub.f32 %v1856, %v2526
    %2528 = vmatprep.mubr.f32.mxu0 %v2527
    %v2529 = vand.u32 %v1943, 4294901760
    %v2530 = vsub.f32 %v1943, %v2529
    %2531 = vmatmul.mubr.f32.gmra.mrb[0].mxu0 %v2530
    %v2532 = vpop.f32.mrb[0].mxu0
    %v2533 = vadd.f32 %v2368, %v2532
    %v2534 = vpop.f32.mrb[0].mxu0
    %2535 = vdwg.mxu0
    %2536 = vmatprep.subr.mxu0 0.0
    %v2537 = vand.u32 %v1857, 4294901760
    %2538 = vmatpush1.msra.mxu0 %v2537
    %2539 = vmatprep.subr.mxu0 0.0
    %v2540 = vand.u32 %v1858, 4294901760
    %2541 = vmatpush1.msra.mxu0 %v2540
    %2542 = vmatprep.subr.mxu0 0.0
    %v2543 = vand.u32 %v1859, 4294901760
    %2544 = vmatpush1.msra.mxu0 %v2543
    %2545 = vmatprep.subr.mxu0 0.0
    %v2546 = vand.u32 %v1860, 4294901760
    %2547 = vmatpush1.msra.mxu0 %v2546
    %2548 = vmatprep.subr.mxu0 0.0
    %v2549 = vand.u32 %v1861, 4294901760
    %2550 = vmatpush1.msra.mxu0 %v2549
    %2551 = vmatprep.subr.mxu0 0.0
    %v2552 = vand.u32 %v1862, 4294901760
    %2553 = vmatpush1.msra.mxu0 %v2552
    %2554 = vmatprep.subr.mxu0 0.0
    %v2555 = vand.u32 %v1863, 4294901760
    %2556 = vmatpush1.msra.mxu0 %v2555
    %2557 = vmatprep.subr.mxu0 0.0
    %v2558 = vand.u32 %v1864, 4294901760
    %2559 = vmatpush1.msra.mxu0 %v2558
    %2560 = vmatprep.subr.mxu0 0.0
    %v2561 = vand.u32 %v1865, 4294901760
    %2562 = vmatpush1.msra.mxu0 %v2561
    %2563 = vmatprep.subr.mxu0 0.0
    %v2564 = vand.u32 %v1866, 4294901760
    %2565 = vmatpush1.msra.mxu0 %v2564
    %2566 = vmatprep.subr.mxu0 0.0
    %v2567 = vand.u32 %v1867, 4294901760
    %2568 = vmatpush1.msra.mxu0 %v2567
    %2569 = vmatprep.subr.mxu0 0.0
    %v2570 = vand.u32 %v1868, 4294901760
    %2571 = vmatpush1.msra.mxu0 %v2570
    %2572 = vmatprep.subr.mxu0 0.0
    %v2573 = vand.u32 %v1869, 4294901760
    %2574 = vmatpush1.msra.mxu0 %v2573
    %2575 = vmatprep.subr.mxu0 0.0
    %v2576 = vand.u32 %v1870, 4294901760
    %2577 = vmatpush1.msra.mxu0 %v2576
    %2578 = vmatprep.subr.mxu0 0.0
    %v2579 = vand.u32 %v1871, 4294901760
    %2580 = vmatpush1.msra.mxu0 %v2579
    %2581 = vmatprep.subr.mxu0 0.0
    %v2582 = vand.u32 %v1872, 4294901760
    %2583 = vmatpush1.msra.mxu0 %v2582
    %2584 = vmatprep.subr.mxu0 0.0
    %v2585 = vand.u32 %v1873, 4294901760
    %2586 = vmatpush1.msra.mxu0 %v2585
    %2587 = vmatprep.subr.mxu0 0.0
    %v2588 = vand.u32 %v1874, 4294901760
    %2589 = vmatpush1.msra.mxu0 %v2588
    %2590 = vmatprep.subr.mxu0 0.0
    %v2591 = vand.u32 %v1875, 4294901760
    %2592 = vmatpush1.msra.mxu0 %v2591
    %2593 = vmatprep.subr.mxu0 0.0
    %v2594 = vand.u32 %v1876, 4294901760
    %2595 = vmatpush1.msra.mxu0 %v2594
    %2596 = vmatprep.subr.mxu0 0.0
    %v2597 = vand.u32 %v1877, 4294901760
    %2598 = vmatpush1.msra.mxu0 %v2597
    %2599 = vmatprep.subr.mxu0 0.0
    %v2600 = vand.u32 %v1878, 4294901760
    %2601 = vmatpush1.msra.mxu0 %v2600
    %2602 = vmatprep.subr.mxu0 0.0
    %v2603 = vand.u32 %v1879, 4294901760
    %2604 = vmatpush1.msra.mxu0 %v2603
    %2605 = vmatprep.subr.mxu0 0.0
    %v2606 = vand.u32 %v1880, 4294901760
    %2607 = vmatpush1.msra.mxu0 %v2606
    %2608 = vmatprep.subr.mxu0 0.0
    %v2609 = vand.u32 %v1881, 4294901760
    %2610 = vmatpush1.msra.mxu0 %v2609
    %2611 = vmatprep.subr.mxu0 0.0
    %v2612 = vand.u32 %v1882, 4294901760
    %2613 = vmatpush1.msra.mxu0 %v2612
    %2614 = vmatprep.subr.mxu0 0.0
    %v2615 = vand.u32 %v1883, 4294901760
    %2616 = vmatpush1.msra.mxu0 %v2615
    %2617 = vmatprep.subr.mxu0 0.0
    %v2618 = vand.u32 %v1884, 4294901760
    %2619 = vmatpush1.msra.mxu0 %v2618
    %2620 = vmatprep.subr.mxu0 0.0
    %v2621 = vand.u32 %v1885, 4294901760
    %2622 = vmatpush1.msra.mxu0 %v2621
    %2623 = vmatprep.subr.mxu0 0.0
    %v2624 = vand.u32 %v1886, 4294901760
    %2625 = vmatpush1.msra.mxu0 %v2624
    %2626 = vmatprep.subr.mxu0 0.0
    %v2627 = vand.u32 %v1887, 4294901760
    %2628 = vmatpush1.msra.mxu0 %v2627
    %2629 = vmatprep.subr.mxu0 0.0
    %v2630 = vand.u32 %v1888, 4294901760
    %2631 = vmatpush1.msra.mxu0 %v2630
    %v2632 = vand.u32 %v1853, 4294901760
    %v2633 = vsub.f32 %v1853, %v2632
    %v2634 = vand.u32 %v2633, 4294901760
    %2635 = vmatprep.mubr.f32.mxu0 %v2634
    %v2636 = vand.u32 %v1940, 4294901760
    %v2637 = vsub.f32 %v1940, %v2636
    %v2638 = vand.u32 %v2637, 4294901760
    %2639 = vmatmul.mubr.f32.gmra.mrb[0].mxu0 %v2638
    %v2640 = vpop.f32.mrb[0].mxu0
    %v2641 = vadd.f32 %v2506, %v2640
    %v2642 = vpop.f32.mrb[0].mxu0
    %v2643 = vand.u32 %v1854, 4294901760
    %v2644 = vsub.f32 %v1854, %v2643
    %v2645 = vand.u32 %v2644, 4294901760
    %2646 = vmatprep.mubr.f32.mxu0 %v2645
    %v2647 = vand.u32 %v1941, 4294901760
    %v2648 = vsub.f32 %v1941, %v2647
    %v2649 = vand.u32 %v2648, 4294901760
    %2650 = vmatmul.mubr.f32.gmra.mrb[0].mxu0 %v2649
    %v2651 = vpop.f32.mrb[0].mxu0
    %v2652 = vadd.f32 %v2515, %v2651
    %v2653 = vpop.f32.mrb[0].mxu0
    %v2654 = vand.u32 %v1855, 4294901760
    %v2655 = vsub.f32 %v1855, %v2654
    %v2656 = vand.u32 %v2655, 4294901760
    %2657 = vmatprep.mubr.f32.mxu0 %v2656
    %v2658 = vand.u32 %v1942, 4294901760
    %v2659 = vsub.f32 %v1942, %v2658
    %v2660 = vand.u32 %v2659, 4294901760
    %2661 = vmatmul.mubr.f32.gmra.mrb[0].mxu0 %v2660
    %v2662 = vpop.f32.mrb[0].mxu0
    %v2663 = vadd.f32 %v2524, %v2662
    %v2664 = vpop.f32.mrb[0].mxu0
    %v2665 = vand.u32 %v1856, 4294901760
    %v2666 = vsub.f32 %v1856, %v2665
    %v2667 = vand.u32 %v2666, 4294901760
    %2668 = vmatprep.mubr.f32.mxu0 %v2667
    %v2669 = vand.u32 %v1943, 4294901760
    %v2670 = vsub.f32 %v1943, %v2669
    %v2671 = vand.u32 %v2670, 4294901760
    %2672 = vmatmul.mubr.f32.gmra.mrb[0].mxu0 %v2671
    %v2673 = vpop.f32.mrb[0].mxu0
    %v2674 = vadd.f32 %v2533, %v2673
    %v2675 = vpop.f32.mrb[0].mxu0
    %2676 = vdwg.mxu0
    %2677 = vmatprep.subr.mxu0 0.0
    %v2678 = vand.u32 %v1857, 4294901760
    %v2679 = vsub.f32 %v1857, %v2678
    %v2680 = vand.u32 %v2679, 4294901760
    %2681 = vmatpush1.msra.mxu0 %v2680
    %2682 = vmatprep.subr.mxu0 0.0
    %v2683 = vand.u32 %v1858, 4294901760
    %v2684 = vsub.f32 %v1858, %v2683
    %v2685 = vand.u32 %v2684, 4294901760
    %2686 = vmatpush1.msra.mxu0 %v2685
    %2687 = vmatprep.subr.mxu0 0.0
    %v2688 = vand.u32 %v1859, 4294901760
    %v2689 = vsub.f32 %v1859, %v2688
    %v2690 = vand.u32 %v2689, 4294901760
    %2691 = vmatpush1.msra.mxu0 %v2690
    %2692 = vmatprep.subr.mxu0 0.0
    %v2693 = vand.u32 %v1860, 4294901760
    %v2694 = vsub.f32 %v1860, %v2693
    %v2695 = vand.u32 %v2694, 4294901760
    %2696 = vmatpush1.msra.mxu0 %v2695
    %2697 = vmatprep.subr.mxu0 0.0
    %v2698 = vand.u32 %v1861, 4294901760
    %v2699 = vsub.f32 %v1861, %v2698
    %v2700 = vand.u32 %v2699, 4294901760
    %2701 = vmatpush1.msra.mxu0 %v2700
    %2702 = vmatprep.subr.mxu0 0.0
    %v2703 = vand.u32 %v1862, 4294901760
    %v2704 = vsub.f32 %v1862, %v2703
    %v2705 = vand.u32 %v2704, 4294901760
    %2706 = vmatpush1.msra.mxu0 %v2705
    %2707 = vmatprep.subr.mxu0 0.0
    %v2708 = vand.u32 %v1863, 4294901760
    %v2709 = vsub.f32 %v1863, %v2708
    %v2710 = vand.u32 %v2709, 4294901760
    %2711 = vmatpush1.msra.mxu0 %v2710
    %2712 = vmatprep.subr.mxu0 0.0
    %v2713 = vand.u32 %v1864, 4294901760
    %v2714 = vsub.f32 %v1864, %v2713
    %v2715 = vand.u32 %v2714, 4294901760
    %2716 = vmatpush1.msra.mxu0 %v2715
    %2717 = vmatprep.subr.mxu0 0.0
    %v2718 = vand.u32 %v1865, 4294901760
    %v2719 = vsub.f32 %v1865, %v2718
    %v2720 = vand.u32 %v2719, 4294901760
    %2721 = vmatpush1.msra.mxu0 %v2720
    %2722 = vmatprep.subr.mxu0 0.0
    %v2723 = vand.u32 %v1866, 4294901760
    %v2724 = vsub.f32 %v1866, %v2723
    %v2725 = vand.u32 %v2724, 4294901760
    %2726 = vmatpush1.msra.mxu0 %v2725
    %2727 = vmatprep.subr.mxu0 0.0
    %v2728 = vand.u32 %v1867, 4294901760
    %v2729 = vsub.f32 %v1867, %v2728
    %v2730 = vand.u32 %v2729, 4294901760
    %2731 = vmatpush1.msra.mxu0 %v2730
    %2732 = vmatprep.subr.mxu0 0.0
    %v2733 = vand.u32 %v1868, 4294901760
    %v2734 = vsub.f32 %v1868, %v2733
    %v2735 = vand.u32 %v2734, 4294901760
    %2736 = vmatpush1.msra.mxu0 %v2735
    %2737 = vmatprep.subr.mxu0 0.0
    %v2738 = vand.u32 %v1869, 4294901760
    %v2739 = vsub.f32 %v1869, %v2738
    %v2740 = vand.u32 %v2739, 4294901760
    %2741 = vmatpush1.msra.mxu0 %v2740
    %2742 = vmatprep.subr.mxu0 0.0
    %v2743 = vand.u32 %v1870, 4294901760
    %v2744 = vsub.f32 %v1870, %v2743
    %v2745 = vand.u32 %v2744, 4294901760
    %2746 = vmatpush1.msra.mxu0 %v2745
    %2747 = vmatprep.subr.mxu0 0.0
    %v2748 = vand.u32 %v1871, 4294901760
    %v2749 = vsub.f32 %v1871, %v2748
    %v2750 = vand.u32 %v2749, 4294901760
    %2751 = vmatpush1.msra.mxu0 %v2750
    %2752 = vmatprep.subr.mxu0 0.0
    %v2753 = vand.u32 %v1872, 4294901760
    %v2754 = vsub.f32 %v1872, %v2753
    %v2755 = vand.u32 %v2754, 4294901760
    %2756 = vmatpush1.msra.mxu0 %v2755
    %2757 = vmatprep.subr.mxu0 0.0
    %v2758 = vand.u32 %v1873, 4294901760
    %v2759 = vsub.f32 %v1873, %v2758
    %v2760 = vand.u32 %v2759, 4294901760
    %2761 = vmatpush1.msra.mxu0 %v2760
    %2762 = vmatprep.subr.mxu0 0.0
    %v2763 = vand.u32 %v1874, 4294901760
    %v2764 = vsub.f32 %v1874, %v2763
    %v2765 = vand.u32 %v2764, 4294901760
    %2766 = vmatpush1.msra.mxu0 %v2765
    %2767 = vmatprep.subr.mxu0 0.0
    %v2768 = vand.u32 %v1875, 4294901760
    %v2769 = vsub.f32 %v1875, %v2768
    %v2770 = vand.u32 %v2769, 4294901760
    %2771 = vmatpush1.msra.mxu0 %v2770
    %2772 = vmatprep.subr.mxu0 0.0
    %v2773 = vand.u32 %v1876, 4294901760
    %v2774 = vsub.f32 %v1876, %v2773
    %v2775 = vand.u32 %v2774, 4294901760
    %2776 = vmatpush1.msra.mxu0 %v2775
    %2777 = vmatprep.subr.mxu0 0.0
    %v2778 = vand.u32 %v1877, 4294901760
    %v2779 = vsub.f32 %v1877, %v2778
    %v2780 = vand.u32 %v2779, 4294901760
    %2781 = vmatpush1.msra.mxu0 %v2780
    %2782 = vmatprep.subr.mxu0 0.0
    %v2783 = vand.u32 %v1878, 4294901760
    %v2784 = vsub.f32 %v1878, %v2783
    %v2785 = vand.u32 %v2784, 4294901760
    %2786 = vmatpush1.msra.mxu0 %v2785
    %2787 = vmatprep.subr.mxu0 0.0
    %v2788 = vand.u32 %v1879, 4294901760
    %v2789 = vsub.f32 %v1879, %v2788
    %v2790 = vand.u32 %v2789, 4294901760
    %2791 = vmatpush1.msra.mxu0 %v2790
    %2792 = vmatprep.subr.mxu0 0.0
    %v2793 = vand.u32 %v1880, 4294901760
    %v2794 = vsub.f32 %v1880, %v2793
    %v2795 = vand.u32 %v2794, 4294901760
    %2796 = vmatpush1.msra.mxu0 %v2795
    %2797 = vmatprep.subr.mxu0 0.0
    %v2798 = vand.u32 %v1881, 4294901760
    %v2799 = vsub.f32 %v1881, %v2798
    %v2800 = vand.u32 %v2799, 4294901760
    %2801 = vmatpush1.msra.mxu0 %v2800
    %2802 = vmatprep.subr.mxu0 0.0
    %v2803 = vand.u32 %v1882, 4294901760
    %v2804 = vsub.f32 %v1882, %v2803
    %v2805 = vand.u32 %v2804, 4294901760
    %2806 = vmatpush1.msra.mxu0 %v2805
    %2807 = vmatprep.subr.mxu0 0.0
    %v2808 = vand.u32 %v1883, 4294901760
    %v2809 = vsub.f32 %v1883, %v2808
    %v2810 = vand.u32 %v2809, 4294901760
    %2811 = vmatpush1.msra.mxu0 %v2810
    %2812 = vmatprep.subr.mxu0 0.0
    %v2813 = vand.u32 %v1884, 4294901760
    %v2814 = vsub.f32 %v1884, %v2813
    %v2815 = vand.u32 %v2814, 4294901760
    %2816 = vmatpush1.msra.mxu0 %v2815
    %2817 = vmatprep.subr.mxu0 0.0
    %v2818 = vand.u32 %v1885, 4294901760
    %v2819 = vsub.f32 %v1885, %v2818
    %v2820 = vand.u32 %v2819, 4294901760
    %2821 = vmatpush1.msra.mxu0 %v2820
    %2822 = vmatprep.subr.mxu0 0.0
    %v2823 = vand.u32 %v1886, 4294901760
    %v2824 = vsub.f32 %v1886, %v2823
    %v2825 = vand.u32 %v2824, 4294901760
    %2826 = vmatpush1.msra.mxu0 %v2825
    %2827 = vmatprep.subr.mxu0 0.0
    %v2828 = vand.u32 %v1887, 4294901760
    %v2829 = vsub.f32 %v1887, %v2828
    %v2830 = vand.u32 %v2829, 4294901760
    %2831 = vmatpush1.msra.mxu0 %v2830
    %2832 = vmatprep.subr.mxu0 0.0
    %v2833 = vand.u32 %v1888, 4294901760
    %v2834 = vsub.f32 %v1888, %v2833
    %v2835 = vand.u32 %v2834, 4294901760
    %2836 = vmatpush1.msra.mxu0 %v2835
    %v2837 = vand.u32 %v1853, 4294901760
    %2838 = vmatprep.mubr.f32.mxu0 %v2837
    %v2839 = vand.u32 %v1940, 4294901760
    %2840 = vmatmul.mubr.f32.gmra.mrb[0].mxu0 %v2839
    %v2841 = vpop.f32.mrb[0].mxu0
    %v2842 = vadd.f32 %v2641, %v2841
    %v2843 = vpop.f32.mrb[0].mxu0
    %v2844 = vand.u32 %v1854, 4294901760
    %2845 = vmatprep.mubr.f32.mxu0 %v2844
    %v2846 = vand.u32 %v1941, 4294901760
    %2847 = vmatmul.mubr.f32.gmra.mrb[0].mxu0 %v2846
    %v2848 = vpop.f32.mrb[0].mxu0
    %v2849 = vadd.f32 %v2652, %v2848
    %v2850 = vpop.f32.mrb[0].mxu0
    %v2851 = vand.u32 %v1855, 4294901760
    %2852 = vmatprep.mubr.f32.mxu0 %v2851
    %v2853 = vand.u32 %v1942, 4294901760
    %2854 = vmatmul.mubr.f32.gmra.mrb[0].mxu0 %v2853
    %v2855 = vpop.f32.mrb[0].mxu0
    %v2856 = vadd.f32 %v2663, %v2855
    %v2857 = vpop.f32.mrb[0].mxu0
    %v2858 = vand.u32 %v1856, 4294901760
    %2859 = vmatprep.mubr.f32.mxu0 %v2858
    %v2860 = vand.u32 %v1943, 4294901760
    %2861 = vmatmul.mubr.f32.gmra.mrb[0].mxu0 %v2860
    %v2862 = vpop.f32.mrb[0].mxu0
    %v2863 = vadd.f32 %v2674, %v2862
    %v2864 = vpop.f32.mrb[0].mxu0
    %2865 = vdwg.mxu0
    %2866 = vmatprep.subr.mxu0 0.0
    %v2867 = vand.u32 %v1857, 4294901760
    %2868 = vmatpush1.msra.mxu0 %v2867
    %2869 = vmatprep.subr.mxu0 0.0
    %v2870 = vand.u32 %v1858, 4294901760
    %2871 = vmatpush1.msra.mxu0 %v2870
    %2872 = vmatprep.subr.mxu0 0.0
    %v2873 = vand.u32 %v1859, 4294901760
    %2874 = vmatpush1.msra.mxu0 %v2873
    %2875 = vmatprep.subr.mxu0 0.0
    %v2876 = vand.u32 %v1860, 4294901760
    %2877 = vmatpush1.msra.mxu0 %v2876
    %2878 = vmatprep.subr.mxu0 0.0
    %v2879 = vand.u32 %v1861, 4294901760
    %2880 = vmatpush1.msra.mxu0 %v2879
    %2881 = vmatprep.subr.mxu0 0.0
    %v2882 = vand.u32 %v1862, 4294901760
    %2883 = vmatpush1.msra.mxu0 %v2882
    %2884 = vmatprep.subr.mxu0 0.0
    %v2885 = vand.u32 %v1863, 4294901760
    %2886 = vmatpush1.msra.mxu0 %v2885
    %2887 = vmatprep.subr.mxu0 0.0
    %v2888 = vand.u32 %v1864, 4294901760
    %2889 = vmatpush1.msra.mxu0 %v2888
    %2890 = vmatprep.subr.mxu0 0.0
    %v2891 = vand.u32 %v1865, 4294901760
    %2892 = vmatpush1.msra.mxu0 %v2891
    %2893 = vmatprep.subr.mxu0 0.0
    %v2894 = vand.u32 %v1866, 4294901760
    %2895 = vmatpush1.msra.mxu0 %v2894
    %2896 = vmatprep.subr.mxu0 0.0
    %v2897 = vand.u32 %v1867, 4294901760
    %2898 = vmatpush1.msra.mxu0 %v2897
    %2899 = vmatprep.subr.mxu0 0.0
    %v2900 = vand.u32 %v1868, 4294901760
    %2901 = vmatpush1.msra.mxu0 %v2900
    %2902 = vmatprep.subr.mxu0 0.0
    %v2903 = vand.u32 %v1869, 4294901760
    %2904 = vmatpush1.msra.mxu0 %v2903
    %2905 = vmatprep.subr.mxu0 0.0
    %v2906 = vand.u32 %v1870, 4294901760
    %2907 = vmatpush1.msra.mxu0 %v2906
    %2908 = vmatprep.subr.mxu0 0.0
    %v2909 = vand.u32 %v1871, 4294901760
    %2910 = vmatpush1.msra.mxu0 %v2909
    %2911 = vmatprep.subr.mxu0 0.0
    %v2912 = vand.u32 %v1872, 4294901760
    %2913 = vmatpush1.msra.mxu0 %v2912
    %2914 = vmatprep.subr.mxu0 0.0
    %v2915 = vand.u32 %v1873, 4294901760
    %2916 = vmatpush1.msra.mxu0 %v2915
    %2917 = vmatprep.subr.mxu0 0.0
    %v2918 = vand.u32 %v1874, 4294901760
    %2919 = vmatpush1.msra.mxu0 %v2918
    %2920 = vmatprep.subr.mxu0 0.0
    %v2921 = vand.u32 %v1875, 4294901760
    %2922 = vmatpush1.msra.mxu0 %v2921
    %2923 = vmatprep.subr.mxu0 0.0
    %v2924 = vand.u32 %v1876, 4294901760
    %2925 = vmatpush1.msra.mxu0 %v2924
    %2926 = vmatprep.subr.mxu0 0.0
    %v2927 = vand.u32 %v1877, 4294901760
    %2928 = vmatpush1.msra.mxu0 %v2927
    %2929 = vmatprep.subr.mxu0 0.0
    %v2930 = vand.u32 %v1878, 4294901760
    %2931 = vmatpush1.msra.mxu0 %v2930
    %2932 = vmatprep.subr.mxu0 0.0
    %v2933 = vand.u32 %v1879, 4294901760
    %2934 = vmatpush1.msra.mxu0 %v2933
    %2935 = vmatprep.subr.mxu0 0.0
    %v2936 = vand.u32 %v1880, 4294901760
    %2937 = vmatpush1.msra.mxu0 %v2936
    %2938 = vmatprep.subr.mxu0 0.0
    %v2939 = vand.u32 %v1881, 4294901760
    %2940 = vmatpush1.msra.mxu0 %v2939
    %2941 = vmatprep.subr.mxu0 0.0
    %v2942 = vand.u32 %v1882, 4294901760
    %2943 = vmatpush1.msra.mxu0 %v2942
    %2944 = vmatprep.subr.mxu0 0.0
    %v2945 = vand.u32 %v1883, 4294901760
    %2946 = vmatpush1.msra.mxu0 %v2945
    %2947 = vmatprep.subr.mxu0 0.0
    %v2948 = vand.u32 %v1884, 4294901760
    %2949 = vmatpush1.msra.mxu0 %v2948
    %2950 = vmatprep.subr.mxu0 0.0
    %v2951 = vand.u32 %v1885, 4294901760
    %2952 = vmatpush1.msra.mxu0 %v2951
    %2953 = vmatprep.subr.mxu0 0.0
    %v2954 = vand.u32 %v1886, 4294901760
    %2955 = vmatpush1.msra.mxu0 %v2954
    %2956 = vmatprep.subr.mxu0 0.0
    %v2957 = vand.u32 %v1887, 4294901760
    %2958 = vmatpush1.msra.mxu0 %v2957
    %2959 = vmatprep.subr.mxu0 0.0
    %v2960 = vand.u32 %v1888, 4294901760
    %2961 = vmatpush1.msra.mxu0 %v2960
    %v2962 = vand.u32 %v1853, 4294901760
    %2963 = vmatprep.mubr.f32.mxu0 %v2962
    %v2964 = vand.u32 %v1940, 4294901760
    %2965 = vmatmul.mubr.f32.gmra.mrb[0].mxu0 %v2964
    %v2966 = vpop.f32.mrb[0].mxu0
    %v2967 = vadd.f32 %v2842, %v2966
    %v2968 = vpop.f32.mrb[0].mxu0
    %v2969 = vand.u32 %v1854, 4294901760
    %2970 = vmatprep.mubr.f32.mxu0 %v2969
    %v2971 = vand.u32 %v1941, 4294901760
    %2972 = vmatmul.mubr.f32.gmra.mrb[0].mxu0 %v2971
    %v2973 = vpop.f32.mrb[0].mxu0
    %v2974 = vadd.f32 %v2849, %v2973
    %v2975 = vpop.f32.mrb[0].mxu0
    %v2976 = vand.u32 %v1855, 4294901760
    %2977 = vmatprep.mubr.f32.mxu0 %v2976
    %v2978 = vand.u32 %v1942, 4294901760
    %2979 = vmatmul.mubr.f32.gmra.mrb[0].mxu0 %v2978
    %v2980 = vpop.f32.mrb[0].mxu0
    %v2981 = vadd.f32 %v2856, %v2980
    %v2982 = vpop.f32.mrb[0].mxu0
    %v2983 = vand.u32 %v1856, 4294901760
    %2984 = vmatprep.mubr.f32.mxu0 %v2983
    %v2985 = vand.u32 %v1943, 4294901760
    %2986 = vmatmul.mubr.f32.gmra.mrb[0].mxu0 %v2985
    %v2987 = vpop.f32.mrb[0].mxu0
    %v2988 = vadd.f32 %v2863, %v2987
    %v2989 = vpop.f32.mrb[0].mxu0
    %2990 = vdwg.mxu0
    %2991 = vmatprep.subr.mxu0 0.0
    %v2992 = vand.u32 %v1889, 4294901760
    %2993 = vmatpush1.msra.mxu0 %v2992
    %2994 = vmatprep.subr.mxu0 0.0
    %v2995 = vand.u32 %v1890, 4294901760
    %2996 = vmatpush1.msra.mxu0 %v2995
    %2997 = vmatprep.subr.mxu0 0.0
    %v2998 = vand.u32 %v1891, 4294901760
    %2999 = vmatpush1.msra.mxu0 %v2998
    %3000 = vmatprep.subr.mxu0 0.0
    %v3001 = vand.u32 %v1892, 4294901760
    %3002 = vmatpush1.msra.mxu0 %v3001
    %3003 = vmatprep.subr.mxu0 0.0
    %v3004 = vand.u32 %v1893, 4294901760
    %3005 = vmatpush1.msra.mxu0 %v3004
    %3006 = vmatprep.subr.mxu0 0.0
    %v3007 = vand.u32 %v1894, 4294901760
    %3008 = vmatpush1.msra.mxu0 %v3007
    %3009 = vmatprep.subr.mxu0 0.0
    %v3010 = vand.u32 %v1895, 4294901760
    %3011 = vmatpush1.msra.mxu0 %v3010
    %3012 = vmatprep.subr.mxu0 0.0
    %v3013 = vand.u32 %v1896, 4294901760
    %3014 = vmatpush1.msra.mxu0 %v3013
    %3015 = vmatprep.subr.mxu0 0.0
    %v3016 = vand.u32 %v1897, 4294901760
    %3017 = vmatpush1.msra.mxu0 %v3016
    %3018 = vmatprep.subr.mxu0 0.0
    %v3019 = vand.u32 %v1898, 4294901760
    %3020 = vmatpush1.msra.mxu0 %v3019
    %3021 = vmatprep.subr.mxu0 0.0
    %v3022 = vand.u32 %v1899, 4294901760
    %3023 = vmatpush1.msra.mxu0 %v3022
    %3024 = vmatprep.subr.mxu0 0.0
    %v3025 = vand.u32 %v1900, 4294901760
    %3026 = vmatpush1.msra.mxu0 %v3025
    %3027 = vmatprep.subr.mxu0 0.0
    %v3028 = vand.u32 %v1901, 4294901760
    %3029 = vmatpush1.msra.mxu0 %v3028
    %3030 = vmatprep.subr.mxu0 0.0
    %v3031 = vand.u32 %v1902, 4294901760
    %3032 = vmatpush1.msra.mxu0 %v3031
    %3033 = vmatprep.subr.mxu0 0.0
    %v3034 = vand.u32 %v1903, 4294901760
    %3035 = vmatpush1.msra.mxu0 %v3034
    %3036 = vmatprep.subr.mxu0 0.0
    %v3037 = vand.u32 %v1904, 4294901760
    %3038 = vmatpush1.msra.mxu0 %v3037
    %3039 = vmatprep.subr.mxu0 0.0
    %3040 = vmatpush1.msra.mxu0 0.0
    %3041 = vmatprep.subr.mxu0 0.0
    %3042 = vmatpush1.msra.mxu0 0.0
    %3043 = vmatprep.subr.mxu0 0.0
    %3044 = vmatpush1.msra.mxu0 0.0
    %3045 = vmatprep.subr.mxu0 0.0
    %3046 = vmatpush1.msra.mxu0 0.0
    %3047 = vmatprep.subr.mxu0 0.0
    %3048 = vmatpush1.msra.mxu0 0.0
    %3049 = vmatprep.subr.mxu0 0.0
    %3050 = vmatpush1.msra.mxu0 0.0
    %3051 = vmatprep.subr.mxu0 0.0
    %3052 = vmatpush1.msra.mxu0 0.0
    %3053 = vmatprep.subr.mxu0 0.0
    %3054 = vmatpush1.msra.mxu0 0.0
    %3055 = vmatprep.subr.mxu0 0.0
    %3056 = vmatpush1.msra.mxu0 0.0
    %3057 = vmatprep.subr.mxu0 0.0
    %3058 = vmatpush1.msra.mxu0 0.0
    %3059 = vmatprep.subr.mxu0 0.0
    %3060 = vmatpush1.msra.mxu0 0.0
    %3061 = vmatprep.subr.mxu0 0.0
    %3062 = vmatpush1.msra.mxu0 0.0
    %3063 = vmatprep.subr.mxu0 0.0
    %3064 = vmatpush1.msra.mxu0 0.0
    %3065 = vmatprep.subr.mxu0 0.0
    %3066 = vmatpush1.msra.mxu0 0.0
    %3067 = vmatprep.subr.mxu0 0.0
    %3068 = vmatpush1.msra.mxu0 0.0
    %3069 = vmatprep.subr.mxu0 0.0
    %3070 = vmatpush1.msra.mxu0 0.0
    %3071 = vmatprep.mubr.f32.mxu0 0.0
    %v3072 = vand.u32 %v1957, 4294901760
    %v3073 = vsub.f32 %v1957, %v3072
    %v3074 = vand.u32 %v3073, 4294901760
    %v3075 = vsub.f32 %v3073, %v3074
    %v3076 = vand.u32 %v3075, 4294901760
    %3077 = vmatmul.mubr.f32.gmra.mrb[0].mxu0 %v3076
    %v3078 = vpop.f32.mrb[0].mxu0
    %v3079 = vadd.f32 %v2967, %v3078
    %v3080 = vpop.f32.mrb[0].mxu0
    %3081 = vmatprep.mubr.f32.mxu0 0.0
    %v3082 = vand.u32 %v1958, 4294901760
    %v3083 = vsub.f32 %v1958, %v3082
    %v3084 = vand.u32 %v3083, 4294901760
    %v3085 = vsub.f32 %v3083, %v3084
    %v3086 = vand.u32 %v3085, 4294901760
    %3087 = vmatmul.mubr.f32.gmra.mrb[0].mxu0 %v3086
    %v3088 = vpop.f32.mrb[0].mxu0
    %v3089 = vadd.f32 %v2974, %v3088
    %v3090 = vpop.f32.mrb[0].mxu0
    %3091 = vmatprep.mubr.f32.mxu0 0.0
    %v3092 = vand.u32 %v1959, 4294901760
    %v3093 = vsub.f32 %v1959, %v3092
    %v3094 = vand.u32 %v3093, 4294901760
    %v3095 = vsub.f32 %v3093, %v3094
    %v3096 = vand.u32 %v3095, 4294901760
    %3097 = vmatmul.mubr.f32.gmra.mrb[0].mxu0 %v3096
    %v3098 = vpop.f32.mrb[0].mxu0
    %v3099 = vadd.f32 %v2981, %v3098
    %v3100 = vpop.f32.mrb[0].mxu0
    %3101 = vmatprep.mubr.f32.mxu0 0.0
    %v3102 = vand.u32 %v1960, 4294901760
    %v3103 = vsub.f32 %v1960, %v3102
    %v3104 = vand.u32 %v3103, 4294901760
    %v3105 = vsub.f32 %v3103, %v3104
    %v3106 = vand.u32 %v3105, 4294901760
    %3107 = vmatmul.mubr.f32.gmra.mrb[0].mxu0 %v3106
    %v3108 = vpop.f32.mrb[0].mxu0
    %v3109 = vadd.f32 %v2988, %v3108
    %v3110 = vpop.f32.mrb[0].mxu0
    %3111 = vdwg.mxu0
    %3112 = vmatprep.subr.mxu0 0.0
    %v3113 = vand.u32 %v1889, 4294901760
    %v3114 = vsub.f32 %v1889, %v3113
    %v3115 = vand.u32 %v3114, 4294901760
    %v3116 = vsub.f32 %v3114, %v3115
    %v3117 = vand.u32 %v3116, 4294901760
    %3118 = vmatpush1.msra.mxu0 %v3117
    %3119 = vmatprep.subr.mxu0 0.0
    %v3120 = vand.u32 %v1890, 4294901760
    %v3121 = vsub.f32 %v1890, %v3120
    %v3122 = vand.u32 %v3121, 4294901760
    %v3123 = vsub.f32 %v3121, %v3122
    %v3124 = vand.u32 %v3123, 4294901760
    %3125 = vmatpush1.msra.mxu0 %v3124
    %3126 = vmatprep.subr.mxu0 0.0
    %v3127 = vand.u32 %v1891, 4294901760
    %v3128 = vsub.f32 %v1891, %v3127
    %v3129 = vand.u32 %v3128, 4294901760
    %v3130 = vsub.f32 %v3128, %v3129
    %v3131 = vand.u32 %v3130, 4294901760
    %3132 = vmatpush1.msra.mxu0 %v3131
    %3133 = vmatprep.subr.mxu0 0.0
    %v3134 = vand.u32 %v1892, 4294901760
    %v3135 = vsub.f32 %v1892, %v3134
    %v3136 = vand.u32 %v3135, 4294901760
    %v3137 = vsub.f32 %v3135, %v3136
    %v3138 = vand.u32 %v3137, 4294901760
    %3139 = vmatpush1.msra.mxu0 %v3138
    %3140 = vmatprep.subr.mxu0 0.0
    %v3141 = vand.u32 %v1893, 4294901760
    %v3142 = vsub.f32 %v1893, %v3141
    %v3143 = vand.u32 %v3142, 4294901760
    %v3144 = vsub.f32 %v3142, %v3143
    %v3145 = vand.u32 %v3144, 4294901760
    %3146 = vmatpush1.msra.mxu0 %v3145
    %3147 = vmatprep.subr.mxu0 0.0
    %v3148 = vand.u32 %v1894, 4294901760
    %v3149 = vsub.f32 %v1894, %v3148
    %v3150 = vand.u32 %v3149, 4294901760
    %v3151 = vsub.f32 %v3149, %v3150
    %v3152 = vand.u32 %v3151, 4294901760
    %3153 = vmatpush1.msra.mxu0 %v3152
    %3154 = vmatprep.subr.mxu0 0.0
    %v3155 = vand.u32 %v1895, 4294901760
    %v3156 = vsub.f32 %v1895, %v3155
    %v3157 = vand.u32 %v3156, 4294901760
    %v3158 = vsub.f32 %v3156, %v3157
    %v3159 = vand.u32 %v3158, 4294901760
    %3160 = vmatpush1.msra.mxu0 %v3159
    %3161 = vmatprep.subr.mxu0 0.0
    %v3162 = vand.u32 %v1896, 4294901760
    %v3163 = vsub.f32 %v1896, %v3162
    %v3164 = vand.u32 %v3163, 4294901760
    %v3165 = vsub.f32 %v3163, %v3164
    %v3166 = vand.u32 %v3165, 4294901760
    %3167 = vmatpush1.msra.mxu0 %v3166
    %3168 = vmatprep.subr.mxu0 0.0
    %v3169 = vand.u32 %v1897, 4294901760
    %v3170 = vsub.f32 %v1897, %v3169
    %v3171 = vand.u32 %v3170, 4294901760
    %v3172 = vsub.f32 %v3170, %v3171
    %v3173 = vand.u32 %v3172, 4294901760
    %3174 = vmatpush1.msra.mxu0 %v3173
    %3175 = vmatprep.subr.mxu0 0.0
    %v3176 = vand.u32 %v1898, 4294901760
    %v3177 = vsub.f32 %v1898, %v3176
    %v3178 = vand.u32 %v3177, 4294901760
    %v3179 = vsub.f32 %v3177, %v3178
    %v3180 = vand.u32 %v3179, 4294901760
    %3181 = vmatpush1.msra.mxu0 %v3180
    %3182 = vmatprep.subr.mxu0 0.0
    %v3183 = vand.u32 %v1899, 4294901760
    %v3184 = vsub.f32 %v1899, %v3183
    %v3185 = vand.u32 %v3184, 4294901760
    %v3186 = vsub.f32 %v3184, %v3185
    %v3187 = vand.u32 %v3186, 4294901760
    %3188 = vmatpush1.msra.mxu0 %v3187
    %3189 = vmatprep.subr.mxu0 0.0
    %v3190 = vand.u32 %v1900, 4294901760
    %v3191 = vsub.f32 %v1900, %v3190
    %v3192 = vand.u32 %v3191, 4294901760
    %v3193 = vsub.f32 %v3191, %v3192
    %v3194 = vand.u32 %v3193, 4294901760
    %3195 = vmatpush1.msra.mxu0 %v3194
    %3196 = vmatprep.subr.mxu0 0.0
    %v3197 = vand.u32 %v1901, 4294901760
    %v3198 = vsub.f32 %v1901, %v3197
    %v3199 = vand.u32 %v3198, 4294901760
    %v3200 = vsub.f32 %v3198, %v3199
    %v3201 = vand.u32 %v3200, 4294901760
    %3202 = vmatpush1.msra.mxu0 %v3201
    %3203 = vmatprep.subr.mxu0 0.0
    %v3204 = vand.u32 %v1902, 4294901760
    %v3205 = vsub.f32 %v1902, %v3204
    %v3206 = vand.u32 %v3205, 4294901760
    %v3207 = vsub.f32 %v3205, %v3206
    %v3208 = vand.u32 %v3207, 4294901760
    %3209 = vmatpush1.msra.mxu0 %v3208
    %3210 = vmatprep.subr.mxu0 0.0
    %v3211 = vand.u32 %v1903, 4294901760
    %v3212 = vsub.f32 %v1903, %v3211
    %v3213 = vand.u32 %v3212, 4294901760
    %v3214 = vsub.f32 %v3212, %v3213
    %v3215 = vand.u32 %v3214, 4294901760
    %3216 = vmatpush1.msra.mxu0 %v3215
    %3217 = vmatprep.subr.mxu0 0.0
    %v3218 = vand.u32 %v1904, 4294901760
    %v3219 = vsub.f32 %v1904, %v3218
    %v3220 = vand.u32 %v3219, 4294901760
    %v3221 = vsub.f32 %v3219, %v3220
    %v3222 = vand.u32 %v3221, 4294901760
    %3223 = vmatpush1.msra.mxu0 %v3222
    %3224 = vmatprep.subr.mxu0 0.0
    %3225 = vmatpush1.msra.mxu0 0.0
    %3226 = vmatprep.subr.mxu0 0.0
    %3227 = vmatpush1.msra.mxu0 0.0
    %3228 = vmatprep.subr.mxu0 0.0
    %3229 = vmatpush1.msra.mxu0 0.0
    %3230 = vmatprep.subr.mxu0 0.0
    %3231 = vmatpush1.msra.mxu0 0.0
    %3232 = vmatprep.subr.mxu0 0.0
    %3233 = vmatpush1.msra.mxu0 0.0
    %3234 = vmatprep.subr.mxu0 0.0
    %3235 = vmatpush1.msra.mxu0 0.0
    %3236 = vmatprep.subr.mxu0 0.0
    %3237 = vmatpush1.msra.mxu0 0.0
    %3238 = vmatprep.subr.mxu0 0.0
    %3239 = vmatpush1.msra.mxu0 0.0
    %3240 = vmatprep.subr.mxu0 0.0
    %3241 = vmatpush1.msra.mxu0 0.0
    %3242 = vmatprep.subr.mxu0 0.0
    %3243 = vmatpush1.msra.mxu0 0.0
    %3244 = vmatprep.subr.mxu0 0.0
    %3245 = vmatpush1.msra.mxu0 0.0
    %3246 = vmatprep.subr.mxu0 0.0
    %3247 = vmatpush1.msra.mxu0 0.0
    %3248 = vmatprep.subr.mxu0 0.0
    %3249 = vmatpush1.msra.mxu0 0.0
    %3250 = vmatprep.subr.mxu0 0.0
    %3251 = vmatpush1.msra.mxu0 0.0
    %3252 = vmatprep.subr.mxu0 0.0
    %3253 = vmatpush1.msra.mxu0 0.0
    %3254 = vmatprep.subr.mxu0 0.0
    %3255 = vmatpush1.msra.mxu0 0.0
    %3256 = vmatprep.mubr.f32.mxu0 0.0
    %v3257 = vand.u32 %v1957, 4294901760
    %3258 = vmatmul.mubr.f32.gmra.mrb[0].mxu0 %v3257
    %v3259 = vpop.f32.mrb[0].mxu0
    %v3260 = vadd.f32 %v3079, %v3259
    %v3261 = vpop.f32.mrb[0].mxu0
    %3262 = vmatprep.mubr.f32.mxu0 0.0
    %v3263 = vand.u32 %v1958, 4294901760
    %3264 = vmatmul.mubr.f32.gmra.mrb[0].mxu0 %v3263
    %v3265 = vpop.f32.mrb[0].mxu0
    %v3266 = vadd.f32 %v3089, %v3265
    %v3267 = vpop.f32.mrb[0].mxu0
    %3268 = vmatprep.mubr.f32.mxu0 0.0
    %v3269 = vand.u32 %v1959, 4294901760
    %3270 = vmatmul.mubr.f32.gmra.mrb[0].mxu0 %v3269
    %v3271 = vpop.f32.mrb[0].mxu0
    %v3272 = vadd.f32 %v3099, %v3271
    %v3273 = vpop.f32.mrb[0].mxu0
    %3274 = vmatprep.mubr.f32.mxu0 0.0
    %v3275 = vand.u32 %v1960, 4294901760
    %3276 = vmatmul.mubr.f32.gmra.mrb[0].mxu0 %v3275
    %v3277 = vpop.f32.mrb[0].mxu0
    %v3278 = vadd.f32 %v3109, %v3277
    %v3279 = vpop.f32.mrb[0].mxu0
    %3280 = vdwg.mxu0
    %3281 = vmatprep.subr.mxu0 0.0
    %v3282 = vand.u32 %v1889, 4294901760
    %v3283 = vsub.f32 %v1889, %v3282
    %3284 = vmatpush1.msra.mxu0 %v3283
    %3285 = vmatprep.subr.mxu0 0.0
    %v3286 = vand.u32 %v1890, 4294901760
    %v3287 = vsub.f32 %v1890, %v3286
    %3288 = vmatpush1.msra.mxu0 %v3287
    %3289 = vmatprep.subr.mxu0 0.0
    %v3290 = vand.u32 %v1891, 4294901760
    %v3291 = vsub.f32 %v1891, %v3290
    %3292 = vmatpush1.msra.mxu0 %v3291
    %3293 = vmatprep.subr.mxu0 0.0
    %v3294 = vand.u32 %v1892, 4294901760
    %v3295 = vsub.f32 %v1892, %v3294
    %3296 = vmatpush1.msra.mxu0 %v3295
    %3297 = vmatprep.subr.mxu0 0.0
    %v3298 = vand.u32 %v1893, 4294901760
    %v3299 = vsub.f32 %v1893, %v3298
    %3300 = vmatpush1.msra.mxu0 %v3299
    %3301 = vmatprep.subr.mxu0 0.0
    %v3302 = vand.u32 %v1894, 4294901760
    %v3303 = vsub.f32 %v1894, %v3302
    %3304 = vmatpush1.msra.mxu0 %v3303
    %3305 = vmatprep.subr.mxu0 0.0
    %v3306 = vand.u32 %v1895, 4294901760
    %v3307 = vsub.f32 %v1895, %v3306
    %3308 = vmatpush1.msra.mxu0 %v3307
    %3309 = vmatprep.subr.mxu0 0.0
    %v3310 = vand.u32 %v1896, 4294901760
    %v3311 = vsub.f32 %v1896, %v3310
    %3312 = vmatpush1.msra.mxu0 %v3311
    %3313 = vmatprep.subr.mxu0 0.0
    %v3314 = vand.u32 %v1897, 4294901760
    %v3315 = vsub.f32 %v1897, %v3314
    %3316 = vmatpush1.msra.mxu0 %v3315
    %3317 = vmatprep.subr.mxu0 0.0
    %v3318 = vand.u32 %v1898, 4294901760
    %v3319 = vsub.f32 %v1898, %v3318
    %3320 = vmatpush1.msra.mxu0 %v3319
    %3321 = vmatprep.subr.mxu0 0.0
    %v3322 = vand.u32 %v1899, 4294901760
    %v3323 = vsub.f32 %v1899, %v3322
    %3324 = vmatpush1.msra.mxu0 %v3323
    %3325 = vmatprep.subr.mxu0 0.0
    %v3326 = vand.u32 %v1900, 4294901760
    %v3327 = vsub.f32 %v1900, %v3326
    %3328 = vmatpush1.msra.mxu0 %v3327
    %3329 = vmatprep.subr.mxu0 0.0
    %v3330 = vand.u32 %v1901, 4294901760
    %v3331 = vsub.f32 %v1901, %v3330
    %3332 = vmatpush1.msra.mxu0 %v3331
    %3333 = vmatprep.subr.mxu0 0.0
    %v3334 = vand.u32 %v1902, 4294901760
    %v3335 = vsub.f32 %v1902, %v3334
    %3336 = vmatpush1.msra.mxu0 %v3335
    %3337 = vmatprep.subr.mxu0 0.0
    %v3338 = vand.u32 %v1903, 4294901760
    %v3339 = vsub.f32 %v1903, %v3338
    %3340 = vmatpush1.msra.mxu0 %v3339
    %3341 = vmatprep.subr.mxu0 0.0
    %v3342 = vand.u32 %v1904, 4294901760
    %v3343 = vsub.f32 %v1904, %v3342
    %3344 = vmatpush1.msra.mxu0 %v3343
    %3345 = vmatprep.subr.mxu0 0.0
    %3346 = vmatpush1.msra.mxu0 0.0
    %3347 = vmatprep.subr.mxu0 0.0
    %3348 = vmatpush1.msra.mxu0 0.0
    %3349 = vmatprep.subr.mxu0 0.0
    %3350 = vmatpush1.msra.mxu0 0.0
    %3351 = vmatprep.subr.mxu0 0.0
    %3352 = vmatpush1.msra.mxu0 0.0
    %3353 = vmatprep.subr.mxu0 0.0
    %3354 = vmatpush1.msra.mxu0 0.0
    %3355 = vmatprep.subr.mxu0 0.0
    %3356 = vmatpush1.msra.mxu0 0.0
    %3357 = vmatprep.subr.mxu0 0.0
    %3358 = vmatpush1.msra.mxu0 0.0
    %3359 = vmatprep.subr.mxu0 0.0
    %3360 = vmatpush1.msra.mxu0 0.0
    %3361 = vmatprep.subr.mxu0 0.0
    %3362 = vmatpush1.msra.mxu0 0.0
    %3363 = vmatprep.subr.mxu0 0.0
    %3364 = vmatpush1.msra.mxu0 0.0
    %3365 = vmatprep.subr.mxu0 0.0
    %3366 = vmatpush1.msra.mxu0 0.0
    %3367 = vmatprep.subr.mxu0 0.0
    %3368 = vmatpush1.msra.mxu0 0.0
    %3369 = vmatprep.subr.mxu0 0.0
    %3370 = vmatpush1.msra.mxu0 0.0
    %3371 = vmatprep.subr.mxu0 0.0
    %3372 = vmatpush1.msra.mxu0 0.0
    %3373 = vmatprep.subr.mxu0 0.0
    %3374 = vmatpush1.msra.mxu0 0.0
    %3375 = vmatprep.subr.mxu0 0.0
    %3376 = vmatpush1.msra.mxu0 0.0
    %3377 = vmatprep.mubr.f32.mxu0 0.0
    %v3378 = vand.u32 %v1957, 4294901760
    %v3379 = vsub.f32 %v1957, %v3378
    %3380 = vmatmul.mubr.f32.gmra.mrb[0].mxu0 %v3379
    %v3381 = vpop.f32.mrb[0].mxu0
    %v3382 = vadd.f32 %v3260, %v3381
    %v3383 = vpop.f32.mrb[0].mxu0
    %3384 = vmatprep.mubr.f32.mxu0 0.0
    %v3385 = vand.u32 %v1958, 4294901760
    %v3386 = vsub.f32 %v1958, %v3385
    %3387 = vmatmul.mubr.f32.gmra.mrb[0].mxu0 %v3386
    %v3388 = vpop.f32.mrb[0].mxu0
    %v3389 = vadd.f32 %v3266, %v3388
    %v3390 = vpop.f32.mrb[0].mxu0
    %3391 = vmatprep.mubr.f32.mxu0 0.0
    %v3392 = vand.u32 %v1959, 4294901760
    %v3393 = vsub.f32 %v1959, %v3392
    %3394 = vmatmul.mubr.f32.gmra.mrb[0].mxu0 %v3393
    %v3395 = vpop.f32.mrb[0].mxu0
    %v3396 = vadd.f32 %v3272, %v3395
    %v3397 = vpop.f32.mrb[0].mxu0
    %3398 = vmatprep.mubr.f32.mxu0 0.0
    %v3399 = vand.u32 %v1960, 4294901760
    %v3400 = vsub.f32 %v1960, %v3399
    %3401 = vmatmul.mubr.f32.gmra.mrb[0].mxu0 %v3400
    %v3402 = vpop.f32.mrb[0].mxu0
    %v3403 = vadd.f32 %v3278, %v3402
    %v3404 = vpop.f32.mrb[0].mxu0
    %3405 = vdwg.mxu0
    %3406 = vmatprep.subr.mxu0 0.0
    %v3407 = vand.u32 %v1889, 4294901760
    %3408 = vmatpush1.msra.mxu0 %v3407
    %3409 = vmatprep.subr.mxu0 0.0
    %v3410 = vand.u32 %v1890, 4294901760
    %3411 = vmatpush1.msra.mxu0 %v3410
    %3412 = vmatprep.subr.mxu0 0.0
    %v3413 = vand.u32 %v1891, 4294901760
    %3414 = vmatpush1.msra.mxu0 %v3413
    %3415 = vmatprep.subr.mxu0 0.0
    %v3416 = vand.u32 %v1892, 4294901760
    %3417 = vmatpush1.msra.mxu0 %v3416
    %3418 = vmatprep.subr.mxu0 0.0
    %v3419 = vand.u32 %v1893, 4294901760
    %3420 = vmatpush1.msra.mxu0 %v3419
    %3421 = vmatprep.subr.mxu0 0.0
    %v3422 = vand.u32 %v1894, 4294901760
    %3423 = vmatpush1.msra.mxu0 %v3422
    %3424 = vmatprep.subr.mxu0 0.0
    %v3425 = vand.u32 %v1895, 4294901760
    %3426 = vmatpush1.msra.mxu0 %v3425
    %3427 = vmatprep.subr.mxu0 0.0
    %v3428 = vand.u32 %v1896, 4294901760
    %3429 = vmatpush1.msra.mxu0 %v3428
    %3430 = vmatprep.subr.mxu0 0.0
    %v3431 = vand.u32 %v1897, 4294901760
    %3432 = vmatpush1.msra.mxu0 %v3431
    %3433 = vmatprep.subr.mxu0 0.0
    %v3434 = vand.u32 %v1898, 4294901760
    %3435 = vmatpush1.msra.mxu0 %v3434
    %3436 = vmatprep.subr.mxu0 0.0
    %v3437 = vand.u32 %v1899, 4294901760
    %3438 = vmatpush1.msra.mxu0 %v3437
    %3439 = vmatprep.subr.mxu0 0.0
    %v3440 = vand.u32 %v1900, 4294901760
    %3441 = vmatpush1.msra.mxu0 %v3440
    %3442 = vmatprep.subr.mxu0 0.0
    %v3443 = vand.u32 %v1901, 4294901760
    %3444 = vmatpush1.msra.mxu0 %v3443
    %3445 = vmatprep.subr.mxu0 0.0
    %v3446 = vand.u32 %v1902, 4294901760
    %3447 = vmatpush1.msra.mxu0 %v3446
    %3448 = vmatprep.subr.mxu0 0.0
    %v3449 = vand.u32 %v1903, 4294901760
    %3450 = vmatpush1.msra.mxu0 %v3449
    %3451 = vmatprep.subr.mxu0 0.0
    %v3452 = vand.u32 %v1904, 4294901760
    %3453 = vmatpush1.msra.mxu0 %v3452
    %3454 = vmatprep.subr.mxu0 0.0
    %3455 = vmatpush1.msra.mxu0 0.0
    %3456 = vmatprep.subr.mxu0 0.0
    %3457 = vmatpush1.msra.mxu0 0.0
    %3458 = vmatprep.subr.mxu0 0.0
    %3459 = vmatpush1.msra.mxu0 0.0
    %3460 = vmatprep.subr.mxu0 0.0
    %3461 = vmatpush1.msra.mxu0 0.0
    %3462 = vmatprep.subr.mxu0 0.0
    %3463 = vmatpush1.msra.mxu0 0.0
    %3464 = vmatprep.subr.mxu0 0.0
    %3465 = vmatpush1.msra.mxu0 0.0
    %3466 = vmatprep.subr.mxu0 0.0
    %3467 = vmatpush1.msra.mxu0 0.0
    %3468 = vmatprep.subr.mxu0 0.0
    %3469 = vmatpush1.msra.mxu0 0.0
    %3470 = vmatprep.subr.mxu0 0.0
    %3471 = vmatpush1.msra.mxu0 0.0
    %3472 = vmatprep.subr.mxu0 0.0
    %3473 = vmatpush1.msra.mxu0 0.0
    %3474 = vmatprep.subr.mxu0 0.0
    %3475 = vmatpush1.msra.mxu0 0.0
    %3476 = vmatprep.subr.mxu0 0.0
    %3477 = vmatpush1.msra.mxu0 0.0
    %3478 = vmatprep.subr.mxu0 0.0
    %3479 = vmatpush1.msra.mxu0 0.0
    %3480 = vmatprep.subr.mxu0 0.0
    %3481 = vmatpush1.msra.mxu0 0.0
    %3482 = vmatprep.subr.mxu0 0.0
    %3483 = vmatpush1.msra.mxu0 0.0
    %3484 = vmatprep.subr.mxu0 0.0
    %3485 = vmatpush1.msra.mxu0 0.0
    %3486 = vmatprep.mubr.f32.mxu0 0.0
    %v3487 = vand.u32 %v1957, 4294901760
    %v3488 = vsub.f32 %v1957, %v3487
    %v3489 = vand.u32 %v3488, 4294901760
    %3490 = vmatmul.mubr.f32.gmra.mrb[0].mxu0 %v3489
    %v3491 = vpop.f32.mrb[0].mxu0
    %v3492 = vadd.f32 %v3382, %v3491
    %v3493 = vpop.f32.mrb[0].mxu0
    %3494 = vmatprep.mubr.f32.mxu0 0.0
    %v3495 = vand.u32 %v1958, 4294901760
    %v3496 = vsub.f32 %v1958, %v3495
    %v3497 = vand.u32 %v3496, 4294901760
    %3498 = vmatmul.mubr.f32.gmra.mrb[0].mxu0 %v3497
    %v3499 = vpop.f32.mrb[0].mxu0
    %v3500 = vadd.f32 %v3389, %v3499
    %v3501 = vpop.f32.mrb[0].mxu0
    %3502 = vmatprep.mubr.f32.mxu0 0.0
    %v3503 = vand.u32 %v1959, 4294901760
    %v3504 = vsub.f32 %v1959, %v3503
    %v3505 = vand.u32 %v3504, 4294901760
    %3506 = vmatmul.mubr.f32.gmra.mrb[0].mxu0 %v3505
    %v3507 = vpop.f32.mrb[0].mxu0
    %v3508 = vadd.f32 %v3396, %v3507
    %v3509 = vpop.f32.mrb[0].mxu0
    %3510 = vmatprep.mubr.f32.mxu0 0.0
    %v3511 = vand.u32 %v1960, 4294901760
    %v3512 = vsub.f32 %v1960, %v3511
    %v3513 = vand.u32 %v3512, 4294901760
    %3514 = vmatmul.mubr.f32.gmra.mrb[0].mxu0 %v3513
    %v3515 = vpop.f32.mrb[0].mxu0
    %v3516 = vadd.f32 %v3403, %v3515
    %v3517 = vpop.f32.mrb[0].mxu0
    %3518 = vdwg.mxu0
    %3519 = vmatprep.subr.mxu0 0.0
    %v3520 = vand.u32 %v1889, 4294901760
    %v3521 = vsub.f32 %v1889, %v3520
    %v3522 = vand.u32 %v3521, 4294901760
    %3523 = vmatpush1.msra.mxu0 %v3522
    %3524 = vmatprep.subr.mxu0 0.0
    %v3525 = vand.u32 %v1890, 4294901760
    %v3526 = vsub.f32 %v1890, %v3525
    %v3527 = vand.u32 %v3526, 4294901760
    %3528 = vmatpush1.msra.mxu0 %v3527
    %3529 = vmatprep.subr.mxu0 0.0
    %v3530 = vand.u32 %v1891, 4294901760
    %v3531 = vsub.f32 %v1891, %v3530
    %v3532 = vand.u32 %v3531, 4294901760
    %3533 = vmatpush1.msra.mxu0 %v3532
    %3534 = vmatprep.subr.mxu0 0.0
    %v3535 = vand.u32 %v1892, 4294901760
    %v3536 = vsub.f32 %v1892, %v3535
    %v3537 = vand.u32 %v3536, 4294901760
    %3538 = vmatpush1.msra.mxu0 %v3537
    %3539 = vmatprep.subr.mxu0 0.0
    %v3540 = vand.u32 %v1893, 4294901760
    %v3541 = vsub.f32 %v1893, %v3540
    %v3542 = vand.u32 %v3541, 4294901760
    %3543 = vmatpush1.msra.mxu0 %v3542
    %3544 = vmatprep.subr.mxu0 0.0
    %v3545 = vand.u32 %v1894, 4294901760
    %v3546 = vsub.f32 %v1894, %v3545
    %v3547 = vand.u32 %v3546, 4294901760
    %3548 = vmatpush1.msra.mxu0 %v3547
    %3549 = vmatprep.subr.mxu0 0.0
    %v3550 = vand.u32 %v1895, 4294901760
    %v3551 = vsub.f32 %v1895, %v3550
    %v3552 = vand.u32 %v3551, 4294901760
    %3553 = vmatpush1.msra.mxu0 %v3552
    %3554 = vmatprep.subr.mxu0 0.0
    %v3555 = vand.u32 %v1896, 4294901760
    %v3556 = vsub.f32 %v1896, %v3555
    %v3557 = vand.u32 %v3556, 4294901760
    %3558 = vmatpush1.msra.mxu0 %v3557
    %3559 = vmatprep.subr.mxu0 0.0
    %v3560 = vand.u32 %v1897, 4294901760
    %v3561 = vsub.f32 %v1897, %v3560
    %v3562 = vand.u32 %v3561, 4294901760
    %3563 = vmatpush1.msra.mxu0 %v3562
    %3564 = vmatprep.subr.mxu0 0.0
    %v3565 = vand.u32 %v1898, 4294901760
    %v3566 = vsub.f32 %v1898, %v3565
    %v3567 = vand.u32 %v3566, 4294901760
    %3568 = vmatpush1.msra.mxu0 %v3567
    %3569 = vmatprep.subr.mxu0 0.0
    %v3570 = vand.u32 %v1899, 4294901760
    %v3571 = vsub.f32 %v1899, %v3570
    %v3572 = vand.u32 %v3571, 4294901760
    %3573 = vmatpush1.msra.mxu0 %v3572
    %3574 = vmatprep.subr.mxu0 0.0
    %v3575 = vand.u32 %v1900, 4294901760
    %v3576 = vsub.f32 %v1900, %v3575
    %v3577 = vand.u32 %v3576, 4294901760
    %3578 = vmatpush1.msra.mxu0 %v3577
    %3579 = vmatprep.subr.mxu0 0.0
    %v3580 = vand.u32 %v1901, 4294901760
    %v3581 = vsub.f32 %v1901, %v3580
    %v3582 = vand.u32 %v3581, 4294901760
    %3583 = vmatpush1.msra.mxu0 %v3582
    %3584 = vmatprep.subr.mxu0 0.0
    %v3585 = vand.u32 %v1902, 4294901760
    %v3586 = vsub.f32 %v1902, %v3585
    %v3587 = vand.u32 %v3586, 4294901760
    %3588 = vmatpush1.msra.mxu0 %v3587
    %3589 = vmatprep.subr.mxu0 0.0
    %v3590 = vand.u32 %v1903, 4294901760
    %v3591 = vsub.f32 %v1903, %v3590
    %v3592 = vand.u32 %v3591, 4294901760
    %3593 = vmatpush1.msra.mxu0 %v3592
    %3594 = vmatprep.subr.mxu0 0.0
    %v3595 = vand.u32 %v1904, 4294901760
    %v3596 = vsub.f32 %v1904, %v3595
    %v3597 = vand.u32 %v3596, 4294901760
    %3598 = vmatpush1.msra.mxu0 %v3597
    %3599 = vmatprep.subr.mxu0 0.0
    %3600 = vmatpush1.msra.mxu0 0.0
    %3601 = vmatprep.subr.mxu0 0.0
    %3602 = vmatpush1.msra.mxu0 0.0
    %3603 = vmatprep.subr.mxu0 0.0
    %3604 = vmatpush1.msra.mxu0 0.0
    %3605 = vmatprep.subr.mxu0 0.0
    %3606 = vmatpush1.msra.mxu0 0.0
    %3607 = vmatprep.subr.mxu0 0.0
    %3608 = vmatpush1.msra.mxu0 0.0
    %3609 = vmatprep.subr.mxu0 0.0
    %3610 = vmatpush1.msra.mxu0 0.0
    %3611 = vmatprep.subr.mxu0 0.0
    %3612 = vmatpush1.msra.mxu0 0.0
    %3613 = vmatprep.subr.mxu0 0.0
    %3614 = vmatpush1.msra.mxu0 0.0
    %3615 = vmatprep.subr.mxu0 0.0
    %3616 = vmatpush1.msra.mxu0 0.0
    %3617 = vmatprep.subr.mxu0 0.0
    %3618 = vmatpush1.msra.mxu0 0.0
    %3619 = vmatprep.subr.mxu0 0.0
    %3620 = vmatpush1.msra.mxu0 0.0
    %3621 = vmatprep.subr.mxu0 0.0
    %3622 = vmatpush1.msra.mxu0 0.0
    %3623 = vmatprep.subr.mxu0 0.0
    %3624 = vmatpush1.msra.mxu0 0.0
    %3625 = vmatprep.subr.mxu0 0.0
    %3626 = vmatpush1.msra.mxu0 0.0
    %3627 = vmatprep.subr.mxu0 0.0
    %3628 = vmatpush1.msra.mxu0 0.0
    %3629 = vmatprep.subr.mxu0 0.0
    %3630 = vmatpush1.msra.mxu0 0.0
    %3631 = vmatprep.mubr.f32.mxu0 0.0
    %v3632 = vand.u32 %v1957, 4294901760
    %3633 = vmatmul.mubr.f32.gmra.mrb[0].mxu0 %v3632
    %v3634 = vpop.f32.mrb[0].mxu0
    %v3635 = vadd.f32 %v3492, %v3634
    %v3636 = vpop.f32.mrb[0].mxu0
    %3637 = vmatprep.mubr.f32.mxu0 0.0
    %v3638 = vand.u32 %v1958, 4294901760
    %3639 = vmatmul.mubr.f32.gmra.mrb[0].mxu0 %v3638
    %v3640 = vpop.f32.mrb[0].mxu0
    %v3641 = vadd.f32 %v3500, %v3640
    %v3642 = vpop.f32.mrb[0].mxu0
    %3643 = vmatprep.mubr.f32.mxu0 0.0
    %v3644 = vand.u32 %v1959, 4294901760
    %3645 = vmatmul.mubr.f32.gmra.mrb[0].mxu0 %v3644
    %v3646 = vpop.f32.mrb[0].mxu0
    %v3647 = vadd.f32 %v3508, %v3646
    %v3648 = vpop.f32.mrb[0].mxu0
    %3649 = vmatprep.mubr.f32.mxu0 0.0
    %v3650 = vand.u32 %v1960, 4294901760
    %3651 = vmatmul.mubr.f32.gmra.mrb[0].mxu0 %v3650
    %v3652 = vpop.f32.mrb[0].mxu0
    %v3653 = vadd.f32 %v3516, %v3652
    %v3654 = vpop.f32.mrb[0].mxu0
    %3655 = vdwg.mxu0
    %3656 = vmatprep.subr.mxu0 0.0
    %v3657 = vand.u32 %v1889, 4294901760
    %3658 = vmatpush1.msra.mxu0 %v3657
    %3659 = vmatprep.subr.mxu0 0.0
    %v3660 = vand.u32 %v1890, 4294901760
    %3661 = vmatpush1.msra.mxu0 %v3660
    %3662 = vmatprep.subr.mxu0 0.0
    %v3663 = vand.u32 %v1891, 4294901760
    %3664 = vmatpush1.msra.mxu0 %v3663
    %3665 = vmatprep.subr.mxu0 0.0
    %v3666 = vand.u32 %v1892, 4294901760
    %3667 = vmatpush1.msra.mxu0 %v3666
    %3668 = vmatprep.subr.mxu0 0.0
    %v3669 = vand.u32 %v1893, 4294901760
    %3670 = vmatpush1.msra.mxu0 %v3669
    %3671 = vmatprep.subr.mxu0 0.0
    %v3672 = vand.u32 %v1894, 4294901760
    %3673 = vmatpush1.msra.mxu0 %v3672
    %3674 = vmatprep.subr.mxu0 0.0
    %v3675 = vand.u32 %v1895, 4294901760
    %3676 = vmatpush1.msra.mxu0 %v3675
    %3677 = vmatprep.subr.mxu0 0.0
    %v3678 = vand.u32 %v1896, 4294901760
    %3679 = vmatpush1.msra.mxu0 %v3678
    %3680 = vmatprep.subr.mxu0 0.0
    %v3681 = vand.u32 %v1897, 4294901760
    %3682 = vmatpush1.msra.mxu0 %v3681
    %3683 = vmatprep.subr.mxu0 0.0
    %v3684 = vand.u32 %v1898, 4294901760
    %3685 = vmatpush1.msra.mxu0 %v3684
    %3686 = vmatprep.subr.mxu0 0.0
    %v3687 = vand.u32 %v1899, 4294901760
    %3688 = vmatpush1.msra.mxu0 %v3687
    %3689 = vmatprep.subr.mxu0 0.0
    %v3690 = vand.u32 %v1900, 4294901760
    %3691 = vmatpush1.msra.mxu0 %v3690
    %3692 = vmatprep.subr.mxu0 0.0
    %v3693 = vand.u32 %v1901, 4294901760
    %3694 = vmatpush1.msra.mxu0 %v3693
    %3695 = vmatprep.subr.mxu0 0.0
    %v3696 = vand.u32 %v1902, 4294901760
    %3697 = vmatpush1.msra.mxu0 %v3696
    %3698 = vmatprep.subr.mxu0 0.0
    %v3699 = vand.u32 %v1903, 4294901760
    %3700 = vmatpush1.msra.mxu0 %v3699
    %3701 = vmatprep.subr.mxu0 0.0
    %v3702 = vand.u32 %v1904, 4294901760
    %3703 = vmatpush1.msra.mxu0 %v3702
    %3704 = vmatprep.subr.mxu0 0.0
    %3705 = vmatpush1.msra.mxu0 0.0
    %3706 = vmatprep.subr.mxu0 0.0
    %3707 = vmatpush1.msra.mxu0 0.0
    %3708 = vmatprep.subr.mxu0 0.0
    %3709 = vmatpush1.msra.mxu0 0.0
    %3710 = vmatprep.subr.mxu0 0.0
    %3711 = vmatpush1.msra.mxu0 0.0
    %3712 = vmatprep.subr.mxu0 0.0
    %3713 = vmatpush1.msra.mxu0 0.0
    %3714 = vmatprep.subr.mxu0 0.0
    %3715 = vmatpush1.msra.mxu0 0.0
    %3716 = vmatprep.subr.mxu0 0.0
    %3717 = vmatpush1.msra.mxu0 0.0
    %3718 = vmatprep.subr.mxu0 0.0
    %3719 = vmatpush1.msra.mxu0 0.0
    %3720 = vmatprep.subr.mxu0 0.0
    %3721 = vmatpush1.msra.mxu0 0.0
    %3722 = vmatprep.subr.mxu0 0.0
    %3723 = vmatpush1.msra.mxu0 0.0
    %3724 = vmatprep.subr.mxu0 0.0
    %3725 = vmatpush1.msra.mxu0 0.0
    %3726 = vmatprep.subr.mxu0 0.0
    %3727 = vmatpush1.msra.mxu0 0.0
    %3728 = vmatprep.subr.mxu0 0.0
    %3729 = vmatpush1.msra.mxu0 0.0
    %3730 = vmatprep.subr.mxu0 0.0
    %3731 = vmatpush1.msra.mxu0 0.0
    %3732 = vmatprep.subr.mxu0 0.0
    %3733 = vmatpush1.msra.mxu0 0.0
    %3734 = vmatprep.subr.mxu0 0.0
    %3735 = vmatpush1.msra.mxu0 0.0
    %3736 = vmatprep.mubr.f32.mxu0 0.0
    %v3737 = vand.u32 %v1957, 4294901760
    %3738 = vmatmul.mubr.f32.gmra.mrb[0].mxu0 %v3737
    %v3739 = vpop.f32.mrb[0].mxu0
    %v3740 = vadd.f32 %v3635, %v3739
    %v3741 = vpop.f32.mrb[0].mxu0
    %3742 = vmatprep.mubr.f32.mxu0 0.0
    %v3743 = vand.u32 %v1958, 4294901760
    %3744 = vmatmul.mubr.f32.gmra.mrb[0].mxu0 %v3743
    %v3745 = vpop.f32.mrb[0].mxu0
    %v3746 = vadd.f32 %v3641, %v3745
    %v3747 = vpop.f32.mrb[0].mxu0
    %3748 = vmatprep.mubr.f32.mxu0 0.0
    %v3749 = vand.u32 %v1959, 4294901760
    %3750 = vmatmul.mubr.f32.gmra.mrb[0].mxu0 %v3749
    %v3751 = vpop.f32.mrb[0].mxu0
    %v3752 = vadd.f32 %v3647, %v3751
    %v3753 = vpop.f32.mrb[0].mxu0
    %3754 = vmatprep.mubr.f32.mxu0 0.0
    %v3755 = vand.u32 %v1960, 4294901760
    %3756 = vmatmul.mubr.f32.gmra.mrb[0].mxu0 %v3755
    %v3757 = vpop.f32.mrb[0].mxu0
    %v3758 = vadd.f32 %v3653, %v3757
    %v3759 = vpop.f32.mrb[0].mxu0
    %3760 = vdwg.mxu0
    %v3761 = vadd.f32 %v3740, %v3746
    %v3762 = vadd.f32 %v3761, %v3752
    %v3763 = vadd.f32 %v3762, %v3758
    %v3764 = vrot.slane %v3763, 4
    %v3765 = vadd.f32 %v3763, %v3764
    %v3766 = vrot.slane %v3765, 2
    %v3767 = vadd.f32 %v3765, %v3766
    %v3768 = vrot.slane %v3767, 1
    %v3769 = vadd.f32 %v3767, %v3768
    %v3770 = vmul.f32 %v3740, %v3740
    %v3771 = vmul.f32 %v3746, %v3746
    %v3772 = vmul.f32 %v3752, %v3752
    %v3773 = vmul.f32 %v3758, %v3758
    %v3774 = vadd.f32 %v3770, %v3771
    %v3775 = vadd.f32 %v3774, %v3772
    %v3776 = vadd.f32 %v3775, %v3773
    %v3777 = vrot.slane %v3776, 4
    %v3778 = vadd.f32 %v3776, %v3777
    %v3779 = vrot.slane %v3778, 2
    %v3780 = vadd.f32 %v3778, %v3779
    %v3781 = vrot.slane %v3780, 1
    %v3782 = vadd.f32 %v3780, %v3781
    %v3783 = vsel %vm112, %v3769, %v3782
    %3784 = vmatprep.subr.mxu0 0.0
    %v3785 = vand.u32 %v1905, 4294901760
    %3786 = vmatpush1.msra.mxu0 %v3785
    %3787 = vmatprep.subr.mxu0 0.0
    %v3788 = vand.u32 %v1906, 4294901760
    %3789 = vmatpush1.msra.mxu0 %v3788
    %3790 = vmatprep.subr.mxu0 0.0
    %v3791 = vand.u32 %v1907, 4294901760
    %3792 = vmatpush1.msra.mxu0 %v3791
    %3793 = vmatprep.subr.mxu0 0.0
    %v3794 = vand.u32 %v1908, 4294901760
    %3795 = vmatpush1.msra.mxu0 %v3794
    %3796 = vmatprep.subr.mxu0 0.0
    %v3797 = vand.u32 %v1909, 4294901760
    %3798 = vmatpush1.msra.mxu0 %v3797
    %3799 = vmatprep.subr.mxu0 0.0
    %v3800 = vand.u32 %v1910, 4294901760
    %3801 = vmatpush1.msra.mxu0 %v3800
    %3802 = vmatprep.subr.mxu0 0.0
    %v3803 = vand.u32 %v1911, 4294901760
    %3804 = vmatpush1.msra.mxu0 %v3803
    %3805 = vmatprep.subr.mxu0 0.0
    %v3806 = vand.u32 %v1912, 4294901760
    %3807 = vmatpush1.msra.mxu0 %v3806
    %3808 = vmatprep.subr.mxu0 0.0
    %v3809 = vand.u32 %v1913, 4294901760
    %3810 = vmatpush1.msra.mxu0 %v3809
    %3811 = vmatprep.subr.mxu0 0.0
    %v3812 = vand.u32 %v1914, 4294901760
    %3813 = vmatpush1.msra.mxu0 %v3812
    %3814 = vmatprep.subr.mxu0 0.0
    %v3815 = vand.u32 %v1915, 4294901760
    %3816 = vmatpush1.msra.mxu0 %v3815
    %3817 = vmatprep.subr.mxu0 0.0
    %v3818 = vand.u32 %v1916, 4294901760
    %3819 = vmatpush1.msra.mxu0 %v3818
    %3820 = vmatprep.subr.mxu0 0.0
    %v3821 = vand.u32 %v1917, 4294901760
    %3822 = vmatpush1.msra.mxu0 %v3821
    %3823 = vmatprep.subr.mxu0 0.0
    %v3824 = vand.u32 %v1918, 4294901760
    %3825 = vmatpush1.msra.mxu0 %v3824
    %3826 = vmatprep.subr.mxu0 0.0
    %v3827 = vand.u32 %v1919, 4294901760
    %3828 = vmatpush1.msra.mxu0 %v3827
    %3829 = vmatprep.subr.mxu0 0.0
    %v3830 = vand.u32 %v1920, 4294901760
    %3831 = vmatpush1.msra.mxu0 %v3830
    %3832 = vmatprep.subr.mxu0 0.0
    %3833 = vmatpush1.msra.mxu0 0.0
    %3834 = vmatprep.subr.mxu0 0.0
    %3835 = vmatpush1.msra.mxu0 0.0
    %3836 = vmatprep.subr.mxu0 0.0
    %3837 = vmatpush1.msra.mxu0 0.0
    %3838 = vmatprep.subr.mxu0 0.0
    %3839 = vmatpush1.msra.mxu0 0.0
    %3840 = vmatprep.subr.mxu0 0.0
    %3841 = vmatpush1.msra.mxu0 0.0
    %3842 = vmatprep.subr.mxu0 0.0
    %3843 = vmatpush1.msra.mxu0 0.0
    %3844 = vmatprep.subr.mxu0 0.0
    %3845 = vmatpush1.msra.mxu0 0.0
    %3846 = vmatprep.subr.mxu0 0.0
    %3847 = vmatpush1.msra.mxu0 0.0
    %3848 = vmatprep.subr.mxu0 0.0
    %3849 = vmatpush1.msra.mxu0 0.0
    %3850 = vmatprep.subr.mxu0 0.0
    %3851 = vmatpush1.msra.mxu0 0.0
    %3852 = vmatprep.subr.mxu0 0.0
    %3853 = vmatpush1.msra.mxu0 0.0
    %3854 = vmatprep.subr.mxu0 0.0
    %3855 = vmatpush1.msra.mxu0 0.0
    %3856 = vmatprep.subr.mxu0 0.0
    %3857 = vmatpush1.msra.mxu0 0.0
    %3858 = vmatprep.subr.mxu0 0.0
    %3859 = vmatpush1.msra.mxu0 0.0
    %3860 = vmatprep.subr.mxu0 0.0
    %3861 = vmatpush1.msra.mxu0 0.0
    %3862 = vmatprep.subr.mxu0 0.0
    %3863 = vmatpush1.msra.mxu0 0.0
    %3864 = vmatprep.mubr.f32.mxu0 0.0
    %v3865 = vand.u32 %v3783, 4294901760
    %v3866 = vsub.f32 %v3783, %v3865
    %v3867 = vand.u32 %v3866, 4294901760
    %v3868 = vsub.f32 %v3866, %v3867
    %v3869 = vand.u32 %v3868, 4294901760
    %3870 = vmatmul.mubr.f32.gmra.mrb[0].mxu0 %v3869
    %v3871 = vpop.f32.mrb[0].mxu0
    %v3872 = vadd.f32 0.0, %v3871
    %v3873 = vpop.f32.mrb[0].mxu0
    %3874 = vdwg.mxu0
    %3875 = vmatprep.subr.mxu0 0.0
    %v3876 = vand.u32 %v1905, 4294901760
    %v3877 = vsub.f32 %v1905, %v3876
    %v3878 = vand.u32 %v3877, 4294901760
    %v3879 = vsub.f32 %v3877, %v3878
    %v3880 = vand.u32 %v3879, 4294901760
    %3881 = vmatpush1.msra.mxu0 %v3880
    %3882 = vmatprep.subr.mxu0 0.0
    %v3883 = vand.u32 %v1906, 4294901760
    %v3884 = vsub.f32 %v1906, %v3883
    %v3885 = vand.u32 %v3884, 4294901760
    %v3886 = vsub.f32 %v3884, %v3885
    %v3887 = vand.u32 %v3886, 4294901760
    %3888 = vmatpush1.msra.mxu0 %v3887
    %3889 = vmatprep.subr.mxu0 0.0
    %v3890 = vand.u32 %v1907, 4294901760
    %v3891 = vsub.f32 %v1907, %v3890
    %v3892 = vand.u32 %v3891, 4294901760
    %v3893 = vsub.f32 %v3891, %v3892
    %v3894 = vand.u32 %v3893, 4294901760
    %3895 = vmatpush1.msra.mxu0 %v3894
    %3896 = vmatprep.subr.mxu0 0.0
    %v3897 = vand.u32 %v1908, 4294901760
    %v3898 = vsub.f32 %v1908, %v3897
    %v3899 = vand.u32 %v3898, 4294901760
    %v3900 = vsub.f32 %v3898, %v3899
    %v3901 = vand.u32 %v3900, 4294901760
    %3902 = vmatpush1.msra.mxu0 %v3901
    %3903 = vmatprep.subr.mxu0 0.0
    %v3904 = vand.u32 %v1909, 4294901760
    %v3905 = vsub.f32 %v1909, %v3904
    %v3906 = vand.u32 %v3905, 4294901760
    %v3907 = vsub.f32 %v3905, %v3906
    %v3908 = vand.u32 %v3907, 4294901760
    %3909 = vmatpush1.msra.mxu0 %v3908
    %3910 = vmatprep.subr.mxu0 0.0
    %v3911 = vand.u32 %v1910, 4294901760
    %v3912 = vsub.f32 %v1910, %v3911
    %v3913 = vand.u32 %v3912, 4294901760
    %v3914 = vsub.f32 %v3912, %v3913
    %v3915 = vand.u32 %v3914, 4294901760
    %3916 = vmatpush1.msra.mxu0 %v3915
    %3917 = vmatprep.subr.mxu0 0.0
    %v3918 = vand.u32 %v1911, 4294901760
    %v3919 = vsub.f32 %v1911, %v3918
    %v3920 = vand.u32 %v3919, 4294901760
    %v3921 = vsub.f32 %v3919, %v3920
    %v3922 = vand.u32 %v3921, 4294901760
    %3923 = vmatpush1.msra.mxu0 %v3922
    %3924 = vmatprep.subr.mxu0 0.0
    %v3925 = vand.u32 %v1912, 4294901760
    %v3926 = vsub.f32 %v1912, %v3925
    %v3927 = vand.u32 %v3926, 4294901760
    %v3928 = vsub.f32 %v3926, %v3927
    %v3929 = vand.u32 %v3928, 4294901760
    %3930 = vmatpush1.msra.mxu0 %v3929
    %3931 = vmatprep.subr.mxu0 0.0
    %v3932 = vand.u32 %v1913, 4294901760
    %v3933 = vsub.f32 %v1913, %v3932
    %v3934 = vand.u32 %v3933, 4294901760
    %v3935 = vsub.f32 %v3933, %v3934
    %v3936 = vand.u32 %v3935, 4294901760
    %3937 = vmatpush1.msra.mxu0 %v3936
    %3938 = vmatprep.subr.mxu0 0.0
    %v3939 = vand.u32 %v1914, 4294901760
    %v3940 = vsub.f32 %v1914, %v3939
    %v3941 = vand.u32 %v3940, 4294901760
    %v3942 = vsub.f32 %v3940, %v3941
    %v3943 = vand.u32 %v3942, 4294901760
    %3944 = vmatpush1.msra.mxu0 %v3943
    %3945 = vmatprep.subr.mxu0 0.0
    %v3946 = vand.u32 %v1915, 4294901760
    %v3947 = vsub.f32 %v1915, %v3946
    %v3948 = vand.u32 %v3947, 4294901760
    %v3949 = vsub.f32 %v3947, %v3948
    %v3950 = vand.u32 %v3949, 4294901760
    %3951 = vmatpush1.msra.mxu0 %v3950
    %3952 = vmatprep.subr.mxu0 0.0
    %v3953 = vand.u32 %v1916, 4294901760
    %v3954 = vsub.f32 %v1916, %v3953
    %v3955 = vand.u32 %v3954, 4294901760
    %v3956 = vsub.f32 %v3954, %v3955
    %v3957 = vand.u32 %v3956, 4294901760
    %3958 = vmatpush1.msra.mxu0 %v3957
    %3959 = vmatprep.subr.mxu0 0.0
    %v3960 = vand.u32 %v1917, 4294901760
    %v3961 = vsub.f32 %v1917, %v3960
    %v3962 = vand.u32 %v3961, 4294901760
    %v3963 = vsub.f32 %v3961, %v3962
    %v3964 = vand.u32 %v3963, 4294901760
    %3965 = vmatpush1.msra.mxu0 %v3964
    %3966 = vmatprep.subr.mxu0 0.0
    %v3967 = vand.u32 %v1918, 4294901760
    %v3968 = vsub.f32 %v1918, %v3967
    %v3969 = vand.u32 %v3968, 4294901760
    %v3970 = vsub.f32 %v3968, %v3969
    %v3971 = vand.u32 %v3970, 4294901760
    %3972 = vmatpush1.msra.mxu0 %v3971
    %3973 = vmatprep.subr.mxu0 0.0
    %v3974 = vand.u32 %v1919, 4294901760
    %v3975 = vsub.f32 %v1919, %v3974
    %v3976 = vand.u32 %v3975, 4294901760
    %v3977 = vsub.f32 %v3975, %v3976
    %v3978 = vand.u32 %v3977, 4294901760
    %3979 = vmatpush1.msra.mxu0 %v3978
    %3980 = vmatprep.subr.mxu0 0.0
    %v3981 = vand.u32 %v1920, 4294901760
    %v3982 = vsub.f32 %v1920, %v3981
    %v3983 = vand.u32 %v3982, 4294901760
    %v3984 = vsub.f32 %v3982, %v3983
    %v3985 = vand.u32 %v3984, 4294901760
    %3986 = vmatpush1.msra.mxu0 %v3985
    %3987 = vmatprep.subr.mxu0 0.0
    %3988 = vmatpush1.msra.mxu0 0.0
    %3989 = vmatprep.subr.mxu0 0.0
    %3990 = vmatpush1.msra.mxu0 0.0
    %3991 = vmatprep.subr.mxu0 0.0
    %3992 = vmatpush1.msra.mxu0 0.0
    %3993 = vmatprep.subr.mxu0 0.0
    %3994 = vmatpush1.msra.mxu0 0.0
    %3995 = vmatprep.subr.mxu0 0.0
    %3996 = vmatpush1.msra.mxu0 0.0
    %3997 = vmatprep.subr.mxu0 0.0
    %3998 = vmatpush1.msra.mxu0 0.0
    %3999 = vmatprep.subr.mxu0 0.0
    %4000 = vmatpush1.msra.mxu0 0.0
    %4001 = vmatprep.subr.mxu0 0.0
    %4002 = vmatpush1.msra.mxu0 0.0
    %4003 = vmatprep.subr.mxu0 0.0
    %4004 = vmatpush1.msra.mxu0 0.0
    %4005 = vmatprep.subr.mxu0 0.0
    %4006 = vmatpush1.msra.mxu0 0.0
    %4007 = vmatprep.subr.mxu0 0.0
    %4008 = vmatpush1.msra.mxu0 0.0
    %4009 = vmatprep.subr.mxu0 0.0
    %4010 = vmatpush1.msra.mxu0 0.0
    %4011 = vmatprep.subr.mxu0 0.0
    %4012 = vmatpush1.msra.mxu0 0.0
    %4013 = vmatprep.subr.mxu0 0.0
    %4014 = vmatpush1.msra.mxu0 0.0
    %4015 = vmatprep.subr.mxu0 0.0
    %4016 = vmatpush1.msra.mxu0 0.0
    %4017 = vmatprep.subr.mxu0 0.0
    %4018 = vmatpush1.msra.mxu0 0.0
    %4019 = vmatprep.mubr.f32.mxu0 0.0
    %v4020 = vand.u32 %v3783, 4294901760
    %4021 = vmatmul.mubr.f32.gmra.mrb[0].mxu0 %v4020
    %v4022 = vpop.f32.mrb[0].mxu0
    %v4023 = vadd.f32 %v3872, %v4022
    %v4024 = vpop.f32.mrb[0].mxu0
    %4025 = vdwg.mxu0
    %4026 = vmatprep.subr.mxu0 0.0
    %v4027 = vand.u32 %v1905, 4294901760
    %v4028 = vsub.f32 %v1905, %v4027
    %4029 = vmatpush1.msra.mxu0 %v4028
    %4030 = vmatprep.subr.mxu0 0.0
    %v4031 = vand.u32 %v1906, 4294901760
    %v4032 = vsub.f32 %v1906, %v4031
    %4033 = vmatpush1.msra.mxu0 %v4032
    %4034 = vmatprep.subr.mxu0 0.0
    %v4035 = vand.u32 %v1907, 4294901760
    %v4036 = vsub.f32 %v1907, %v4035
    %4037 = vmatpush1.msra.mxu0 %v4036
    %4038 = vmatprep.subr.mxu0 0.0
    %v4039 = vand.u32 %v1908, 4294901760
    %v4040 = vsub.f32 %v1908, %v4039
    %4041 = vmatpush1.msra.mxu0 %v4040
    %4042 = vmatprep.subr.mxu0 0.0
    %v4043 = vand.u32 %v1909, 4294901760
    %v4044 = vsub.f32 %v1909, %v4043
    %4045 = vmatpush1.msra.mxu0 %v4044
    %4046 = vmatprep.subr.mxu0 0.0
    %v4047 = vand.u32 %v1910, 4294901760
    %v4048 = vsub.f32 %v1910, %v4047
    %4049 = vmatpush1.msra.mxu0 %v4048
    %4050 = vmatprep.subr.mxu0 0.0
    %v4051 = vand.u32 %v1911, 4294901760
    %v4052 = vsub.f32 %v1911, %v4051
    %4053 = vmatpush1.msra.mxu0 %v4052
    %4054 = vmatprep.subr.mxu0 0.0
    %v4055 = vand.u32 %v1912, 4294901760
    %v4056 = vsub.f32 %v1912, %v4055
    %4057 = vmatpush1.msra.mxu0 %v4056
    %4058 = vmatprep.subr.mxu0 0.0
    %v4059 = vand.u32 %v1913, 4294901760
    %v4060 = vsub.f32 %v1913, %v4059
    %4061 = vmatpush1.msra.mxu0 %v4060
    %4062 = vmatprep.subr.mxu0 0.0
    %v4063 = vand.u32 %v1914, 4294901760
    %v4064 = vsub.f32 %v1914, %v4063
    %4065 = vmatpush1.msra.mxu0 %v4064
    %4066 = vmatprep.subr.mxu0 0.0
    %v4067 = vand.u32 %v1915, 4294901760
    %v4068 = vsub.f32 %v1915, %v4067
    %4069 = vmatpush1.msra.mxu0 %v4068
    %4070 = vmatprep.subr.mxu0 0.0
    %v4071 = vand.u32 %v1916, 4294901760
    %v4072 = vsub.f32 %v1916, %v4071
    %4073 = vmatpush1.msra.mxu0 %v4072
    %4074 = vmatprep.subr.mxu0 0.0
    %v4075 = vand.u32 %v1917, 4294901760
    %v4076 = vsub.f32 %v1917, %v4075
    %4077 = vmatpush1.msra.mxu0 %v4076
    %4078 = vmatprep.subr.mxu0 0.0
    %v4079 = vand.u32 %v1918, 4294901760
    %v4080 = vsub.f32 %v1918, %v4079
    %4081 = vmatpush1.msra.mxu0 %v4080
    %4082 = vmatprep.subr.mxu0 0.0
    %v4083 = vand.u32 %v1919, 4294901760
    %v4084 = vsub.f32 %v1919, %v4083
    %4085 = vmatpush1.msra.mxu0 %v4084
    %4086 = vmatprep.subr.mxu0 0.0
    %v4087 = vand.u32 %v1920, 4294901760
    %v4088 = vsub.f32 %v1920, %v4087
    %4089 = vmatpush1.msra.mxu0 %v4088
    %4090 = vmatprep.subr.mxu0 0.0
    %4091 = vmatpush1.msra.mxu0 0.0
    %4092 = vmatprep.subr.mxu0 0.0
    %4093 = vmatpush1.msra.mxu0 0.0
    %4094 = vmatprep.subr.mxu0 0.0
    %4095 = vmatpush1.msra.mxu0 0.0
    %4096 = vmatprep.subr.mxu0 0.0
    %4097 = vmatpush1.msra.mxu0 0.0
    %4098 = vmatprep.subr.mxu0 0.0
    %4099 = vmatpush1.msra.mxu0 0.0
    %4100 = vmatprep.subr.mxu0 0.0
    %4101 = vmatpush1.msra.mxu0 0.0
    %4102 = vmatprep.subr.mxu0 0.0
    %4103 = vmatpush1.msra.mxu0 0.0
    %4104 = vmatprep.subr.mxu0 0.0
    %4105 = vmatpush1.msra.mxu0 0.0
    %4106 = vmatprep.subr.mxu0 0.0
    %4107 = vmatpush1.msra.mxu0 0.0
    %4108 = vmatprep.subr.mxu0 0.0
    %4109 = vmatpush1.msra.mxu0 0.0
    %4110 = vmatprep.subr.mxu0 0.0
    %4111 = vmatpush1.msra.mxu0 0.0
    %4112 = vmatprep.subr.mxu0 0.0
    %4113 = vmatpush1.msra.mxu0 0.0
    %4114 = vmatprep.subr.mxu0 0.0
    %4115 = vmatpush1.msra.mxu0 0.0
    %4116 = vmatprep.subr.mxu0 0.0
    %4117 = vmatpush1.msra.mxu0 0.0
    %4118 = vmatprep.subr.mxu0 0.0
    %4119 = vmatpush1.msra.mxu0 0.0
    %4120 = vmatprep.subr.mxu0 0.0
    %4121 = vmatpush1.msra.mxu0 0.0
    %4122 = vmatprep.mubr.f32.mxu0 0.0
    %v4123 = vand.u32 %v3783, 4294901760
    %v4124 = vsub.f32 %v3783, %v4123
    %4125 = vmatmul.mubr.f32.gmra.mrb[0].mxu0 %v4124
    %v4126 = vpop.f32.mrb[0].mxu0
    %v4127 = vadd.f32 %v4023, %v4126
    %v4128 = vpop.f32.mrb[0].mxu0
    %4129 = vdwg.mxu0
    %4130 = vmatprep.subr.mxu0 0.0
    %v4131 = vand.u32 %v1905, 4294901760
    %4132 = vmatpush1.msra.mxu0 %v4131
    %4133 = vmatprep.subr.mxu0 0.0
    %v4134 = vand.u32 %v1906, 4294901760
    %4135 = vmatpush1.msra.mxu0 %v4134
    %4136 = vmatprep.subr.mxu0 0.0
    %v4137 = vand.u32 %v1907, 4294901760
    %4138 = vmatpush1.msra.mxu0 %v4137
    %4139 = vmatprep.subr.mxu0 0.0
    %v4140 = vand.u32 %v1908, 4294901760
    %4141 = vmatpush1.msra.mxu0 %v4140
    %4142 = vmatprep.subr.mxu0 0.0
    %v4143 = vand.u32 %v1909, 4294901760
    %4144 = vmatpush1.msra.mxu0 %v4143
    %4145 = vmatprep.subr.mxu0 0.0
    %v4146 = vand.u32 %v1910, 4294901760
    %4147 = vmatpush1.msra.mxu0 %v4146
    %4148 = vmatprep.subr.mxu0 0.0
    %v4149 = vand.u32 %v1911, 4294901760
    %4150 = vmatpush1.msra.mxu0 %v4149
    %4151 = vmatprep.subr.mxu0 0.0
    %v4152 = vand.u32 %v1912, 4294901760
    %4153 = vmatpush1.msra.mxu0 %v4152
    %4154 = vmatprep.subr.mxu0 0.0
    %v4155 = vand.u32 %v1913, 4294901760
    %4156 = vmatpush1.msra.mxu0 %v4155
    %4157 = vmatprep.subr.mxu0 0.0
    %v4158 = vand.u32 %v1914, 4294901760
    %4159 = vmatpush1.msra.mxu0 %v4158
    %4160 = vmatprep.subr.mxu0 0.0
    %v4161 = vand.u32 %v1915, 4294901760
    %4162 = vmatpush1.msra.mxu0 %v4161
    %4163 = vmatprep.subr.mxu0 0.0
    %v4164 = vand.u32 %v1916, 4294901760
    %4165 = vmatpush1.msra.mxu0 %v4164
    %4166 = vmatprep.subr.mxu0 0.0
    %v4167 = vand.u32 %v1917, 4294901760
    %4168 = vmatpush1.msra.mxu0 %v4167
    %4169 = vmatprep.subr.mxu0 0.0
    %v4170 = vand.u32 %v1918, 4294901760
    %4171 = vmatpush1.msra.mxu0 %v4170
    %4172 = vmatprep.subr.mxu0 0.0
    %v4173 = vand.u32 %v1919, 4294901760
    %4174 = vmatpush1.msra.mxu0 %v4173
    %4175 = vmatprep.subr.mxu0 0.0
    %v4176 = vand.u32 %v1920, 4294901760
    %4177 = vmatpush1.msra.mxu0 %v4176
    %4178 = vmatprep.subr.mxu0 0.0
    %4179 = vmatpush1.msra.mxu0 0.0
    %4180 = vmatprep.subr.mxu0 0.0
    %4181 = vmatpush1.msra.mxu0 0.0
    %4182 = vmatprep.subr.mxu0 0.0
    %4183 = vmatpush1.msra.mxu0 0.0
    %4184 = vmatprep.subr.mxu0 0.0
    %4185 = vmatpush1.msra.mxu0 0.0
    %4186 = vmatprep.subr.mxu0 0.0
    %4187 = vmatpush1.msra.mxu0 0.0
    %4188 = vmatprep.subr.mxu0 0.0
    %4189 = vmatpush1.msra.mxu0 0.0
    %4190 = vmatprep.subr.mxu0 0.0
    %4191 = vmatpush1.msra.mxu0 0.0
    %4192 = vmatprep.subr.mxu0 0.0
    %4193 = vmatpush1.msra.mxu0 0.0
    %4194 = vmatprep.subr.mxu0 0.0
    %4195 = vmatpush1.msra.mxu0 0.0
    %4196 = vmatprep.subr.mxu0 0.0
    %4197 = vmatpush1.msra.mxu0 0.0
    %4198 = vmatprep.subr.mxu0 0.0
    %4199 = vmatpush1.msra.mxu0 0.0
    %4200 = vmatprep.subr.mxu0 0.0
    %4201 = vmatpush1.msra.mxu0 0.0
    %4202 = vmatprep.subr.mxu0 0.0
    %4203 = vmatpush1.msra.mxu0 0.0
    %4204 = vmatprep.subr.mxu0 0.0
    %4205 = vmatpush1.msra.mxu0 0.0
    %4206 = vmatprep.subr.mxu0 0.0
    %4207 = vmatpush1.msra.mxu0 0.0
    %4208 = vmatprep.subr.mxu0 0.0
    %4209 = vmatpush1.msra.mxu0 0.0
    %4210 = vmatprep.mubr.f32.mxu0 0.0
    %v4211 = vand.u32 %v3783, 4294901760
    %v4212 = vsub.f32 %v3783, %v4211
    %v4213 = vand.u32 %v4212, 4294901760
    %4214 = vmatmul.mubr.f32.gmra.mrb[0].mxu0 %v4213
    %v4215 = vpop.f32.mrb[0].mxu0
    %v4216 = vadd.f32 %v4127, %v4215
    %v4217 = vpop.f32.mrb[0].mxu0
    %4218 = vdwg.mxu0
    %4219 = vmatprep.subr.mxu0 0.0
    %v4220 = vand.u32 %v1905, 4294901760
    %v4221 = vsub.f32 %v1905, %v4220
    %v4222 = vand.u32 %v4221, 4294901760
    %4223 = vmatpush1.msra.mxu0 %v4222
    %4224 = vmatprep.subr.mxu0 0.0
    %v4225 = vand.u32 %v1906, 4294901760
    %v4226 = vsub.f32 %v1906, %v4225
    %v4227 = vand.u32 %v4226, 4294901760
    %4228 = vmatpush1.msra.mxu0 %v4227
    %4229 = vmatprep.subr.mxu0 0.0
    %v4230 = vand.u32 %v1907, 4294901760
    %v4231 = vsub.f32 %v1907, %v4230
    %v4232 = vand.u32 %v4231, 4294901760
    %4233 = vmatpush1.msra.mxu0 %v4232
    %4234 = vmatprep.subr.mxu0 0.0
    %v4235 = vand.u32 %v1908, 4294901760
    %v4236 = vsub.f32 %v1908, %v4235
    %v4237 = vand.u32 %v4236, 4294901760
    %4238 = vmatpush1.msra.mxu0 %v4237
    %4239 = vmatprep.subr.mxu0 0.0
    %v4240 = vand.u32 %v1909, 4294901760
    %v4241 = vsub.f32 %v1909, %v4240
    %v4242 = vand.u32 %v4241, 4294901760
    %4243 = vmatpush1.msra.mxu0 %v4242
    %4244 = vmatprep.subr.mxu0 0.0
    %v4245 = vand.u32 %v1910, 4294901760
    %v4246 = vsub.f32 %v1910, %v4245
    %v4247 = vand.u32 %v4246, 4294901760
    %4248 = vmatpush1.msra.mxu0 %v4247
    %4249 = vmatprep.subr.mxu0 0.0
    %v4250 = vand.u32 %v1911, 4294901760
    %v4251 = vsub.f32 %v1911, %v4250
    %v4252 = vand.u32 %v4251, 4294901760
    %4253 = vmatpush1.msra.mxu0 %v4252
    %4254 = vmatprep.subr.mxu0 0.0
    %v4255 = vand.u32 %v1912, 4294901760
    %v4256 = vsub.f32 %v1912, %v4255
    %v4257 = vand.u32 %v4256, 4294901760
    %4258 = vmatpush1.msra.mxu0 %v4257
    %4259 = vmatprep.subr.mxu0 0.0
    %v4260 = vand.u32 %v1913, 4294901760
    %v4261 = vsub.f32 %v1913, %v4260
    %v4262 = vand.u32 %v4261, 4294901760
    %4263 = vmatpush1.msra.mxu0 %v4262
    %4264 = vmatprep.subr.mxu0 0.0
    %v4265 = vand.u32 %v1914, 4294901760
    %v4266 = vsub.f32 %v1914, %v4265
    %v4267 = vand.u32 %v4266, 4294901760
    %4268 = vmatpush1.msra.mxu0 %v4267
    %4269 = vmatprep.subr.mxu0 0.0
    %v4270 = vand.u32 %v1915, 4294901760
    %v4271 = vsub.f32 %v1915, %v4270
    %v4272 = vand.u32 %v4271, 4294901760
    %4273 = vmatpush1.msra.mxu0 %v4272
    %4274 = vmatprep.subr.mxu0 0.0
    %v4275 = vand.u32 %v1916, 4294901760
    %v4276 = vsub.f32 %v1916, %v4275
    %v4277 = vand.u32 %v4276, 4294901760
    %4278 = vmatpush1.msra.mxu0 %v4277
    %4279 = vmatprep.subr.mxu0 0.0
    %v4280 = vand.u32 %v1917, 4294901760
    %v4281 = vsub.f32 %v1917, %v4280
    %v4282 = vand.u32 %v4281, 4294901760
    %4283 = vmatpush1.msra.mxu0 %v4282
    %4284 = vmatprep.subr.mxu0 0.0
    %v4285 = vand.u32 %v1918, 4294901760
    %v4286 = vsub.f32 %v1918, %v4285
    %v4287 = vand.u32 %v4286, 4294901760
    %4288 = vmatpush1.msra.mxu0 %v4287
    %4289 = vmatprep.subr.mxu0 0.0
    %v4290 = vand.u32 %v1919, 4294901760
    %v4291 = vsub.f32 %v1919, %v4290
    %v4292 = vand.u32 %v4291, 4294901760
    %4293 = vmatpush1.msra.mxu0 %v4292
    %4294 = vmatprep.subr.mxu0 0.0
    %v4295 = vand.u32 %v1920, 4294901760
    %v4296 = vsub.f32 %v1920, %v4295
    %v4297 = vand.u32 %v4296, 4294901760
    %4298 = vmatpush1.msra.mxu0 %v4297
    %4299 = vmatprep.subr.mxu0 0.0
    %4300 = vmatpush1.msra.mxu0 0.0
    %4301 = vmatprep.subr.mxu0 0.0
    %4302 = vmatpush1.msra.mxu0 0.0
    %4303 = vmatprep.subr.mxu0 0.0
    %4304 = vmatpush1.msra.mxu0 0.0
    %4305 = vmatprep.subr.mxu0 0.0
    %4306 = vmatpush1.msra.mxu0 0.0
    %4307 = vmatprep.subr.mxu0 0.0
    %4308 = vmatpush1.msra.mxu0 0.0
    %4309 = vmatprep.subr.mxu0 0.0
    %4310 = vmatpush1.msra.mxu0 0.0
    %4311 = vmatprep.subr.mxu0 0.0
    %4312 = vmatpush1.msra.mxu0 0.0
    %4313 = vmatprep.subr.mxu0 0.0
    %4314 = vmatpush1.msra.mxu0 0.0
    %4315 = vmatprep.subr.mxu0 0.0
    %4316 = vmatpush1.msra.mxu0 0.0
    %4317 = vmatprep.subr.mxu0 0.0
    %4318 = vmatpush1.msra.mxu0 0.0
    %4319 = vmatprep.subr.mxu0 0.0
    %4320 = vmatpush1.msra.mxu0 0.0
    %4321 = vmatprep.subr.mxu0 0.0
    %4322 = vmatpush1.msra.mxu0 0.0
    %4323 = vmatprep.subr.mxu0 0.0
    %4324 = vmatpush1.msra.mxu0 0.0
    %4325 = vmatprep.subr.mxu0 0.0
    %4326 = vmatpush1.msra.mxu0 0.0
    %4327 = vmatprep.subr.mxu0 0.0
    %4328 = vmatpush1.msra.mxu0 0.0
    %4329 = vmatprep.subr.mxu0 0.0
    %4330 = vmatpush1.msra.mxu0 0.0
    %4331 = vmatprep.mubr.f32.mxu0 0.0
    %v4332 = vand.u32 %v3783, 4294901760
    %4333 = vmatmul.mubr.f32.gmra.mrb[0].mxu0 %v4332
    %v4334 = vpop.f32.mrb[0].mxu0
    %v4335 = vadd.f32 %v4216, %v4334
    %v4336 = vpop.f32.mrb[0].mxu0
    %4337 = vdwg.mxu0
    %4338 = vmatprep.subr.mxu0 0.0
    %v4339 = vand.u32 %v1905, 4294901760
    %4340 = vmatpush1.msra.mxu0 %v4339
    %4341 = vmatprep.subr.mxu0 0.0
    %v4342 = vand.u32 %v1906, 4294901760
    %4343 = vmatpush1.msra.mxu0 %v4342
    %4344 = vmatprep.subr.mxu0 0.0
    %v4345 = vand.u32 %v1907, 4294901760
    %4346 = vmatpush1.msra.mxu0 %v4345
    %4347 = vmatprep.subr.mxu0 0.0
    %v4348 = vand.u32 %v1908, 4294901760
    %4349 = vmatpush1.msra.mxu0 %v4348
    %4350 = vmatprep.subr.mxu0 0.0
    %v4351 = vand.u32 %v1909, 4294901760
    %4352 = vmatpush1.msra.mxu0 %v4351
    %4353 = vmatprep.subr.mxu0 0.0
    %v4354 = vand.u32 %v1910, 4294901760
    %4355 = vmatpush1.msra.mxu0 %v4354
    %4356 = vmatprep.subr.mxu0 0.0
    %v4357 = vand.u32 %v1911, 4294901760
    %4358 = vmatpush1.msra.mxu0 %v4357
    %4359 = vmatprep.subr.mxu0 0.0
    %v4360 = vand.u32 %v1912, 4294901760
    %4361 = vmatpush1.msra.mxu0 %v4360
    %4362 = vmatprep.subr.mxu0 0.0
    %v4363 = vand.u32 %v1913, 4294901760
    %4364 = vmatpush1.msra.mxu0 %v4363
    %4365 = vmatprep.subr.mxu0 0.0
    %v4366 = vand.u32 %v1914, 4294901760
    %4367 = vmatpush1.msra.mxu0 %v4366
    %4368 = vmatprep.subr.mxu0 0.0
    %v4369 = vand.u32 %v1915, 4294901760
    %4370 = vmatpush1.msra.mxu0 %v4369
    %4371 = vmatprep.subr.mxu0 0.0
    %v4372 = vand.u32 %v1916, 4294901760
    %4373 = vmatpush1.msra.mxu0 %v4372
    %4374 = vmatprep.subr.mxu0 0.0
    %v4375 = vand.u32 %v1917, 4294901760
    %4376 = vmatpush1.msra.mxu0 %v4375
    %4377 = vmatprep.subr.mxu0 0.0
    %v4378 = vand.u32 %v1918, 4294901760
    %4379 = vmatpush1.msra.mxu0 %v4378
    %4380 = vmatprep.subr.mxu0 0.0
    %v4381 = vand.u32 %v1919, 4294901760
    %4382 = vmatpush1.msra.mxu0 %v4381
    %4383 = vmatprep.subr.mxu0 0.0
    %v4384 = vand.u32 %v1920, 4294901760
    %4385 = vmatpush1.msra.mxu0 %v4384
    %4386 = vmatprep.subr.mxu0 0.0
    %4387 = vmatpush1.msra.mxu0 0.0
    %4388 = vmatprep.subr.mxu0 0.0
    %4389 = vmatpush1.msra.mxu0 0.0
    %4390 = vmatprep.subr.mxu0 0.0
    %4391 = vmatpush1.msra.mxu0 0.0
    %4392 = vmatprep.subr.mxu0 0.0
    %4393 = vmatpush1.msra.mxu0 0.0
    %4394 = vmatprep.subr.mxu0 0.0
    %4395 = vmatpush1.msra.mxu0 0.0
    %4396 = vmatprep.subr.mxu0 0.0
    %4397 = vmatpush1.msra.mxu0 0.0
    %4398 = vmatprep.subr.mxu0 0.0
    %4399 = vmatpush1.msra.mxu0 0.0
    %4400 = vmatprep.subr.mxu0 0.0
    %4401 = vmatpush1.msra.mxu0 0.0
    %4402 = vmatprep.subr.mxu0 0.0
    %4403 = vmatpush1.msra.mxu0 0.0
    %4404 = vmatprep.subr.mxu0 0.0
    %4405 = vmatpush1.msra.mxu0 0.0
    %4406 = vmatprep.subr.mxu0 0.0
    %4407 = vmatpush1.msra.mxu0 0.0
    %4408 = vmatprep.subr.mxu0 0.0
    %4409 = vmatpush1.msra.mxu0 0.0
    %4410 = vmatprep.subr.mxu0 0.0
    %4411 = vmatpush1.msra.mxu0 0.0
    %4412 = vmatprep.subr.mxu0 0.0
    %4413 = vmatpush1.msra.mxu0 0.0
    %4414 = vmatprep.subr.mxu0 0.0
    %4415 = vmatpush1.msra.mxu0 0.0
    %4416 = vmatprep.subr.mxu0 0.0
    %4417 = vmatpush1.msra.mxu0 0.0
    %4418 = vmatprep.mubr.f32.mxu0 0.0
    %v4419 = vand.u32 %v3783, 4294901760
    %4420 = vmatmul.mubr.f32.gmra.mrb[0].mxu0 %v4419
    %v4421 = vpop.f32.mrb[0].mxu0
    %v4422 = vadd.f32 %v4335, %v4421
    %v4423 = vpop.f32.mrb[0].mxu0
    %4424 = vdwg.mxu0
    %v4425 = vmul.f32 %v4422, 0.001953125
    %v4426 = vmul.f32 %v4425, %v4425
    %v4428 = vrot.slane %v4426, 7
    %v4430 = vsub.f32 %v4425, %v4428
    %v4431 = vadd.f32 %v4430, 1e-05
    %v4432 = vrsqrt.pop %v4431
    %v4435 = vunpack.c.l.s4 1966171168
    %v4436 = vunpack.c.0.s8 %v4435
    %v4437 = vlaneseq
    %v4438 = vshrl.u32 %v4437, 7
    %v4439 = vsub.s32 %v4436, %v4438
    %v4440 = vrot.slane %v4432, %v4439
    %v4441 = vcombine.high %v4440, %v4440
    %v4443 = vunpack.c.l.s4 1966171168
    %v4444 = vunpack.c.0.s8 %v4443
    %v4445 = vlaneseq
    %v4446 = vshrl.u32 %v4445, 7
    %v4447 = vsub.s32 %v4444, %v4446
    %v4448 = vrot.slane %v4441, %v4447
    %v4450 = vmul.f32 %v1921, %v4448
    %v4451 = vmul.f32 %v4425, %v4450
    %v4452 = vsub.f32 %v1922, %v4451
    %v4454 = vlaneseq
    %v4455 = vshrl.u32 %v4454, 7
    %v4456 = vsub.s32 0, %v4455
    %v4457 = vrot.slane %v4450, %v4456
    %v4459 = vmul.f32 %v3740, %v4457
    %v4460 = vmul.f32 %v3746, %v4457
    %v4461 = vmul.f32 %v3752, %v4457
    %v4462 = vmul.f32 %v3758, %v4457
    %v4464 = vlaneseq
    %v4465 = vshrl.u32 %v4464, 7
    %v4466 = vsub.s32 0, %v4465
    %v4467 = vrot.slane %v4452, %v4466
    %v4469 = vadd.f32 %v4459, %v4467
    %v4470 = vadd.f32 %v4460, %v4467
    %v4471 = vadd.f32 %v4461, %v4467
    %v4472 = vadd.f32 %v4462, %v4467
    %v4473 = vmax.f32 %v4469, 0.0
    %v4474 = vmax.f32 %v4470, 0.0
    %v4475 = vmax.f32 %v4471, 0.0
    %v4476 = vmax.f32 %v4472, 0.0
    %4477 = vst [vmem:[%s11] sm:$0xff] %v4473
    %4478 = vst [vmem:[%s11 + $0x8] sm:$0xff] %v4474
    %4479 = vst [vmem:[%s11 + $0x10] sm:$0xff] %v4475
    %4480 = vst [vmem:[%s11 + $0x18] sm:$0xff] %v4476
    // Predicated region
    $region50: #{double_conv_forward.1} parent=1 // pred_check
      _
    $region51: #{double_conv_forward.1} parent=1 // pred_check_branch
      %4482 = sbr.rel (0) target = $region53
    $region52: #{double_conv_forward.1} parent=1 // pred_region
      _
    $region53: #{double_conv_forward.1} parent=1 // pred_fallthru
      _
    // Predicated region
    $region54: #{double_conv_forward.1} parent=1 // pred_check
      _
    $region55: #{double_conv_forward.1} parent=1 // pred_check_branch
      %4484 = sbr.rel (0) target = $region57
    $region56: #{double_conv_forward.1} parent=1 // pred_region
      _
    $region57: #{double_conv_forward.1} parent=1 // pred_fallthru
      _
    %4485 = vsyncpa [#allocation3], 1

</llo_original>
